<compile_context>
chip_gen: v7x
topology: tpu7x:2x2x1
jax: 0.10.0
libtpu: 0.0.40
codegen_flags: <defaults>
</compile_context>

<pallas_src>
import functools

import jax
import jax.numpy as jnp
from jax.experimental import pallas as pl
from jax.experimental.pallas import tpu as pltpu


def _mlp_head_kernel(x_ref, w1_ref, b1_ref, w2_ref, b2_ref, o_ref, h_ref):
    # ---- Layer 1: computed once per batch tile, cached (bf16) and reused
    #      for every OUT tile of the inner grid axis.
    @pl.when(pl.program_id(1) == 0)
    def _():
        h = jnp.dot(x_ref[...], w1_ref[...],
                    preferred_element_type=jnp.float32)
        h = h + b1_ref[...]                        # (tm, H) + (1, H)
        h = jnp.where(h > 0, h, 0.2 * h)           # LeakyReLU(0.2), f32
        h_ref[...] = h.astype(h_ref.dtype)         # cache as bf16

    # ---- Layer 2: current (H, tn) slab of W2, f32 accumulation, Tanh.
    y = jnp.dot(h_ref[...], w2_ref[...],
                preferred_element_type=jnp.float32)
    o_ref[...] = jnp.tanh(y + b2_ref[...])         # (tm, tn) + (1, tn)


def _round_up(v, m):
    return (v + m - 1) // m * m


def _pad_2d(a, rows, cols, dtype):
    """Cast and zero-pad a 2-D array to (rows, cols); no-op copy if aligned."""
    a = a.astype(dtype)
    if a.shape == (rows, cols):
        return a
    return jnp.zeros((rows, cols), dtype).at[:a.shape[0], :a.shape[1]].set(a)


@functools.partial(jax.jit, static_argnames=("tm", "tn"))
def generator_head_forward(x, w1, b1, w2, b2, *, tm=256, tn=2048):
    """Fused Linear -> LeakyReLU(0.2) -> Linear -> Tanh for one head."""
    M, IN = x.shape
    H = w1.shape[1]
    OUT = w2.shape[1]
    b1 = b1.reshape(1, -1)
    b2 = b2.reshape(1, -1)

    # Pad to TPU-friendly shapes: lane dims -> x128, batch -> x8.
    in_p = _round_up(IN, 128)
    h_p = _round_up(H, 128)
    tm = min(tm, _round_up(M, 8))                  # small batch: one M tile
    m_p = _round_up(M, tm)
    tn = min(_round_up(tn, 128), _round_up(OUT, 128))
    out_p = _round_up(_round_up(OUT, 128), tn)     # divisible by tn

    wdt = jnp.bfloat16                             # MXU inputs; f32 accum
    x_p = _pad_2d(x, m_p, in_p, wdt)
    w1_p = _pad_2d(w1, in_p, h_p, wdt)
    w2_p = _pad_2d(w2, h_p, out_p, wdt)
    b1_p = _pad_2d(b1, 1, h_p, jnp.float32)
    b2_p = _pad_2d(b2, 1, out_p, jnp.float32)

    grid = (m_p // tm, out_p // tn)

    # VMEM budget: double-buffered tiles + resident W1/b1 + bf16 h scratch.
    vmem_needed = (
        2 * (tm * in_p * 2          # x tile (bf16)
             + in_p * h_p * 2       # W1 (bf16, resident)
             + h_p * 4              # b1 (f32)
             + h_p * tn * 2         # W2 slab (bf16, streamed)
             + tn * 4               # b2 slab (f32)
             + tm * tn * 4)         # out tile (f32)
        + tm * h_p * 2              # h scratch (bf16)
    )
    # Cap below v7x's 64 MiB physical VMEM; floor at the 32 MiB default.
    vmem_limit = max(32 << 20,
                     min(int(1.25 * vmem_needed) + (2 << 20), 60 << 20))

    cost = pl.CostEstimate(
        flops=2 * m_p * (in_p * h_p + h_p * out_p),
        transcendentals=m_p * out_p,
        bytes_accessed=(x_p.size * 2 + w1_p.size * 2
                        + (m_p // tm) * w2_p.size * 2
                        + b1_p.size * 4 + b2_p.size * 4 + m_p * out_p * 4),
    )

    out = pl.pallas_call(
        _mlp_head_kernel,
        out_shape=jax.ShapeDtypeStruct((m_p, out_p), jnp.float32),
        grid_spec=pltpu.PrefetchScalarGridSpec(
            num_scalar_prefetch=0,
            grid=grid,
            in_specs=[
                pl.BlockSpec((tm, in_p), lambda i, j: (i, 0)),   # x tile
                pl.BlockSpec((in_p, h_p), lambda i, j: (0, 0)),  # W1 resident
                pl.BlockSpec((1, h_p), lambda i, j: (0, 0)),     # b1 resident
                pl.BlockSpec((h_p, tn), lambda i, j: (0, j)),    # W2 streamed
                pl.BlockSpec((1, tn), lambda i, j: (0, j)),      # b2 streamed
            ],
            out_specs=pl.BlockSpec((tm, tn), lambda i, j: (i, j)),
            scratch_shapes=[pltpu.VMEM((tm, h_p), jnp.bfloat16)],  # layer-1 h
        ),
        compiler_params=pltpu.CompilerParams(
            dimension_semantics=("parallel", "arbitrary"),
            vmem_limit_bytes=vmem_limit,
        ),
        cost_estimate=cost,
    )(x_p, w1_p, b1_p, w2_p, b2_p)

    return out[:M, :OUT]


def init_generator_params(key, input_size, hidden_size, output_size):
    """Deterministic init of all 5 heads (uniform fan-in, like nn.Linear)."""
    params = {}
    for name in ("delta", "theta", "alpha", "beta", "gamma"):
        key, k1, k2, k3, k4 = jax.random.split(key, 5)
        lim1 = 1.0 / (input_size ** 0.5)
        lim2 = 1.0 / (hidden_size ** 0.5)
        params[name] = dict(
            w1=jax.random.uniform(k1, (input_size, hidden_size),
                                  jnp.float32, -lim1, lim1),
            b1=jax.random.uniform(k2, (1, hidden_size),
                                  jnp.float32, -lim1, lim1),
            w2=jax.random.uniform(k3, (hidden_size, output_size),
                                  jnp.float32, -lim2, lim2),
            b2=jax.random.uniform(k4, (1, output_size),
                                  jnp.float32, -lim2, lim2),
        )
    return params


def generator_forward(params, x, noise_type, *, tm=256, tn=2048):
    """Mirrors Generator.forward: static string selects the head."""
    p = params[noise_type]
    return generator_head_forward(x, p["w1"], p["b1"], p["w2"], p["b2"],
                                  tm=tm, tn=tn)


def _reference_forward(params, x, noise_type):
    """Pure-JAX reference mirroring the kernel's bf16-weight numerics."""
    p = params[noise_type]
    f32 = jnp.float32
    xb = x.astype(jnp.bfloat16).astype(f32)
    w1 = p["w1"].astype(jnp.bfloat16).astype(f32)
    w2 = p["w2"].astype(jnp.bfloat16).astype(f32)
    h = xb @ w1 + p["b1"]
    h = jnp.where(h > 0, h, 0.2 * h)
    hb = h.astype(jnp.bfloat16).astype(f32)
    return jnp.tanh(hb @ w2 + p["b2"])


if __name__ == "__main__":
    # Small shapes consistent with the module's forward:
    # (batch, input_size) -> (batch, output_size). Production sizes are
    # 1000 -> 2048 -> 10000; here we keep the 2048 hidden layer but shrink
    # in/out/batch, choosing deliberately NON-aligned sizes so the padding
    # and the OUT-tiling / scratch-reuse paths are all exercised.
    BATCH, INPUT_SIZE, HIDDEN, OUTPUT_SIZE = 10, 200, 2048, 600

    key = jax.random.PRNGKey(0)
    kx, kp = jax.random.split(key)
    x = jax.random.normal(kx, (BATCH, INPUT_SIZE), jnp.float32)
    params = init_generator_params(kp, INPUT_SIZE, HIDDEN, OUTPUT_SIZE)

    # tn=128 -> 5 OUT tiles (padded 600 -> 640), so the layer-1 scratch is
    # reused across tiles; tm is clamped to the padded batch (16).
    out = generator_forward(params, x, "alpha", tm=256, tn=128)
    out = jax.block_until_ready(out)

    ref = _reference_forward(params, x, "alpha")
    assert out.shape == (BATCH, OUTPUT_SIZE)
    err = float(jnp.max(jnp.abs(out - ref)))
    assert jnp.allclose(out, ref, atol=2e-2, rtol=2e-2), err

    # Also exercise the default (large-tn) path once on the same data.
    out2 = generator_forward(params, x, "beta")
    out2 = jax.block_until_ready(out2)
    ref2 = _reference_forward(params, x, "beta")
    assert jnp.allclose(out2, ref2, atol=2e-2, rtol=2e-2)

    print("KERNEL_OK")
</pallas_src>

<mosaic_0001>
module attributes {stable_mosaic.version = 11 : i64} {
  func.func @_mlp_head_kernel(%arg0: i32, %arg1: i32, %arg2: memref<16x256xbf16, #tpu.memory_space<vmem>>, %arg3: memref<256x2048xbf16, #tpu.memory_space<vmem>>, %arg4: memref<1x2048xf32, #tpu.memory_space<vmem>>, %arg5: memref<2048x128xbf16, #tpu.memory_space<vmem>>, %arg6: memref<1x128xf32, #tpu.memory_space<vmem>>, %arg7: memref<16x128xf32, #tpu.memory_space<vmem>>, %arg8: memref<16x2048xbf16, #tpu.memory_space<vmem>>) attributes {dimension_semantics = [#tpu.dimension_semantics<parallel>, #tpu.dimension_semantics<arbitrary>], iteration_bounds = array<i64: 1, 5>, scalar_prefetch = 0 : i64, scratch_operands = 1 : i64, tpu.core_type = #tpu.core_type<tc>, window_params = [{transform_indices = @transform_0, window_bounds = array<i64: 16, 256>}, {pipeline_mode = #tpu.pipeline_mode<synchronous>, transform_indices = @transform_1, window_bounds = array<i64: 256, 2048>}, {pipeline_mode = #tpu.pipeline_mode<synchronous>, transform_indices = @transform_2, window_bounds = array<i64: 1, 2048>}, {transform_indices = @transform_3, window_bounds = array<i64: 2048, 128>}, {transform_indices = @transform_4, window_bounds = array<i64: 1, 128>}, {transform_indices = @transform_5, window_bounds = array<i64: 16, 128>}]} {
    %c0_i32 = arith.constant 0 : i32
    %0 = arith.cmpi eq, %arg1, %c0_i32 : i32
    %1 = arith.extui %0 : i1 to i32
    %c0_i32_0 = arith.constant 0 : i32
    %2 = arith.cmpi ne, %1, %c0_i32_0 : i32
    scf.if %2 {
      %c0_8 = arith.constant 0 : index
      %c0_9 = arith.constant 0 : index
      %11 = vector.load %arg2[%c0_8, %c0_9] : memref<16x256xbf16, #tpu.memory_space<vmem>>, vector<16x256xbf16>
      %c0_10 = arith.constant 0 : index
      %c0_11 = arith.constant 0 : index
      %12 = vector.load %arg3[%c0_10, %c0_11] : memref<256x2048xbf16, #tpu.memory_space<vmem>>, vector<256x2048xbf16>
      %cst_12 = arith.constant dense<0.000000e+00> : vector<16x2048xf32>
      %13 = tpu.matmul %11, %12, %cst_12 {dimension_numbers = #tpu.dot_dimension_numbers<[1], [0], [0], [1], [0, 0, 1, 1], [], []>} : vector<16x256xbf16>, vector<256x2048xbf16>, vector<16x2048xf32> -> vector<16x2048xf32>
      %c0_13 = arith.constant 0 : index
      %c0_14 = arith.constant 0 : index
      %14 = vector.load %arg4[%c0_13, %c0_14] : memref<1x2048xf32, #tpu.memory_space<vmem>>, vector<1x2048xf32>
      %15 = vector.broadcast %14 : vector<1x2048xf32> to vector<16x2048xf32>
      %16 = arith.addf %13, %15 : vector<16x2048xf32>
      %cst_15 = arith.constant 0.000000e+00 : f32
      %17 = vector.broadcast %cst_15 : f32 to vector<16x2048xf32>
      %18 = arith.cmpf ogt, %16, %17 : vector<16x2048xf32>
      %cst_16 = arith.constant 2.000000e-01 : f32
      %19 = vector.broadcast %cst_16 : f32 to vector<16x2048xf32>
      %20 = arith.mulf %19, %16 : vector<16x2048xf32>
      %21 = arith.select %18, %16, %20 : vector<16x2048xi1>, vector<16x2048xf32>
      %22 = arith.truncf %21 : vector<16x2048xf32> to vector<16x2048xbf16>
      %c0_17 = arith.constant 0 : index
      %c0_18 = arith.constant 0 : index
      %23 = vector.load %arg8[%c0_17, %c0_18] : memref<16x2048xbf16, #tpu.memory_space<vmem>>, vector<16x2048xbf16>
      tpu.vector_store %arg8[%c0_17, %c0_18], %22 {strides = array<i32>} : memref<16x2048xbf16, #tpu.memory_space<vmem>>, vector<16x2048xbf16>,
    } else {
    }
    %c0 = arith.constant 0 : index
    %c0_1 = arith.constant 0 : index
    %3 = vector.load %arg8[%c0, %c0_1] : memref<16x2048xbf16, #tpu.memory_space<vmem>>, vector<16x2048xbf16>
    %c0_2 = arith.constant 0 : index
    %c0_3 = arith.constant 0 : index
    %4 = vector.load %arg5[%c0_2, %c0_3] : memref<2048x128xbf16, #tpu.memory_space<vmem>>, vector<2048x128xbf16>
    %cst = arith.constant dense<0.000000e+00> : vector<16x128xf32>
    %5 = tpu.matmul %3, %4, %cst {dimension_numbers = #tpu.dot_dimension_numbers<[1], [0], [0], [1], [0, 0, 1, 1], [], []>} : vector<16x2048xbf16>, vector<2048x128xbf16>, vector<16x128xf32> -> vector<16x128xf32>
    %c0_4 = arith.constant 0 : index
    %c0_5 = arith.constant 0 : index
    %6 = vector.load %arg6[%c0_4, %c0_5] : memref<1x128xf32, #tpu.memory_space<vmem>>, vector<1x128xf32>
    %7 = vector.broadcast %6 : vector<1x128xf32> to vector<16x128xf32>
    %8 = arith.addf %5, %7 : vector<16x128xf32>
    %9 = math.tanh %8 : vector<16x128xf32>
    %c0_6 = arith.constant 0 : index
    %c0_7 = arith.constant 0 : index
    %10 = vector.load %arg7[%c0_6, %c0_7] : memref<16x128xf32, #tpu.memory_space<vmem>>, vector<16x128xf32>
    tpu.vector_store %arg7[%c0_6, %c0_7], %9 {strides = array<i32>} : memref<16x128xf32, #tpu.memory_space<vmem>>, vector<16x128xf32>,
    return
  }
  func.func @transform_0(%arg0: i32, %arg1: i32) -> (i32, i32) {
    %c0_i32 = arith.constant 0 : i32
    %c0_i32_0 = arith.constant 0 : i32
    return %arg0, %c0_i32 : i32, i32
  }
  func.func @transform_1(%arg0: i32, %arg1: i32) -> (i32, i32) {
    %c0_i32 = arith.constant 0 : i32
    %c0_i32_0 = arith.constant 0 : i32
    %c0_i32_1 = arith.constant 0 : i32
    return %c0_i32, %c0_i32_0 : i32, i32
  }
  func.func @transform_2(%arg0: i32, %arg1: i32) -> (i32, i32) {
    %c0_i32 = arith.constant 0 : i32
    %c0_i32_0 = arith.constant 0 : i32
    %c0_i32_1 = arith.constant 0 : i32
    return %c0_i32, %c0_i32_0 : i32, i32
  }
  func.func @transform_3(%arg0: i32, %arg1: i32) -> (i32, i32) {
    %c0_i32 = arith.constant 0 : i32
    %c0_i32_0 = arith.constant 0 : i32
    return %c0_i32, %arg1 : i32, i32
  }
  func.func @transform_4(%arg0: i32, %arg1: i32) -> (i32, i32) {
    %c0_i32 = arith.constant 0 : i32
    %c0_i32_0 = arith.constant 0 : i32
    return %c0_i32, %arg1 : i32, i32
  }
  func.func @transform_5(%arg0: i32, %arg1: i32) -> (i32, i32) {
    %c0_i32 = arith.constant 0 : i32
    return %arg0, %arg1 : i32, i32
  }
}

</mosaic_0001>

<llo_original>
// kernel: generator_head_forward.1
$region0: #{generator_head_forward.1}
  #allocation0 [shape = 'u32[]', space=smem, size = 0x4, offset = 0x4, fixed_abs, tag = 'smem constant byte address 0x4 - core index']
  #allocation1 [shape = 'u32[144,128]{1,0:T(1,128)}', space=vmem, size = 0x12000, scoped, tag = 'internal scratch']
  #allocation2 [shape = 'bf16[16,2048]{1,0:T(16,128)(2,1)}', space=vmem, size = 0x10000, scoped, tag = 'scratch operand']
  %s0 = inlined_call_operand.vmem [shape: bf16[16,256], index: 0, kind: input, shape index: {}]
  %s1 = inlined_call_operand.vmem [shape: bf16[256,2048], index: 1, kind: input, shape index: {}]
  %s2 = inlined_call_operand.vmem [shape: f32[1,2048], index: 2, kind: input, shape index: {}]
  %s3 = inlined_call_operand.vmem [shape: bf16[2048,640], index: 3, kind: input, shape index: {}]
  %s4 = inlined_call_operand.vmem [shape: f32[1,640], index: 4, kind: input, shape index: {}]
  %s5 = inlined_call_operand.hbm [shape: f32[16,640], index: 5, kind: output, shape index: {}]
  %s6 = sld [smem:[#allocation0]]
  $region98: #{generator_head_forward.1} parent=0
    _
  %s8 = ssub.s32 1, %s6
  %s9 = scalar_select 0, %s8, %s6
  $region1: #{generator_head_forward.1} parent=0
    #allocation3 [shape = 'u8[1048576]{0}', space=vmem, size = 0x100000, scoped, tag = 'input window, operand 3']
    #allocation4 [shape = 'u8[16384]{0}', space=vmem, size = 0x4000, scoped, tag = 'output window, operand 0']
    #allocation5 [shape = 's32[2]{0}', space=sflag, size = 0x8, scoped, tag = 'scoped memory for generator_head_forward.1']
    %10 = vsyncpa [#allocation5], 0
    %s11 = scalar_lea.sflag [#allocation5], 1
    %12 = vsyncpa %s11, 0
    loop: start=0, step=1, limit=7
    $region2: #{generator_head_forward.1} parent=1 // loop_pre_header
      _
    $region3: #{generator_head_forward.1} parent=1 // loop_header
      %s14 = sphi 0, %s18
      %p15 = scmp.ge.s32.totalorder %s14, 7
      %s21 = sphi 0, %s33
      %s22 = sphi 0, %s29
      %s23 = sphi 0, %s21
      %s24 = sphi 0, %s22
      %s25 = sphi 0, %s23
      %s26 = sphi 0, %s24
      %s36 = sphi 0, %s38
      %s39 = sphi 0, %s36
      %s40 = sphi 0, %s39
      %s56 = sphi 0, %s40
      %s60 = sphi 0, %s60
      %s62 = sphi 0, %s60
      %s63 = sphi 0, %s62
      %s77 = sphi 0, %s63
      %s81 = sphi 0, %s81
      %s83 = sphi 0, %s81
      %s84 = sphi 0, %s83
      %s98 = sphi 0, %s84
      %s104 = sphi 0, %s106
      %s107 = sphi 0, %s104
      %s108 = sphi 0, %s107
      %s124 = sphi 0, %s108
      %s130 = sphi 0, %s132
      %s133 = sphi 0, %s130
      %s134 = sphi 0, %s133
      %s150 = sphi 0, %s134
      %s158 = sphi 0, %s160
      %s161 = sphi 0, %s158
      %s162 = sphi 0, %s161
      %s178 = sphi 0, %s162
    $region4: #{generator_head_forward.1} parent=1 // loop_header_branch
      %17 = sbr.rel (%p15) target = $region8
    $region5: #{generator_head_forward.1} parent=1 // loop_body
      %s19 = ssub.s32 %s14, 1
      %s20 = ssub.s32 %s14, 2
      %s27 = sadd.s32 1, %s22
      %p28 = scmp.ge.s32.totalorder %s27, 5
      %s29 = scalar_select %p28, 0, %s27
      %s30 = sadd.s32 1, %s21
      %s31 = scalar_select %p28, %s30, %s21
      %p32 = scmp.ge.s32.totalorder %s31, 1
      %s33 = scalar_select %p32, 0, %s31
      %s34 = ssub.s32 %s21, %s33
      %p35 = scmp.eq.s32.totalorder %s34, 0
      %s37 = sadd.s32 %s36, 1
      %s38 = scalar_select %p35, %s36, %s37
      %p41 = pneg %p35
      %p42 = scmp.eq.s32.totalorder %s14, 4
      %p43 = por %p41, %p42
      %p44 = scmp.ne.s32.totalorder %s36, %s39
      %p45 = scmp.eq.s32.totalorder %s14, 0
      %p46 = por %p44, %p45
      %p47 = scmp.ne.s32.totalorder %s36, %s39
      %p48 = scmp.eq.s32.totalorder %s19, 4
      %p49 = por %p47, %p48
      %p50 = scmp.ne.s32.totalorder %s39, %s40
      %p51 = scmp.eq.s32.totalorder %s19, 0
      %p52 = por %p50, %p51
      %p53 = scmp.ne.s32.totalorder %s39, %s40
      %p54 = scmp.eq.s32.totalorder %s20, 4
      %p55 = por %p53, %p54
      %p57 = scmp.ne.s32.totalorder %s40, %s56
      %p58 = scmp.eq.s32.totalorder %s20, 0
      %p59 = por %p57, %p58
      %s61 = sadd.s32 %s60, 1
      %p64 = scmp.eq.s32.totalorder %s14, 4
      %p65 = scmp.ne.s32.totalorder %s60, %s62
      %p66 = scmp.eq.s32.totalorder %s14, 0
      %p67 = por %p65, %p66
      %p68 = scmp.ne.s32.totalorder %s60, %s62
      %p69 = scmp.eq.s32.totalorder %s19, 4
      %p70 = por %p68, %p69
      %p71 = scmp.ne.s32.totalorder %s62, %s63
      %p72 = scmp.eq.s32.totalorder %s19, 0
      %p73 = por %p71, %p72
      %p74 = scmp.ne.s32.totalorder %s62, %s63
      %p75 = scmp.eq.s32.totalorder %s20, 4
      %p76 = por %p74, %p75
      %p78 = scmp.ne.s32.totalorder %s63, %s77
      %p79 = scmp.eq.s32.totalorder %s20, 0
      %p80 = por %p78, %p79
      %s82 = sadd.s32 %s81, 1
      %p85 = scmp.eq.s32.totalorder %s14, 4
      %p86 = scmp.ne.s32.totalorder %s81, %s83
      %p87 = scmp.eq.s32.totalorder %s14, 0
      %p88 = por %p86, %p87
      %p89 = scmp.ne.s32.totalorder %s81, %s83
      %p90 = scmp.eq.s32.totalorder %s19, 4
      %p91 = por %p89, %p90
      %p92 = scmp.ne.s32.totalorder %s83, %s84
      %p93 = scmp.eq.s32.totalorder %s19, 0
      %p94 = por %p92, %p93
      %p95 = scmp.ne.s32.totalorder %s83, %s84
      %p96 = scmp.eq.s32.totalorder %s20, 4
      %p97 = por %p95, %p96
      %p99 = scmp.ne.s32.totalorder %s84, %s98
      %p100 = scmp.eq.s32.totalorder %s20, 0
      %p101 = por %p99, %p100
      %s102 = ssub.s32 %s22, %s29
      %p103 = scmp.eq.s32.totalorder %s102, 0
      %s105 = sadd.s32 %s104, 1
      %s106 = scalar_select %p103, %s104, %s105
      %p109 = pneg %p103
      %p110 = scmp.eq.s32.totalorder %s14, 4
      %p111 = por %p109, %p110
      %p112 = scmp.ne.s32.totalorder %s104, %s107
      %p113 = scmp.eq.s32.totalorder %s14, 0
      %p114 = por %p112, %p113
      %p115 = scmp.ne.s32.totalorder %s104, %s107
      %p116 = scmp.eq.s32.totalorder %s19, 4
      %p117 = por %p115, %p116
      %p118 = scmp.ne.s32.totalorder %s107, %s108
      %p119 = scmp.eq.s32.totalorder %s19, 0
      %p120 = por %p118, %p119
      %p121 = scmp.ne.s32.totalorder %s107, %s108
      %p122 = scmp.eq.s32.totalorder %s20, 4
      %p123 = por %p121, %p122
      %p125 = scmp.ne.s32.totalorder %s108, %s124
      %p126 = scmp.eq.s32.totalorder %s20, 0
      %p127 = por %p125, %p126
      %s128 = ssub.s32 %s22, %s29
      %p129 = scmp.eq.s32.totalorder %s128, 0
      %s131 = sadd.s32 %s130, 1
      %s132 = scalar_select %p129, %s130, %s131
      %p135 = pneg %p129
      %p136 = scmp.eq.s32.totalorder %s14, 4
      %p137 = por %p135, %p136
      %p138 = scmp.ne.s32.totalorder %s130, %s133
      %p139 = scmp.eq.s32.totalorder %s14, 0
      %p140 = por %p138, %p139
      %p141 = scmp.ne.s32.totalorder %s130, %s133
      %p142 = scmp.eq.s32.totalorder %s19, 4
      %p143 = por %p141, %p142
      %p144 = scmp.ne.s32.totalorder %s133, %s134
      %p145 = scmp.eq.s32.totalorder %s19, 0
      %p146 = por %p144, %p145
      %p147 = scmp.ne.s32.totalorder %s133, %s134
      %p148 = scmp.eq.s32.totalorder %s20, 4
      %p149 = por %p147, %p148
      %p151 = scmp.ne.s32.totalorder %s134, %s150
      %p152 = scmp.eq.s32.totalorder %s20, 0
      %p153 = por %p151, %p152
      %s154 = ssub.s32 %s21, %s33
      %s155 = ssub.s32 %s22, %s29
      %s156 = sor.u32 %s154, %s155
      %p157 = scmp.eq.s32.totalorder %s156, 0
      %s159 = sadd.s32 %s158, 1
      %s160 = scalar_select %p157, %s158, %s159
      %p163 = pneg %p157
      %p164 = scmp.eq.s32.totalorder %s14, 4
      %p165 = por %p163, %p164
      %p166 = scmp.ne.s32.totalorder %s158, %s161
      %p167 = scmp.eq.s32.totalorder %s14, 0
      %p168 = por %p166, %p167
      %p169 = scmp.ne.s32.totalorder %s158, %s161
      %p170 = scmp.eq.s32.totalorder %s19, 4
      %p171 = por %p169, %p170
      %p172 = scmp.ne.s32.totalorder %s161, %s162
      %p173 = scmp.eq.s32.totalorder %s19, 0
      %p174 = por %p172, %p173
      %p175 = scmp.ne.s32.totalorder %s161, %s162
      %p176 = scmp.eq.s32.totalorder %s20, 4
      %p177 = por %p175, %p176
      %p179 = scmp.ne.s32.totalorder %s162, %s178
      %p180 = scmp.eq.s32.totalorder %s20, 0
      %p181 = por %p179, %p180
      %p182 = scmp.le.s32.totalorder 1, %s14
      %p183 = scmp.lt.s32.totalorder %s14, 6
      %p184 = pnand %p182, %p183
      %p185 = pneg %p184
      // Predicated region
      $region9: #{generator_head_forward.1} parent=5 // pred_check
        _
      $region10: #{generator_head_forward.1} parent=5 // pred_check_branch
        %187 = sbr.rel (%p184) target = $region12
      $region11: #{generator_head_forward.1} parent=5 // pred_region
        %s188 = ssub.s32 %s14, 1
        // Predicated region
        $region13: #{generator_head_forward.1} parent=11 // pred_check
          %p189 = pneg %p52
        $region14: #{generator_head_forward.1} parent=11 // pred_check_branch
          %191 = sbr.rel (%p189) target = $region16
        $region15: #{generator_head_forward.1} parent=11 // pred_region
          %s192 = smul.u32 2, %s23
          %p193 = scmp.lt.s32.totalorder %s192, 1
          %s194 = scalar_select %p193, %s192, 1
          %s195 = smul.addr %s194, 2
          %s196 = smul.addr %s195, 4
          %s197 = scalar_lea.vmem %s0, %s196
          %s198 = smul.u32 2, %s23
        $region16: #{generator_head_forward.1} parent=11 // pred_fallthru
          _
        // Predicated region
        $region17: #{generator_head_forward.1} parent=11 // pred_check
          %p199 = pneg %p73
        $region18: #{generator_head_forward.1} parent=11 // pred_check_branch
          %201 = sbr.rel (%p199) target = $region20
        $region19: #{generator_head_forward.1} parent=11 // pred_region
          _
        $region20: #{generator_head_forward.1} parent=11 // pred_fallthru
          _
        // Predicated region
        $region21: #{generator_head_forward.1} parent=11 // pred_check
          %p202 = pneg %p94
        $region22: #{generator_head_forward.1} parent=11 // pred_check_branch
          %204 = sbr.rel (%p202) target = $region24
        $region23: #{generator_head_forward.1} parent=11 // pred_region
          _
        $region24: #{generator_head_forward.1} parent=11 // pred_fallthru
          _
      $region12: #{generator_head_forward.1} parent=5 // pred_fallthru
        _
      %p205 = scmp.lt.s32.totalorder %s14, 5
      // Predicated region
      $region25: #{generator_head_forward.1} parent=5 // pred_check
        %p206 = pneg %p205
      $region26: #{generator_head_forward.1} parent=5 // pred_check_branch
        %208 = sbr.rel (%p206) target = $region28
      $region27: #{generator_head_forward.1} parent=5 // pred_region
        // Predicated region
        $region29: #{generator_head_forward.1} parent=27 // pred_check
          %p209 = pneg %p114
        $region30: #{generator_head_forward.1} parent=27 // pred_check_branch
          %211 = sbr.rel (%p209) target = $region32
        $region31: #{generator_head_forward.1} parent=27 // pred_region
          %s212 = sand.u32 %s104, 1
          %s213 = sand.u32 %s104, 1
          %s214 = smul.addr %s213, 1024
          %s215 = scalar_lea.vmem [#allocation3], %s214
          %s216 = smul.addr %s22, 4
          %s217 = scalar_lea.vmem %s3, %s216
          // Predicated region
          $region33: #{generator_head_forward.1} parent=31 // pred_check
            _
          $region34: #{generator_head_forward.1} parent=31 // pred_check_branch
            %219 = sbr.rel (0) target = $region36
          $region35: #{generator_head_forward.1} parent=31 // pred_region
            // Predicated region
            $region37: #{generator_head_forward.1} parent=35 // pred_check
              _
            $region38: #{generator_head_forward.1} parent=35 // pred_check_branch
              %221 = sbr.rel target = $region40
            $region39: #{generator_head_forward.1} parent=35 // pred_region
              // Predicated region
              $region52: #{generator_head_forward.1} parent=39 // pred_check
                _
              $region53: #{generator_head_forward.1} parent=39 // pred_check_branch
                %746 = sbr.rel (0) target = $region55
              $region54: #{generator_head_forward.1} parent=39 // pred_region
                loop: start=0, step=1, limit=1
                $region56: #{generator_head_forward.1} parent=54 // loop_pre_header
                  _
                $region57: #{generator_head_forward.1} parent=54 // loop_header
                  %s748 = sphi 0, %s752
                  %p749 = scmp.ge.s32.totalorder %s748, 1
                  %s753 = sphi %s217, %s217
                  %s754 = sphi %s215, %s215
                $region58: #{generator_head_forward.1} parent=54 // loop_header_branch
                  %751 = sbr.rel (%p749) target = $region62
                $region59: #{generator_head_forward.1} parent=54 // loop_body
                  _
                $region60: #{generator_head_forward.1} parent=54 // loop_footer
                  %s752 = sadd.s32 1, %s748
                $region61: #{generator_head_forward.1} parent=54 // loop_footer_branch
                  %747 = sbr.rel target = $region57
                $region62: #{generator_head_forward.1} parent=54 // loop_exit
                  _
                loop: start=0, step=1, limit=1
                $region63: #{generator_head_forward.1} parent=54 // loop_pre_header
                  _
                $region64: #{generator_head_forward.1} parent=54 // loop_header
                  %s757 = sphi 0, %s761
                  %p758 = scmp.ge.s32.totalorder %s757, 1
                  %s762 = sphi %s217, %s217
                  %s763 = sphi %s215, %s215
                $region65: #{generator_head_forward.1} parent=54 // loop_header_branch
                  %760 = sbr.rel (%p758) target = $region69
                $region66: #{generator_head_forward.1} parent=54 // loop_body
                  %v764 = vld [vmem:[%s762] sm:$0xf]
                  %765 = vst [vmem:[%s763] sm:$0xf] %v764
                  %v766 = vld [vmem:[%s762 + $0x14] sm:$0xf]
                  %767 = vst [vmem:[%s763 + $0x4] sm:$0xf] %v766
                  %v768 = vld [vmem:[%s762 + $0x28] sm:$0xf]
                  %769 = vst [vmem:[%s763 + $0x8] sm:$0xf] %v768
                  %v770 = vld [vmem:[%s762 + $0x3c] sm:$0xf]
                  %771 = vst [vmem:[%s763 + $0xc] sm:$0xf] %v770
                  %v772 = vld [vmem:[%s762 + $0x50] sm:$0xf]
                  %773 = vst [vmem:[%s763 + $0x10] sm:$0xf] %v772
                  %v774 = vld [vmem:[%s762 + $0x64] sm:$0xf]
                  %775 = vst [vmem:[%s763 + $0x14] sm:$0xf] %v774
                  %v776 = vld [vmem:[%s762 + $0x78] sm:$0xf]
                  %777 = vst [vmem:[%s763 + $0x18] sm:$0xf] %v776
                  %v778 = vld [vmem:[%s762 + $0x8c] sm:$0xf]
                  %779 = vst [vmem:[%s763 + $0x1c] sm:$0xf] %v778
                  %v780 = vld [vmem:[%s762 + $0xa0] sm:$0xf]
                  %781 = vst [vmem:[%s763 + $0x20] sm:$0xf] %v780
                  %v782 = vld [vmem:[%s762 + $0xb4] sm:$0xf]
                  %783 = vst [vmem:[%s763 + $0x24] sm:$0xf] %v782
                  %v784 = vld [vmem:[%s762 + $0xc8] sm:$0xf]
                  %785 = vst [vmem:[%s763 + $0x28] sm:$0xf] %v784
                  %v786 = vld [vmem:[%s762 + $0xdc] sm:$0xf]
                  %787 = vst [vmem:[%s763 + $0x2c] sm:$0xf] %v786
                  %v788 = vld [vmem:[%s762 + $0xf0] sm:$0xf]
                  %789 = vst [vmem:[%s763 + $0x30] sm:$0xf] %v788
                  %v790 = vld [vmem:[%s762 + $0x104] sm:$0xf]
                  %791 = vst [vmem:[%s763 + $0x34] sm:$0xf] %v790
                  %v792 = vld [vmem:[%s762 + $0x118] sm:$0xf]
                  %793 = vst [vmem:[%s763 + $0x38] sm:$0xf] %v792
                  %v794 = vld [vmem:[%s762 + $0x12c] sm:$0xf]
                  %795 = vst [vmem:[%s763 + $0x3c] sm:$0xf] %v794
                  %v796 = vld [vmem:[%s762 + $0x140] sm:$0xf]
                  %797 = vst [vmem:[%s763 + $0x40] sm:$0xf] %v796
                  %v798 = vld [vmem:[%s762 + $0x154] sm:$0xf]
                  %799 = vst [vmem:[%s763 + $0x44] sm:$0xf] %v798
                  %v800 = vld [vmem:[%s762 + $0x168] sm:$0xf]
                  %801 = vst [vmem:[%s763 + $0x48] sm:$0xf] %v800
                  %v802 = vld [vmem:[%s762 + $0x17c] sm:$0xf]
                  %803 = vst [vmem:[%s763 + $0x4c] sm:$0xf] %v802
                  %v804 = vld [vmem:[%s762 + $0x190] sm:$0xf]
                  %805 = vst [vmem:[%s763 + $0x50] sm:$0xf] %v804
                  %v806 = vld [vmem:[%s762 + $0x1a4] sm:$0xf]
                  %807 = vst [vmem:[%s763 + $0x54] sm:$0xf] %v806
                  %v808 = vld [vmem:[%s762 + $0x1b8] sm:$0xf]
                  %809 = vst [vmem:[%s763 + $0x58] sm:$0xf] %v808
                  %v810 = vld [vmem:[%s762 + $0x1cc] sm:$0xf]
                  %811 = vst [vmem:[%s763 + $0x5c] sm:$0xf] %v810
                  %v812 = vld [vmem:[%s762 + $0x1e0] sm:$0xf]
                  %813 = vst [vmem:[%s763 + $0x60] sm:$0xf] %v812
                  %v814 = vld [vmem:[%s762 + $0x1f4] sm:$0xf]
                  %815 = vst [vmem:[%s763 + $0x64] sm:$0xf] %v814
                  %v816 = vld [vmem:[%s762 + $0x208] sm:$0xf]
                  %817 = vst [vmem:[%s763 + $0x68] sm:$0xf] %v816
                  %v818 = vld [vmem:[%s762 + $0x21c] sm:$0xf]
                  %819 = vst [vmem:[%s763 + $0x6c] sm:$0xf] %v818
                  %v820 = vld [vmem:[%s762 + $0x230] sm:$0xf]
                  %821 = vst [vmem:[%s763 + $0x70] sm:$0xf] %v820
                  %v822 = vld [vmem:[%s762 + $0x244] sm:$0xf]
                  %823 = vst [vmem:[%s763 + $0x74] sm:$0xf] %v822
                  %v824 = vld [vmem:[%s762 + $0x258] sm:$0xf]
                  %825 = vst [vmem:[%s763 + $0x78] sm:$0xf] %v824
                  %v826 = vld [vmem:[%s762 + $0x26c] sm:$0xf]
                  %827 = vst [vmem:[%s763 + $0x7c] sm:$0xf] %v826
                  %v828 = vld [vmem:[%s762 + $0x280] sm:$0xf]
                  %829 = vst [vmem:[%s763 + $0x80] sm:$0xf] %v828
                  %v830 = vld [vmem:[%s762 + $0x294] sm:$0xf]
                  %831 = vst [vmem:[%s763 + $0x84] sm:$0xf] %v830
                  %v832 = vld [vmem:[%s762 + $0x2a8] sm:$0xf]
                  %833 = vst [vmem:[%s763 + $0x88] sm:$0xf] %v832
                  %v834 = vld [vmem:[%s762 + $0x2bc] sm:$0xf]
                  %835 = vst [vmem:[%s763 + $0x8c] sm:$0xf] %v834
                  %v836 = vld [vmem:[%s762 + $0x2d0] sm:$0xf]
                  %837 = vst [vmem:[%s763 + $0x90] sm:$0xf] %v836
                  %v838 = vld [vmem:[%s762 + $0x2e4] sm:$0xf]
                  %839 = vst [vmem:[%s763 + $0x94] sm:$0xf] %v838
                  %v840 = vld [vmem:[%s762 + $0x2f8] sm:$0xf]
                  %841 = vst [vmem:[%s763 + $0x98] sm:$0xf] %v840
                  %v842 = vld [vmem:[%s762 + $0x30c] sm:$0xf]
                  %843 = vst [vmem:[%s763 + $0x9c] sm:$0xf] %v842
                  %v844 = vld [vmem:[%s762 + $0x320] sm:$0xf]
                  %845 = vst [vmem:[%s763 + $0xa0] sm:$0xf] %v844
                  %v846 = vld [vmem:[%s762 + $0x334] sm:$0xf]
                  %847 = vst [vmem:[%s763 + $0xa4] sm:$0xf] %v846
                  %v848 = vld [vmem:[%s762 + $0x348] sm:$0xf]
                  %849 = vst [vmem:[%s763 + $0xa8] sm:$0xf] %v848
                  %v850 = vld [vmem:[%s762 + $0x35c] sm:$0xf]
                  %851 = vst [vmem:[%s763 + $0xac] sm:$0xf] %v850
                  %v852 = vld [vmem:[%s762 + $0x370] sm:$0xf]
                  %853 = vst [vmem:[%s763 + $0xb0] sm:$0xf] %v852
                  %v854 = vld [vmem:[%s762 + $0x384] sm:$0xf]
                  %855 = vst [vmem:[%s763 + $0xb4] sm:$0xf] %v854
                  %v856 = vld [vmem:[%s762 + $0x398] sm:$0xf]
                  %857 = vst [vmem:[%s763 + $0xb8] sm:$0xf] %v856
                  %v858 = vld [vmem:[%s762 + $0x3ac] sm:$0xf]
                  %859 = vst [vmem:[%s763 + $0xbc] sm:$0xf] %v858
                  %v860 = vld [vmem:[%s762 + $0x3c0] sm:$0xf]
                  %861 = vst [vmem:[%s763 + $0xc0] sm:$0xf] %v860
                  %v862 = vld [vmem:[%s762 + $0x3d4] sm:$0xf]
                  %863 = vst [vmem:[%s763 + $0xc4] sm:$0xf] %v862
                  %v864 = vld [vmem:[%s762 + $0x3e8] sm:$0xf]
                  %865 = vst [vmem:[%s763 + $0xc8] sm:$0xf] %v864
                  %v866 = vld [vmem:[%s762 + $0x3fc] sm:$0xf]
                  %867 = vst [vmem:[%s763 + $0xcc] sm:$0xf] %v866
                  %v868 = vld [vmem:[%s762 + $0x410] sm:$0xf]
                  %869 = vst [vmem:[%s763 + $0xd0] sm:$0xf] %v868
                  %v870 = vld [vmem:[%s762 + $0x424] sm:$0xf]
                  %871 = vst [vmem:[%s763 + $0xd4] sm:$0xf] %v870
                  %v872 = vld [vmem:[%s762 + $0x438] sm:$0xf]
                  %873 = vst [vmem:[%s763 + $0xd8] sm:$0xf] %v872
                  %v874 = vld [vmem:[%s762 + $0x44c] sm:$0xf]
                  %875 = vst [vmem:[%s763 + $0xdc] sm:$0xf] %v874
                  %v876 = vld [vmem:[%s762 + $0x460] sm:$0xf]
                  %877 = vst [vmem:[%s763 + $0xe0] sm:$0xf] %v876
                  %v878 = vld [vmem:[%s762 + $0x474] sm:$0xf]
                  %879 = vst [vmem:[%s763 + $0xe4] sm:$0xf] %v878
                  %v880 = vld [vmem:[%s762 + $0x488] sm:$0xf]
                  %881 = vst [vmem:[%s763 + $0xe8] sm:$0xf] %v880
                  %v882 = vld [vmem:[%s762 + $0x49c] sm:$0xf]
                  %883 = vst [vmem:[%s763 + $0xec] sm:$0xf] %v882
                  %v884 = vld [vmem:[%s762 + $0x4b0] sm:$0xf]
                  %885 = vst [vmem:[%s763 + $0xf0] sm:$0xf] %v884
                  %v886 = vld [vmem:[%s762 + $0x4c4] sm:$0xf]
                  %887 = vst [vmem:[%s763 + $0xf4] sm:$0xf] %v886
                  %v888 = vld [vmem:[%s762 + $0x4d8] sm:$0xf]
                  %889 = vst [vmem:[%s763 + $0xf8] sm:$0xf] %v888
                  %v890 = vld [vmem:[%s762 + $0x4ec] sm:$0xf]
                  %891 = vst [vmem:[%s763 + $0xfc] sm:$0xf] %v890
                  %v892 = vld [vmem:[%s762 + $0x500] sm:$0xf]
                  %893 = vst [vmem:[%s763 + $0x100] sm:$0xf] %v892
                  %v894 = vld [vmem:[%s762 + $0x514] sm:$0xf]
                  %895 = vst [vmem:[%s763 + $0x104] sm:$0xf] %v894
                  %v896 = vld [vmem:[%s762 + $0x528] sm:$0xf]
                  %897 = vst [vmem:[%s763 + $0x108] sm:$0xf] %v896
                  %v898 = vld [vmem:[%s762 + $0x53c] sm:$0xf]
                  %899 = vst [vmem:[%s763 + $0x10c] sm:$0xf] %v898
                  %v900 = vld [vmem:[%s762 + $0x550] sm:$0xf]
                  %901 = vst [vmem:[%s763 + $0x110] sm:$0xf] %v900
                  %v902 = vld [vmem:[%s762 + $0x564] sm:$0xf]
                  %903 = vst [vmem:[%s763 + $0x114] sm:$0xf] %v902
                  %v904 = vld [vmem:[%s762 + $0x578] sm:$0xf]
                  %905 = vst [vmem:[%s763 + $0x118] sm:$0xf] %v904
                  %v906 = vld [vmem:[%s762 + $0x58c] sm:$0xf]
                  %907 = vst [vmem:[%s763 + $0x11c] sm:$0xf] %v906
                  %v908 = vld [vmem:[%s762 + $0x5a0] sm:$0xf]
                  %909 = vst [vmem:[%s763 + $0x120] sm:$0xf] %v908
                  %v910 = vld [vmem:[%s762 + $0x5b4] sm:$0xf]
                  %911 = vst [vmem:[%s763 + $0x124] sm:$0xf] %v910
                  %v912 = vld [vmem:[%s762 + $0x5c8] sm:$0xf]
                  %913 = vst [vmem:[%s763 + $0x128] sm:$0xf] %v912
                  %v914 = vld [vmem:[%s762 + $0x5dc] sm:$0xf]
                  %915 = vst [vmem:[%s763 + $0x12c] sm:$0xf] %v914
                  %v916 = vld [vmem:[%s762 + $0x5f0] sm:$0xf]
                  %917 = vst [vmem:[%s763 + $0x130] sm:$0xf] %v916
                  %v918 = vld [vmem:[%s762 + $0x604] sm:$0xf]
                  %919 = vst [vmem:[%s763 + $0x134] sm:$0xf] %v918
                  %v920 = vld [vmem:[%s762 + $0x618] sm:$0xf]
                  %921 = vst [vmem:[%s763 + $0x138] sm:$0xf] %v920
                  %v922 = vld [vmem:[%s762 + $0x62c] sm:$0xf]
                  %923 = vst [vmem:[%s763 + $0x13c] sm:$0xf] %v922
                  %v924 = vld [vmem:[%s762 + $0x640] sm:$0xf]
                  %925 = vst [vmem:[%s763 + $0x140] sm:$0xf] %v924
                  %v926 = vld [vmem:[%s762 + $0x654] sm:$0xf]
                  %927 = vst [vmem:[%s763 + $0x144] sm:$0xf] %v926
                  %v928 = vld [vmem:[%s762 + $0x668] sm:$0xf]
                  %929 = vst [vmem:[%s763 + $0x148] sm:$0xf] %v928
                  %v930 = vld [vmem:[%s762 + $0x67c] sm:$0xf]
                  %931 = vst [vmem:[%s763 + $0x14c] sm:$0xf] %v930
                  %v932 = vld [vmem:[%s762 + $0x690] sm:$0xf]
                  %933 = vst [vmem:[%s763 + $0x150] sm:$0xf] %v932
                  %v934 = vld [vmem:[%s762 + $0x6a4] sm:$0xf]
                  %935 = vst [vmem:[%s763 + $0x154] sm:$0xf] %v934
                  %v936 = vld [vmem:[%s762 + $0x6b8] sm:$0xf]
                  %937 = vst [vmem:[%s763 + $0x158] sm:$0xf] %v936
                  %v938 = vld [vmem:[%s762 + $0x6cc] sm:$0xf]
                  %939 = vst [vmem:[%s763 + $0x15c] sm:$0xf] %v938
                  %v940 = vld [vmem:[%s762 + $0x6e0] sm:$0xf]
                  %941 = vst [vmem:[%s763 + $0x160] sm:$0xf] %v940
                  %v942 = vld [vmem:[%s762 + $0x6f4] sm:$0xf]
                  %943 = vst [vmem:[%s763 + $0x164] sm:$0xf] %v942
                  %v944 = vld [vmem:[%s762 + $0x708] sm:$0xf]
                  %945 = vst [vmem:[%s763 + $0x168] sm:$0xf] %v944
                  %v946 = vld [vmem:[%s762 + $0x71c] sm:$0xf]
                  %947 = vst [vmem:[%s763 + $0x16c] sm:$0xf] %v946
                  %v948 = vld [vmem:[%s762 + $0x730] sm:$0xf]
                  %949 = vst [vmem:[%s763 + $0x170] sm:$0xf] %v948
                  %v950 = vld [vmem:[%s762 + $0x744] sm:$0xf]
                  %951 = vst [vmem:[%s763 + $0x174] sm:$0xf] %v950
                  %v952 = vld [vmem:[%s762 + $0x758] sm:$0xf]
                  %953 = vst [vmem:[%s763 + $0x178] sm:$0xf] %v952
                  %v954 = vld [vmem:[%s762 + $0x76c] sm:$0xf]
                  %955 = vst [vmem:[%s763 + $0x17c] sm:$0xf] %v954
                  %v956 = vld [vmem:[%s762 + $0x780] sm:$0xf]
                  %957 = vst [vmem:[%s763 + $0x180] sm:$0xf] %v956
                  %v958 = vld [vmem:[%s762 + $0x794] sm:$0xf]
                  %959 = vst [vmem:[%s763 + $0x184] sm:$0xf] %v958
                  %v960 = vld [vmem:[%s762 + $0x7a8] sm:$0xf]
                  %961 = vst [vmem:[%s763 + $0x188] sm:$0xf] %v960
                  %v962 = vld [vmem:[%s762 + $0x7bc] sm:$0xf]
                  %963 = vst [vmem:[%s763 + $0x18c] sm:$0xf] %v962
                  %v964 = vld [vmem:[%s762 + $0x7d0] sm:$0xf]
                  %965 = vst [vmem:[%s763 + $0x190] sm:$0xf] %v964
                  %v966 = vld [vmem:[%s762 + $0x7e4] sm:$0xf]
                  %967 = vst [vmem:[%s763 + $0x194] sm:$0xf] %v966
                  %v968 = vld [vmem:[%s762 + $0x7f8] sm:$0xf]
                  %969 = vst [vmem:[%s763 + $0x198] sm:$0xf] %v968
                  %v970 = vld [vmem:[%s762 + $0x80c] sm:$0xf]
                  %971 = vst [vmem:[%s763 + $0x19c] sm:$0xf] %v970
                  %v972 = vld [vmem:[%s762 + $0x820] sm:$0xf]
                  %973 = vst [vmem:[%s763 + $0x1a0] sm:$0xf] %v972
                  %v974 = vld [vmem:[%s762 + $0x834] sm:$0xf]
                  %975 = vst [vmem:[%s763 + $0x1a4] sm:$0xf] %v974
                  %v976 = vld [vmem:[%s762 + $0x848] sm:$0xf]
                  %977 = vst [vmem:[%s763 + $0x1a8] sm:$0xf] %v976
                  %v978 = vld [vmem:[%s762 + $0x85c] sm:$0xf]
                  %979 = vst [vmem:[%s763 + $0x1ac] sm:$0xf] %v978
                  %v980 = vld [vmem:[%s762 + $0x870] sm:$0xf]
                  %981 = vst [vmem:[%s763 + $0x1b0] sm:$0xf] %v980
                  %v982 = vld [vmem:[%s762 + $0x884] sm:$0xf]
                  %983 = vst [vmem:[%s763 + $0x1b4] sm:$0xf] %v982
                  %v984 = vld [vmem:[%s762 + $0x898] sm:$0xf]
                  %985 = vst [vmem:[%s763 + $0x1b8] sm:$0xf] %v984
                  %v986 = vld [vmem:[%s762 + $0x8ac] sm:$0xf]
                  %987 = vst [vmem:[%s763 + $0x1bc] sm:$0xf] %v986
                  %v988 = vld [vmem:[%s762 + $0x8c0] sm:$0xf]
                  %989 = vst [vmem:[%s763 + $0x1c0] sm:$0xf] %v988
                  %v990 = vld [vmem:[%s762 + $0x8d4] sm:$0xf]
                  %991 = vst [vmem:[%s763 + $0x1c4] sm:$0xf] %v990
                  %v992 = vld [vmem:[%s762 + $0x8e8] sm:$0xf]
                  %993 = vst [vmem:[%s763 + $0x1c8] sm:$0xf] %v992
                  %v994 = vld [vmem:[%s762 + $0x8fc] sm:$0xf]
                  %995 = vst [vmem:[%s763 + $0x1cc] sm:$0xf] %v994
                  %v996 = vld [vmem:[%s762 + $0x910] sm:$0xf]
                  %997 = vst [vmem:[%s763 + $0x1d0] sm:$0xf] %v996
                  %v998 = vld [vmem:[%s762 + $0x924] sm:$0xf]
                  %999 = vst [vmem:[%s763 + $0x1d4] sm:$0xf] %v998
                  %v1000 = vld [vmem:[%s762 + $0x938] sm:$0xf]
                  %1001 = vst [vmem:[%s763 + $0x1d8] sm:$0xf] %v1000
                  %v1002 = vld [vmem:[%s762 + $0x94c] sm:$0xf]
                  %1003 = vst [vmem:[%s763 + $0x1dc] sm:$0xf] %v1002
                  %v1004 = vld [vmem:[%s762 + $0x960] sm:$0xf]
                  %1005 = vst [vmem:[%s763 + $0x1e0] sm:$0xf] %v1004
                  %v1006 = vld [vmem:[%s762 + $0x974] sm:$0xf]
                  %1007 = vst [vmem:[%s763 + $0x1e4] sm:$0xf] %v1006
                  %v1008 = vld [vmem:[%s762 + $0x988] sm:$0xf]
                  %1009 = vst [vmem:[%s763 + $0x1e8] sm:$0xf] %v1008
                  %v1010 = vld [vmem:[%s762 + $0x99c] sm:$0xf]
                  %1011 = vst [vmem:[%s763 + $0x1ec] sm:$0xf] %v1010
                  %v1012 = vld [vmem:[%s762 + $0x9b0] sm:$0xf]
                  %1013 = vst [vmem:[%s763 + $0x1f0] sm:$0xf] %v1012
                  %v1014 = vld [vmem:[%s762 + $0x9c4] sm:$0xf]
                  %1015 = vst [vmem:[%s763 + $0x1f4] sm:$0xf] %v1014
                  %v1016 = vld [vmem:[%s762 + $0x9d8] sm:$0xf]
                  %1017 = vst [vmem:[%s763 + $0x1f8] sm:$0xf] %v1016
                  %v1018 = vld [vmem:[%s762 + $0x9ec] sm:$0xf]
                  %1019 = vst [vmem:[%s763 + $0x1fc] sm:$0xf] %v1018
                  %v1020 = vld [vmem:[%s762 + $0xa00] sm:$0xf]
                  %1021 = vst [vmem:[%s763 + $0x200] sm:$0xf] %v1020
                  %v1022 = vld [vmem:[%s762 + $0xa14] sm:$0xf]
                  %1023 = vst [vmem:[%s763 + $0x204] sm:$0xf] %v1022
                  %v1024 = vld [vmem:[%s762 + $0xa28] sm:$0xf]
                  %1025 = vst [vmem:[%s763 + $0x208] sm:$0xf] %v1024
                  %v1026 = vld [vmem:[%s762 + $0xa3c] sm:$0xf]
                  %1027 = vst [vmem:[%s763 + $0x20c] sm:$0xf] %v1026
                  %v1028 = vld [vmem:[%s762 + $0xa50] sm:$0xf]
                  %1029 = vst [vmem:[%s763 + $0x210] sm:$0xf] %v1028
                  %v1030 = vld [vmem:[%s762 + $0xa64] sm:$0xf]
                  %1031 = vst [vmem:[%s763 + $0x214] sm:$0xf] %v1030
                  %v1032 = vld [vmem:[%s762 + $0xa78] sm:$0xf]
                  %1033 = vst [vmem:[%s763 + $0x218] sm:$0xf] %v1032
                  %v1034 = vld [vmem:[%s762 + $0xa8c] sm:$0xf]
                  %1035 = vst [vmem:[%s763 + $0x21c] sm:$0xf] %v1034
                  %v1036 = vld [vmem:[%s762 + $0xaa0] sm:$0xf]
                  %1037 = vst [vmem:[%s763 + $0x220] sm:$0xf] %v1036
                  %v1038 = vld [vmem:[%s762 + $0xab4] sm:$0xf]
                  %1039 = vst [vmem:[%s763 + $0x224] sm:$0xf] %v1038
                  %v1040 = vld [vmem:[%s762 + $0xac8] sm:$0xf]
                  %1041 = vst [vmem:[%s763 + $0x228] sm:$0xf] %v1040
                  %v1042 = vld [vmem:[%s762 + $0xadc] sm:$0xf]
                  %1043 = vst [vmem:[%s763 + $0x22c] sm:$0xf] %v1042
                  %v1044 = vld [vmem:[%s762 + $0xaf0] sm:$0xf]
                  %1045 = vst [vmem:[%s763 + $0x230] sm:$0xf] %v1044
                  %v1046 = vld [vmem:[%s762 + $0xb04] sm:$0xf]
                  %1047 = vst [vmem:[%s763 + $0x234] sm:$0xf] %v1046
                  %v1048 = vld [vmem:[%s762 + $0xb18] sm:$0xf]
                  %1049 = vst [vmem:[%s763 + $0x238] sm:$0xf] %v1048
                  %v1050 = vld [vmem:[%s762 + $0xb2c] sm:$0xf]
                  %1051 = vst [vmem:[%s763 + $0x23c] sm:$0xf] %v1050
                  %v1052 = vld [vmem:[%s762 + $0xb40] sm:$0xf]
                  %1053 = vst [vmem:[%s763 + $0x240] sm:$0xf] %v1052
                  %v1054 = vld [vmem:[%s762 + $0xb54] sm:$0xf]
                  %1055 = vst [vmem:[%s763 + $0x244] sm:$0xf] %v1054
                  %v1056 = vld [vmem:[%s762 + $0xb68] sm:$0xf]
                  %1057 = vst [vmem:[%s763 + $0x248] sm:$0xf] %v1056
                  %v1058 = vld [vmem:[%s762 + $0xb7c] sm:$0xf]
                  %1059 = vst [vmem:[%s763 + $0x24c] sm:$0xf] %v1058
                  %v1060 = vld [vmem:[%s762 + $0xb90] sm:$0xf]
                  %1061 = vst [vmem:[%s763 + $0x250] sm:$0xf] %v1060
                  %v1062 = vld [vmem:[%s762 + $0xba4] sm:$0xf]
                  %1063 = vst [vmem:[%s763 + $0x254] sm:$0xf] %v1062
                  %v1064 = vld [vmem:[%s762 + $0xbb8] sm:$0xf]
                  %1065 = vst [vmem:[%s763 + $0x258] sm:$0xf] %v1064
                  %v1066 = vld [vmem:[%s762 + $0xbcc] sm:$0xf]
                  %1067 = vst [vmem:[%s763 + $0x25c] sm:$0xf] %v1066
                  %v1068 = vld [vmem:[%s762 + $0xbe0] sm:$0xf]
                  %1069 = vst [vmem:[%s763 + $0x260] sm:$0xf] %v1068
                  %v1070 = vld [vmem:[%s762 + $0xbf4] sm:$0xf]
                  %1071 = vst [vmem:[%s763 + $0x264] sm:$0xf] %v1070
                  %v1072 = vld [vmem:[%s762 + $0xc08] sm:$0xf]
                  %1073 = vst [vmem:[%s763 + $0x268] sm:$0xf] %v1072
                  %v1074 = vld [vmem:[%s762 + $0xc1c] sm:$0xf]
                  %1075 = vst [vmem:[%s763 + $0x26c] sm:$0xf] %v1074
                  %v1076 = vld [vmem:[%s762 + $0xc30] sm:$0xf]
                  %1077 = vst [vmem:[%s763 + $0x270] sm:$0xf] %v1076
                  %v1078 = vld [vmem:[%s762 + $0xc44] sm:$0xf]
                  %1079 = vst [vmem:[%s763 + $0x274] sm:$0xf] %v1078
                  %v1080 = vld [vmem:[%s762 + $0xc58] sm:$0xf]
                  %1081 = vst [vmem:[%s763 + $0x278] sm:$0xf] %v1080
                  %v1082 = vld [vmem:[%s762 + $0xc6c] sm:$0xf]
                  %1083 = vst [vmem:[%s763 + $0x27c] sm:$0xf] %v1082
                  %v1084 = vld [vmem:[%s762 + $0xc80] sm:$0xf]
                  %1085 = vst [vmem:[%s763 + $0x280] sm:$0xf] %v1084
                  %v1086 = vld [vmem:[%s762 + $0xc94] sm:$0xf]
                  %1087 = vst [vmem:[%s763 + $0x284] sm:$0xf] %v1086
                  %v1088 = vld [vmem:[%s762 + $0xca8] sm:$0xf]
                  %1089 = vst [vmem:[%s763 + $0x288] sm:$0xf] %v1088
                  %v1090 = vld [vmem:[%s762 + $0xcbc] sm:$0xf]
                  %1091 = vst [vmem:[%s763 + $0x28c] sm:$0xf] %v1090
                  %v1092 = vld [vmem:[%s762 + $0xcd0] sm:$0xf]
                  %1093 = vst [vmem:[%s763 + $0x290] sm:$0xf] %v1092
                  %v1094 = vld [vmem:[%s762 + $0xce4] sm:$0xf]
                  %1095 = vst [vmem:[%s763 + $0x294] sm:$0xf] %v1094
                  %v1096 = vld [vmem:[%s762 + $0xcf8] sm:$0xf]
                  %1097 = vst [vmem:[%s763 + $0x298] sm:$0xf] %v1096
                  %v1098 = vld [vmem:[%s762 + $0xd0c] sm:$0xf]
                  %1099 = vst [vmem:[%s763 + $0x29c] sm:$0xf] %v1098
                  %v1100 = vld [vmem:[%s762 + $0xd20] sm:$0xf]
                  %1101 = vst [vmem:[%s763 + $0x2a0] sm:$0xf] %v1100
                  %v1102 = vld [vmem:[%s762 + $0xd34] sm:$0xf]
                  %1103 = vst [vmem:[%s763 + $0x2a4] sm:$0xf] %v1102
                  %v1104 = vld [vmem:[%s762 + $0xd48] sm:$0xf]
                  %1105 = vst [vmem:[%s763 + $0x2a8] sm:$0xf] %v1104
                  %v1106 = vld [vmem:[%s762 + $0xd5c] sm:$0xf]
                  %1107 = vst [vmem:[%s763 + $0x2ac] sm:$0xf] %v1106
                  %v1108 = vld [vmem:[%s762 + $0xd70] sm:$0xf]
                  %1109 = vst [vmem:[%s763 + $0x2b0] sm:$0xf] %v1108
                  %v1110 = vld [vmem:[%s762 + $0xd84] sm:$0xf]
                  %1111 = vst [vmem:[%s763 + $0x2b4] sm:$0xf] %v1110
                  %v1112 = vld [vmem:[%s762 + $0xd98] sm:$0xf]
                  %1113 = vst [vmem:[%s763 + $0x2b8] sm:$0xf] %v1112
                  %v1114 = vld [vmem:[%s762 + $0xdac] sm:$0xf]
                  %1115 = vst [vmem:[%s763 + $0x2bc] sm:$0xf] %v1114
                  %v1116 = vld [vmem:[%s762 + $0xdc0] sm:$0xf]
                  %1117 = vst [vmem:[%s763 + $0x2c0] sm:$0xf] %v1116
                  %v1118 = vld [vmem:[%s762 + $0xdd4] sm:$0xf]
                  %1119 = vst [vmem:[%s763 + $0x2c4] sm:$0xf] %v1118
                  %v1120 = vld [vmem:[%s762 + $0xde8] sm:$0xf]
                  %1121 = vst [vmem:[%s763 + $0x2c8] sm:$0xf] %v1120
                  %v1122 = vld [vmem:[%s762 + $0xdfc] sm:$0xf]
                  %1123 = vst [vmem:[%s763 + $0x2cc] sm:$0xf] %v1122
                  %v1124 = vld [vmem:[%s762 + $0xe10] sm:$0xf]
                  %1125 = vst [vmem:[%s763 + $0x2d0] sm:$0xf] %v1124
                  %v1126 = vld [vmem:[%s762 + $0xe24] sm:$0xf]
                  %1127 = vst [vmem:[%s763 + $0x2d4] sm:$0xf] %v1126
                  %v1128 = vld [vmem:[%s762 + $0xe38] sm:$0xf]
                  %1129 = vst [vmem:[%s763 + $0x2d8] sm:$0xf] %v1128
                  %v1130 = vld [vmem:[%s762 + $0xe4c] sm:$0xf]
                  %1131 = vst [vmem:[%s763 + $0x2dc] sm:$0xf] %v1130
                  %v1132 = vld [vmem:[%s762 + $0xe60] sm:$0xf]
                  %1133 = vst [vmem:[%s763 + $0x2e0] sm:$0xf] %v1132
                  %v1134 = vld [vmem:[%s762 + $0xe74] sm:$0xf]
                  %1135 = vst [vmem:[%s763 + $0x2e4] sm:$0xf] %v1134
                  %v1136 = vld [vmem:[%s762 + $0xe88] sm:$0xf]
                  %1137 = vst [vmem:[%s763 + $0x2e8] sm:$0xf] %v1136
                  %v1138 = vld [vmem:[%s762 + $0xe9c] sm:$0xf]
                  %1139 = vst [vmem:[%s763 + $0x2ec] sm:$0xf] %v1138
                  %v1140 = vld [vmem:[%s762 + $0xeb0] sm:$0xf]
                  %1141 = vst [vmem:[%s763 + $0x2f0] sm:$0xf] %v1140
                  %v1142 = vld [vmem:[%s762 + $0xec4] sm:$0xf]
                  %1143 = vst [vmem:[%s763 + $0x2f4] sm:$0xf] %v1142
                  %v1144 = vld [vmem:[%s762 + $0xed8] sm:$0xf]
                  %1145 = vst [vmem:[%s763 + $0x2f8] sm:$0xf] %v1144
                  %v1146 = vld [vmem:[%s762 + $0xeec] sm:$0xf]
                  %1147 = vst [vmem:[%s763 + $0x2fc] sm:$0xf] %v1146
                  %v1148 = vld [vmem:[%s762 + $0xf00] sm:$0xf]
                  %1149 = vst [vmem:[%s763 + $0x300] sm:$0xf] %v1148
                  %v1150 = vld [vmem:[%s762 + $0xf14] sm:$0xf]
                  %1151 = vst [vmem:[%s763 + $0x304] sm:$0xf] %v1150
                  %v1152 = vld [vmem:[%s762 + $0xf28] sm:$0xf]
                  %1153 = vst [vmem:[%s763 + $0x308] sm:$0xf] %v1152
                  %v1154 = vld [vmem:[%s762 + $0xf3c] sm:$0xf]
                  %1155 = vst [vmem:[%s763 + $0x30c] sm:$0xf] %v1154
                  %v1156 = vld [vmem:[%s762 + $0xf50] sm:$0xf]
                  %1157 = vst [vmem:[%s763 + $0x310] sm:$0xf] %v1156
                  %v1158 = vld [vmem:[%s762 + $0xf64] sm:$0xf]
                  %1159 = vst [vmem:[%s763 + $0x314] sm:$0xf] %v1158
                  %v1160 = vld [vmem:[%s762 + $0xf78] sm:$0xf]
                  %1161 = vst [vmem:[%s763 + $0x318] sm:$0xf] %v1160
                  %v1162 = vld [vmem:[%s762 + $0xf8c] sm:$0xf]
                  %1163 = vst [vmem:[%s763 + $0x31c] sm:$0xf] %v1162
                  %v1164 = vld [vmem:[%s762 + $0xfa0] sm:$0xf]
                  %1165 = vst [vmem:[%s763 + $0x320] sm:$0xf] %v1164
                  %v1166 = vld [vmem:[%s762 + $0xfb4] sm:$0xf]
                  %1167 = vst [vmem:[%s763 + $0x324] sm:$0xf] %v1166
                  %v1168 = vld [vmem:[%s762 + $0xfc8] sm:$0xf]
                  %1169 = vst [vmem:[%s763 + $0x328] sm:$0xf] %v1168
                  %v1170 = vld [vmem:[%s762 + $0xfdc] sm:$0xf]
                  %1171 = vst [vmem:[%s763 + $0x32c] sm:$0xf] %v1170
                  %v1172 = vld [vmem:[%s762 + $0xff0] sm:$0xf]
                  %1173 = vst [vmem:[%s763 + $0x330] sm:$0xf] %v1172
                  %v1174 = vld [vmem:[%s762 + $0x1004] sm:$0xf]
                  %1175 = vst [vmem:[%s763 + $0x334] sm:$0xf] %v1174
                  %v1176 = vld [vmem:[%s762 + $0x1018] sm:$0xf]
                  %1177 = vst [vmem:[%s763 + $0x338] sm:$0xf] %v1176
                  %v1178 = vld [vmem:[%s762 + $0x102c] sm:$0xf]
                  %1179 = vst [vmem:[%s763 + $0x33c] sm:$0xf] %v1178
                  %v1180 = vld [vmem:[%s762 + $0x1040] sm:$0xf]
                  %1181 = vst [vmem:[%s763 + $0x340] sm:$0xf] %v1180
                  %v1182 = vld [vmem:[%s762 + $0x1054] sm:$0xf]
                  %1183 = vst [vmem:[%s763 + $0x344] sm:$0xf] %v1182
                  %v1184 = vld [vmem:[%s762 + $0x1068] sm:$0xf]
                  %1185 = vst [vmem:[%s763 + $0x348] sm:$0xf] %v1184
                  %v1186 = vld [vmem:[%s762 + $0x107c] sm:$0xf]
                  %1187 = vst [vmem:[%s763 + $0x34c] sm:$0xf] %v1186
                  %v1188 = vld [vmem:[%s762 + $0x1090] sm:$0xf]
                  %1189 = vst [vmem:[%s763 + $0x350] sm:$0xf] %v1188
                  %v1190 = vld [vmem:[%s762 + $0x10a4] sm:$0xf]
                  %1191 = vst [vmem:[%s763 + $0x354] sm:$0xf] %v1190
                  %v1192 = vld [vmem:[%s762 + $0x10b8] sm:$0xf]
                  %1193 = vst [vmem:[%s763 + $0x358] sm:$0xf] %v1192
                  %v1194 = vld [vmem:[%s762 + $0x10cc] sm:$0xf]
                  %1195 = vst [vmem:[%s763 + $0x35c] sm:$0xf] %v1194
                  %v1196 = vld [vmem:[%s762 + $0x10e0] sm:$0xf]
                  %1197 = vst [vmem:[%s763 + $0x360] sm:$0xf] %v1196
                  %v1198 = vld [vmem:[%s762 + $0x10f4] sm:$0xf]
                  %1199 = vst [vmem:[%s763 + $0x364] sm:$0xf] %v1198
                  %v1200 = vld [vmem:[%s762 + $0x1108] sm:$0xf]
                  %1201 = vst [vmem:[%s763 + $0x368] sm:$0xf] %v1200
                  %v1202 = vld [vmem:[%s762 + $0x111c] sm:$0xf]
                  %1203 = vst [vmem:[%s763 + $0x36c] sm:$0xf] %v1202
                  %v1204 = vld [vmem:[%s762 + $0x1130] sm:$0xf]
                  %1205 = vst [vmem:[%s763 + $0x370] sm:$0xf] %v1204
                  %v1206 = vld [vmem:[%s762 + $0x1144] sm:$0xf]
                  %1207 = vst [vmem:[%s763 + $0x374] sm:$0xf] %v1206
                  %v1208 = vld [vmem:[%s762 + $0x1158] sm:$0xf]
                  %1209 = vst [vmem:[%s763 + $0x378] sm:$0xf] %v1208
                  %v1210 = vld [vmem:[%s762 + $0x116c] sm:$0xf]
                  %1211 = vst [vmem:[%s763 + $0x37c] sm:$0xf] %v1210
                  %v1212 = vld [vmem:[%s762 + $0x1180] sm:$0xf]
                  %1213 = vst [vmem:[%s763 + $0x380] sm:$0xf] %v1212
                  %v1214 = vld [vmem:[%s762 + $0x1194] sm:$0xf]
                  %1215 = vst [vmem:[%s763 + $0x384] sm:$0xf] %v1214
                  %v1216 = vld [vmem:[%s762 + $0x11a8] sm:$0xf]
                  %1217 = vst [vmem:[%s763 + $0x388] sm:$0xf] %v1216
                  %v1218 = vld [vmem:[%s762 + $0x11bc] sm:$0xf]
                  %1219 = vst [vmem:[%s763 + $0x38c] sm:$0xf] %v1218
                  %v1220 = vld [vmem:[%s762 + $0x11d0] sm:$0xf]
                  %1221 = vst [vmem:[%s763 + $0x390] sm:$0xf] %v1220
                  %v1222 = vld [vmem:[%s762 + $0x11e4] sm:$0xf]
                  %1223 = vst [vmem:[%s763 + $0x394] sm:$0xf] %v1222
                  %v1224 = vld [vmem:[%s762 + $0x11f8] sm:$0xf]
                  %1225 = vst [vmem:[%s763 + $0x398] sm:$0xf] %v1224
                  %v1226 = vld [vmem:[%s762 + $0x120c] sm:$0xf]
                  %1227 = vst [vmem:[%s763 + $0x39c] sm:$0xf] %v1226
                  %v1228 = vld [vmem:[%s762 + $0x1220] sm:$0xf]
                  %1229 = vst [vmem:[%s763 + $0x3a0] sm:$0xf] %v1228
                  %v1230 = vld [vmem:[%s762 + $0x1234] sm:$0xf]
                  %1231 = vst [vmem:[%s763 + $0x3a4] sm:$0xf] %v1230
                  %v1232 = vld [vmem:[%s762 + $0x1248] sm:$0xf]
                  %1233 = vst [vmem:[%s763 + $0x3a8] sm:$0xf] %v1232
                  %v1234 = vld [vmem:[%s762 + $0x125c] sm:$0xf]
                  %1235 = vst [vmem:[%s763 + $0x3ac] sm:$0xf] %v1234
                  %v1236 = vld [vmem:[%s762 + $0x1270] sm:$0xf]
                  %1237 = vst [vmem:[%s763 + $0x3b0] sm:$0xf] %v1236
                  %v1238 = vld [vmem:[%s762 + $0x1284] sm:$0xf]
                  %1239 = vst [vmem:[%s763 + $0x3b4] sm:$0xf] %v1238
                  %v1240 = vld [vmem:[%s762 + $0x1298] sm:$0xf]
                  %1241 = vst [vmem:[%s763 + $0x3b8] sm:$0xf] %v1240
                  %v1242 = vld [vmem:[%s762 + $0x12ac] sm:$0xf]
                  %1243 = vst [vmem:[%s763 + $0x3bc] sm:$0xf] %v1242
                  %v1244 = vld [vmem:[%s762 + $0x12c0] sm:$0xf]
                  %1245 = vst [vmem:[%s763 + $0x3c0] sm:$0xf] %v1244
                  %v1246 = vld [vmem:[%s762 + $0x12d4] sm:$0xf]
                  %1247 = vst [vmem:[%s763 + $0x3c4] sm:$0xf] %v1246
                  %v1248 = vld [vmem:[%s762 + $0x12e8] sm:$0xf]
                  %1249 = vst [vmem:[%s763 + $0x3c8] sm:$0xf] %v1248
                  %v1250 = vld [vmem:[%s762 + $0x12fc] sm:$0xf]
                  %1251 = vst [vmem:[%s763 + $0x3cc] sm:$0xf] %v1250
                  %v1252 = vld [vmem:[%s762 + $0x1310] sm:$0xf]
                  %1253 = vst [vmem:[%s763 + $0x3d0] sm:$0xf] %v1252
                  %v1254 = vld [vmem:[%s762 + $0x1324] sm:$0xf]
                  %1255 = vst [vmem:[%s763 + $0x3d4] sm:$0xf] %v1254
                  %v1256 = vld [vmem:[%s762 + $0x1338] sm:$0xf]
                  %1257 = vst [vmem:[%s763 + $0x3d8] sm:$0xf] %v1256
                  %v1258 = vld [vmem:[%s762 + $0x134c] sm:$0xf]
                  %1259 = vst [vmem:[%s763 + $0x3dc] sm:$0xf] %v1258
                  %v1260 = vld [vmem:[%s762 + $0x1360] sm:$0xf]
                  %1261 = vst [vmem:[%s763 + $0x3e0] sm:$0xf] %v1260
                  %v1262 = vld [vmem:[%s762 + $0x1374] sm:$0xf]
                  %1263 = vst [vmem:[%s763 + $0x3e4] sm:$0xf] %v1262
                  %v1264 = vld [vmem:[%s762 + $0x1388] sm:$0xf]
                  %1265 = vst [vmem:[%s763 + $0x3e8] sm:$0xf] %v1264
                  %v1266 = vld [vmem:[%s762 + $0x139c] sm:$0xf]
                  %1267 = vst [vmem:[%s763 + $0x3ec] sm:$0xf] %v1266
                  %v1268 = vld [vmem:[%s762 + $0x13b0] sm:$0xf]
                  %1269 = vst [vmem:[%s763 + $0x3f0] sm:$0xf] %v1268
                  %v1270 = vld [vmem:[%s762 + $0x13c4] sm:$0xf]
                  %1271 = vst [vmem:[%s763 + $0x3f4] sm:$0xf] %v1270
                  %v1272 = vld [vmem:[%s762 + $0x13d8] sm:$0xf]
                  %1273 = vst [vmem:[%s763 + $0x3f8] sm:$0xf] %v1272
                  %v1274 = vld [vmem:[%s762 + $0x13ec] sm:$0xf]
                  %1275 = vst [vmem:[%s763 + $0x3fc] sm:$0xf] %v1274
                $region67: #{generator_head_forward.1} parent=54 // loop_footer
                  %s761 = sadd.s32 1, %s757
                $region68: #{generator_head_forward.1} parent=54 // loop_footer_branch
                  %756 = sbr.rel target = $region64
                $region69: #{generator_head_forward.1} parent=54 // loop_exit
                  _
              $region55: #{generator_head_forward.1} parent=39 // pred_fallthru
                _
            $region40: #{generator_head_forward.1} parent=35 // pred_fallthru
              _
            // Predicated region
            $region41: #{generator_head_forward.1} parent=35 // pred_check
              _
            $region42: #{generator_head_forward.1} parent=35 // pred_check_branch
              %223 = sbr.rel (0) target = $region44
            $region43: #{generator_head_forward.1} parent=35 // pred_region
              loop: start=0, step=1, limit=1
              $region45: #{generator_head_forward.1} parent=43 // loop_pre_header
                _
              $region46: #{generator_head_forward.1} parent=43 // loop_header
                %s226 = sphi 0, %s230
                %p227 = scmp.ge.s32.totalorder %s226, 1
                %s231 = sphi %s217, %s217
                %s232 = sphi %s215, %s215
              $region47: #{generator_head_forward.1} parent=43 // loop_header_branch
                %229 = sbr.rel (%p227) target = $region51
              $region48: #{generator_head_forward.1} parent=43 // loop_body
                %v233 = vld [vmem:[%s231] sm:$0xf]
                %234 = vst [vmem:[%s232] sm:$0xf] %v233
                %v235 = vld [vmem:[%s231 + $0x14] sm:$0xf]
                %236 = vst [vmem:[%s232 + $0x4] sm:$0xf] %v235
                %v237 = vld [vmem:[%s231 + $0x28] sm:$0xf]
                %238 = vst [vmem:[%s232 + $0x8] sm:$0xf] %v237
                %v239 = vld [vmem:[%s231 + $0x3c] sm:$0xf]
                %240 = vst [vmem:[%s232 + $0xc] sm:$0xf] %v239
                %v241 = vld [vmem:[%s231 + $0x50] sm:$0xf]
                %242 = vst [vmem:[%s232 + $0x10] sm:$0xf] %v241
                %v243 = vld [vmem:[%s231 + $0x64] sm:$0xf]
                %244 = vst [vmem:[%s232 + $0x14] sm:$0xf] %v243
                %v245 = vld [vmem:[%s231 + $0x78] sm:$0xf]
                %246 = vst [vmem:[%s232 + $0x18] sm:$0xf] %v245
                %v247 = vld [vmem:[%s231 + $0x8c] sm:$0xf]
                %248 = vst [vmem:[%s232 + $0x1c] sm:$0xf] %v247
                %v249 = vld [vmem:[%s231 + $0xa0] sm:$0xf]
                %250 = vst [vmem:[%s232 + $0x20] sm:$0xf] %v249
                %v251 = vld [vmem:[%s231 + $0xb4] sm:$0xf]
                %252 = vst [vmem:[%s232 + $0x24] sm:$0xf] %v251
                %v253 = vld [vmem:[%s231 + $0xc8] sm:$0xf]
                %254 = vst [vmem:[%s232 + $0x28] sm:$0xf] %v253
                %v255 = vld [vmem:[%s231 + $0xdc] sm:$0xf]
                %256 = vst [vmem:[%s232 + $0x2c] sm:$0xf] %v255
                %v257 = vld [vmem:[%s231 + $0xf0] sm:$0xf]
                %258 = vst [vmem:[%s232 + $0x30] sm:$0xf] %v257
                %v259 = vld [vmem:[%s231 + $0x104] sm:$0xf]
                %260 = vst [vmem:[%s232 + $0x34] sm:$0xf] %v259
                %v261 = vld [vmem:[%s231 + $0x118] sm:$0xf]
                %262 = vst [vmem:[%s232 + $0x38] sm:$0xf] %v261
                %v263 = vld [vmem:[%s231 + $0x12c] sm:$0xf]
                %264 = vst [vmem:[%s232 + $0x3c] sm:$0xf] %v263
                %v265 = vld [vmem:[%s231 + $0x140] sm:$0xf]
                %266 = vst [vmem:[%s232 + $0x40] sm:$0xf] %v265
                %v267 = vld [vmem:[%s231 + $0x154] sm:$0xf]
                %268 = vst [vmem:[%s232 + $0x44] sm:$0xf] %v267
                %v269 = vld [vmem:[%s231 + $0x168] sm:$0xf]
                %270 = vst [vmem:[%s232 + $0x48] sm:$0xf] %v269
                %v271 = vld [vmem:[%s231 + $0x17c] sm:$0xf]
                %272 = vst [vmem:[%s232 + $0x4c] sm:$0xf] %v271
                %v273 = vld [vmem:[%s231 + $0x190] sm:$0xf]
                %274 = vst [vmem:[%s232 + $0x50] sm:$0xf] %v273
                %v275 = vld [vmem:[%s231 + $0x1a4] sm:$0xf]
                %276 = vst [vmem:[%s232 + $0x54] sm:$0xf] %v275
                %v277 = vld [vmem:[%s231 + $0x1b8] sm:$0xf]
                %278 = vst [vmem:[%s232 + $0x58] sm:$0xf] %v277
                %v279 = vld [vmem:[%s231 + $0x1cc] sm:$0xf]
                %280 = vst [vmem:[%s232 + $0x5c] sm:$0xf] %v279
                %v281 = vld [vmem:[%s231 + $0x1e0] sm:$0xf]
                %282 = vst [vmem:[%s232 + $0x60] sm:$0xf] %v281
                %v283 = vld [vmem:[%s231 + $0x1f4] sm:$0xf]
                %284 = vst [vmem:[%s232 + $0x64] sm:$0xf] %v283
                %v285 = vld [vmem:[%s231 + $0x208] sm:$0xf]
                %286 = vst [vmem:[%s232 + $0x68] sm:$0xf] %v285
                %v287 = vld [vmem:[%s231 + $0x21c] sm:$0xf]
                %288 = vst [vmem:[%s232 + $0x6c] sm:$0xf] %v287
                %v289 = vld [vmem:[%s231 + $0x230] sm:$0xf]
                %290 = vst [vmem:[%s232 + $0x70] sm:$0xf] %v289
                %v291 = vld [vmem:[%s231 + $0x244] sm:$0xf]
                %292 = vst [vmem:[%s232 + $0x74] sm:$0xf] %v291
                %v293 = vld [vmem:[%s231 + $0x258] sm:$0xf]
                %294 = vst [vmem:[%s232 + $0x78] sm:$0xf] %v293
                %v295 = vld [vmem:[%s231 + $0x26c] sm:$0xf]
                %296 = vst [vmem:[%s232 + $0x7c] sm:$0xf] %v295
                %v297 = vld [vmem:[%s231 + $0x280] sm:$0xf]
                %298 = vst [vmem:[%s232 + $0x80] sm:$0xf] %v297
                %v299 = vld [vmem:[%s231 + $0x294] sm:$0xf]
                %300 = vst [vmem:[%s232 + $0x84] sm:$0xf] %v299
                %v301 = vld [vmem:[%s231 + $0x2a8] sm:$0xf]
                %302 = vst [vmem:[%s232 + $0x88] sm:$0xf] %v301
                %v303 = vld [vmem:[%s231 + $0x2bc] sm:$0xf]
                %304 = vst [vmem:[%s232 + $0x8c] sm:$0xf] %v303
                %v305 = vld [vmem:[%s231 + $0x2d0] sm:$0xf]
                %306 = vst [vmem:[%s232 + $0x90] sm:$0xf] %v305
                %v307 = vld [vmem:[%s231 + $0x2e4] sm:$0xf]
                %308 = vst [vmem:[%s232 + $0x94] sm:$0xf] %v307
                %v309 = vld [vmem:[%s231 + $0x2f8] sm:$0xf]
                %310 = vst [vmem:[%s232 + $0x98] sm:$0xf] %v309
                %v311 = vld [vmem:[%s231 + $0x30c] sm:$0xf]
                %312 = vst [vmem:[%s232 + $0x9c] sm:$0xf] %v311
                %v313 = vld [vmem:[%s231 + $0x320] sm:$0xf]
                %314 = vst [vmem:[%s232 + $0xa0] sm:$0xf] %v313
                %v315 = vld [vmem:[%s231 + $0x334] sm:$0xf]
                %316 = vst [vmem:[%s232 + $0xa4] sm:$0xf] %v315
                %v317 = vld [vmem:[%s231 + $0x348] sm:$0xf]
                %318 = vst [vmem:[%s232 + $0xa8] sm:$0xf] %v317
                %v319 = vld [vmem:[%s231 + $0x35c] sm:$0xf]
                %320 = vst [vmem:[%s232 + $0xac] sm:$0xf] %v319
                %v321 = vld [vmem:[%s231 + $0x370] sm:$0xf]
                %322 = vst [vmem:[%s232 + $0xb0] sm:$0xf] %v321
                %v323 = vld [vmem:[%s231 + $0x384] sm:$0xf]
                %324 = vst [vmem:[%s232 + $0xb4] sm:$0xf] %v323
                %v325 = vld [vmem:[%s231 + $0x398] sm:$0xf]
                %326 = vst [vmem:[%s232 + $0xb8] sm:$0xf] %v325
                %v327 = vld [vmem:[%s231 + $0x3ac] sm:$0xf]
                %328 = vst [vmem:[%s232 + $0xbc] sm:$0xf] %v327
                %v329 = vld [vmem:[%s231 + $0x3c0] sm:$0xf]
                %330 = vst [vmem:[%s232 + $0xc0] sm:$0xf] %v329
                %v331 = vld [vmem:[%s231 + $0x3d4] sm:$0xf]
                %332 = vst [vmem:[%s232 + $0xc4] sm:$0xf] %v331
                %v333 = vld [vmem:[%s231 + $0x3e8] sm:$0xf]
                %334 = vst [vmem:[%s232 + $0xc8] sm:$0xf] %v333
                %v335 = vld [vmem:[%s231 + $0x3fc] sm:$0xf]
                %336 = vst [vmem:[%s232 + $0xcc] sm:$0xf] %v335
                %v337 = vld [vmem:[%s231 + $0x410] sm:$0xf]
                %338 = vst [vmem:[%s232 + $0xd0] sm:$0xf] %v337
                %v339 = vld [vmem:[%s231 + $0x424] sm:$0xf]
                %340 = vst [vmem:[%s232 + $0xd4] sm:$0xf] %v339
                %v341 = vld [vmem:[%s231 + $0x438] sm:$0xf]
                %342 = vst [vmem:[%s232 + $0xd8] sm:$0xf] %v341
                %v343 = vld [vmem:[%s231 + $0x44c] sm:$0xf]
                %344 = vst [vmem:[%s232 + $0xdc] sm:$0xf] %v343
                %v345 = vld [vmem:[%s231 + $0x460] sm:$0xf]
                %346 = vst [vmem:[%s232 + $0xe0] sm:$0xf] %v345
                %v347 = vld [vmem:[%s231 + $0x474] sm:$0xf]
                %348 = vst [vmem:[%s232 + $0xe4] sm:$0xf] %v347
                %v349 = vld [vmem:[%s231 + $0x488] sm:$0xf]
                %350 = vst [vmem:[%s232 + $0xe8] sm:$0xf] %v349
                %v351 = vld [vmem:[%s231 + $0x49c] sm:$0xf]
                %352 = vst [vmem:[%s232 + $0xec] sm:$0xf] %v351
                %v353 = vld [vmem:[%s231 + $0x4b0] sm:$0xf]
                %354 = vst [vmem:[%s232 + $0xf0] sm:$0xf] %v353
                %v355 = vld [vmem:[%s231 + $0x4c4] sm:$0xf]
                %356 = vst [vmem:[%s232 + $0xf4] sm:$0xf] %v355
                %v357 = vld [vmem:[%s231 + $0x4d8] sm:$0xf]
                %358 = vst [vmem:[%s232 + $0xf8] sm:$0xf] %v357
                %v359 = vld [vmem:[%s231 + $0x4ec] sm:$0xf]
                %360 = vst [vmem:[%s232 + $0xfc] sm:$0xf] %v359
                %v361 = vld [vmem:[%s231 + $0x500] sm:$0xf]
                %362 = vst [vmem:[%s232 + $0x100] sm:$0xf] %v361
                %v363 = vld [vmem:[%s231 + $0x514] sm:$0xf]
                %364 = vst [vmem:[%s232 + $0x104] sm:$0xf] %v363
                %v365 = vld [vmem:[%s231 + $0x528] sm:$0xf]
                %366 = vst [vmem:[%s232 + $0x108] sm:$0xf] %v365
                %v367 = vld [vmem:[%s231 + $0x53c] sm:$0xf]
                %368 = vst [vmem:[%s232 + $0x10c] sm:$0xf] %v367
                %v369 = vld [vmem:[%s231 + $0x550] sm:$0xf]
                %370 = vst [vmem:[%s232 + $0x110] sm:$0xf] %v369
                %v371 = vld [vmem:[%s231 + $0x564] sm:$0xf]
                %372 = vst [vmem:[%s232 + $0x114] sm:$0xf] %v371
                %v373 = vld [vmem:[%s231 + $0x578] sm:$0xf]
                %374 = vst [vmem:[%s232 + $0x118] sm:$0xf] %v373
                %v375 = vld [vmem:[%s231 + $0x58c] sm:$0xf]
                %376 = vst [vmem:[%s232 + $0x11c] sm:$0xf] %v375
                %v377 = vld [vmem:[%s231 + $0x5a0] sm:$0xf]
                %378 = vst [vmem:[%s232 + $0x120] sm:$0xf] %v377
                %v379 = vld [vmem:[%s231 + $0x5b4] sm:$0xf]
                %380 = vst [vmem:[%s232 + $0x124] sm:$0xf] %v379
                %v381 = vld [vmem:[%s231 + $0x5c8] sm:$0xf]
                %382 = vst [vmem:[%s232 + $0x128] sm:$0xf] %v381
                %v383 = vld [vmem:[%s231 + $0x5dc] sm:$0xf]
                %384 = vst [vmem:[%s232 + $0x12c] sm:$0xf] %v383
                %v385 = vld [vmem:[%s231 + $0x5f0] sm:$0xf]
                %386 = vst [vmem:[%s232 + $0x130] sm:$0xf] %v385
                %v387 = vld [vmem:[%s231 + $0x604] sm:$0xf]
                %388 = vst [vmem:[%s232 + $0x134] sm:$0xf] %v387
                %v389 = vld [vmem:[%s231 + $0x618] sm:$0xf]
                %390 = vst [vmem:[%s232 + $0x138] sm:$0xf] %v389
                %v391 = vld [vmem:[%s231 + $0x62c] sm:$0xf]
                %392 = vst [vmem:[%s232 + $0x13c] sm:$0xf] %v391
                %v393 = vld [vmem:[%s231 + $0x640] sm:$0xf]
                %394 = vst [vmem:[%s232 + $0x140] sm:$0xf] %v393
                %v395 = vld [vmem:[%s231 + $0x654] sm:$0xf]
                %396 = vst [vmem:[%s232 + $0x144] sm:$0xf] %v395
                %v397 = vld [vmem:[%s231 + $0x668] sm:$0xf]
                %398 = vst [vmem:[%s232 + $0x148] sm:$0xf] %v397
                %v399 = vld [vmem:[%s231 + $0x67c] sm:$0xf]
                %400 = vst [vmem:[%s232 + $0x14c] sm:$0xf] %v399
                %v401 = vld [vmem:[%s231 + $0x690] sm:$0xf]
                %402 = vst [vmem:[%s232 + $0x150] sm:$0xf] %v401
                %v403 = vld [vmem:[%s231 + $0x6a4] sm:$0xf]
                %404 = vst [vmem:[%s232 + $0x154] sm:$0xf] %v403
                %v405 = vld [vmem:[%s231 + $0x6b8] sm:$0xf]
                %406 = vst [vmem:[%s232 + $0x158] sm:$0xf] %v405
                %v407 = vld [vmem:[%s231 + $0x6cc] sm:$0xf]
                %408 = vst [vmem:[%s232 + $0x15c] sm:$0xf] %v407
                %v409 = vld [vmem:[%s231 + $0x6e0] sm:$0xf]
                %410 = vst [vmem:[%s232 + $0x160] sm:$0xf] %v409
                %v411 = vld [vmem:[%s231 + $0x6f4] sm:$0xf]
                %412 = vst [vmem:[%s232 + $0x164] sm:$0xf] %v411
                %v413 = vld [vmem:[%s231 + $0x708] sm:$0xf]
                %414 = vst [vmem:[%s232 + $0x168] sm:$0xf] %v413
                %v415 = vld [vmem:[%s231 + $0x71c] sm:$0xf]
                %416 = vst [vmem:[%s232 + $0x16c] sm:$0xf] %v415
                %v417 = vld [vmem:[%s231 + $0x730] sm:$0xf]
                %418 = vst [vmem:[%s232 + $0x170] sm:$0xf] %v417
                %v419 = vld [vmem:[%s231 + $0x744] sm:$0xf]
                %420 = vst [vmem:[%s232 + $0x174] sm:$0xf] %v419
                %v421 = vld [vmem:[%s231 + $0x758] sm:$0xf]
                %422 = vst [vmem:[%s232 + $0x178] sm:$0xf] %v421
                %v423 = vld [vmem:[%s231 + $0x76c] sm:$0xf]
                %424 = vst [vmem:[%s232 + $0x17c] sm:$0xf] %v423
                %v425 = vld [vmem:[%s231 + $0x780] sm:$0xf]
                %426 = vst [vmem:[%s232 + $0x180] sm:$0xf] %v425
                %v427 = vld [vmem:[%s231 + $0x794] sm:$0xf]
                %428 = vst [vmem:[%s232 + $0x184] sm:$0xf] %v427
                %v429 = vld [vmem:[%s231 + $0x7a8] sm:$0xf]
                %430 = vst [vmem:[%s232 + $0x188] sm:$0xf] %v429
                %v431 = vld [vmem:[%s231 + $0x7bc] sm:$0xf]
                %432 = vst [vmem:[%s232 + $0x18c] sm:$0xf] %v431
                %v433 = vld [vmem:[%s231 + $0x7d0] sm:$0xf]
                %434 = vst [vmem:[%s232 + $0x190] sm:$0xf] %v433
                %v435 = vld [vmem:[%s231 + $0x7e4] sm:$0xf]
                %436 = vst [vmem:[%s232 + $0x194] sm:$0xf] %v435
                %v437 = vld [vmem:[%s231 + $0x7f8] sm:$0xf]
                %438 = vst [vmem:[%s232 + $0x198] sm:$0xf] %v437
                %v439 = vld [vmem:[%s231 + $0x80c] sm:$0xf]
                %440 = vst [vmem:[%s232 + $0x19c] sm:$0xf] %v439
                %v441 = vld [vmem:[%s231 + $0x820] sm:$0xf]
                %442 = vst [vmem:[%s232 + $0x1a0] sm:$0xf] %v441
                %v443 = vld [vmem:[%s231 + $0x834] sm:$0xf]
                %444 = vst [vmem:[%s232 + $0x1a4] sm:$0xf] %v443
                %v445 = vld [vmem:[%s231 + $0x848] sm:$0xf]
                %446 = vst [vmem:[%s232 + $0x1a8] sm:$0xf] %v445
                %v447 = vld [vmem:[%s231 + $0x85c] sm:$0xf]
                %448 = vst [vmem:[%s232 + $0x1ac] sm:$0xf] %v447
                %v449 = vld [vmem:[%s231 + $0x870] sm:$0xf]
                %450 = vst [vmem:[%s232 + $0x1b0] sm:$0xf] %v449
                %v451 = vld [vmem:[%s231 + $0x884] sm:$0xf]
                %452 = vst [vmem:[%s232 + $0x1b4] sm:$0xf] %v451
                %v453 = vld [vmem:[%s231 + $0x898] sm:$0xf]
                %454 = vst [vmem:[%s232 + $0x1b8] sm:$0xf] %v453
                %v455 = vld [vmem:[%s231 + $0x8ac] sm:$0xf]
                %456 = vst [vmem:[%s232 + $0x1bc] sm:$0xf] %v455
                %v457 = vld [vmem:[%s231 + $0x8c0] sm:$0xf]
                %458 = vst [vmem:[%s232 + $0x1c0] sm:$0xf] %v457
                %v459 = vld [vmem:[%s231 + $0x8d4] sm:$0xf]
                %460 = vst [vmem:[%s232 + $0x1c4] sm:$0xf] %v459
                %v461 = vld [vmem:[%s231 + $0x8e8] sm:$0xf]
                %462 = vst [vmem:[%s232 + $0x1c8] sm:$0xf] %v461
                %v463 = vld [vmem:[%s231 + $0x8fc] sm:$0xf]
                %464 = vst [vmem:[%s232 + $0x1cc] sm:$0xf] %v463
                %v465 = vld [vmem:[%s231 + $0x910] sm:$0xf]
                %466 = vst [vmem:[%s232 + $0x1d0] sm:$0xf] %v465
                %v467 = vld [vmem:[%s231 + $0x924] sm:$0xf]
                %468 = vst [vmem:[%s232 + $0x1d4] sm:$0xf] %v467
                %v469 = vld [vmem:[%s231 + $0x938] sm:$0xf]
                %470 = vst [vmem:[%s232 + $0x1d8] sm:$0xf] %v469
                %v471 = vld [vmem:[%s231 + $0x94c] sm:$0xf]
                %472 = vst [vmem:[%s232 + $0x1dc] sm:$0xf] %v471
                %v473 = vld [vmem:[%s231 + $0x960] sm:$0xf]
                %474 = vst [vmem:[%s232 + $0x1e0] sm:$0xf] %v473
                %v475 = vld [vmem:[%s231 + $0x974] sm:$0xf]
                %476 = vst [vmem:[%s232 + $0x1e4] sm:$0xf] %v475
                %v477 = vld [vmem:[%s231 + $0x988] sm:$0xf]
                %478 = vst [vmem:[%s232 + $0x1e8] sm:$0xf] %v477
                %v479 = vld [vmem:[%s231 + $0x99c] sm:$0xf]
                %480 = vst [vmem:[%s232 + $0x1ec] sm:$0xf] %v479
                %v481 = vld [vmem:[%s231 + $0x9b0] sm:$0xf]
                %482 = vst [vmem:[%s232 + $0x1f0] sm:$0xf] %v481
                %v483 = vld [vmem:[%s231 + $0x9c4] sm:$0xf]
                %484 = vst [vmem:[%s232 + $0x1f4] sm:$0xf] %v483
                %v485 = vld [vmem:[%s231 + $0x9d8] sm:$0xf]
                %486 = vst [vmem:[%s232 + $0x1f8] sm:$0xf] %v485
                %v487 = vld [vmem:[%s231 + $0x9ec] sm:$0xf]
                %488 = vst [vmem:[%s232 + $0x1fc] sm:$0xf] %v487
                %v489 = vld [vmem:[%s231 + $0xa00] sm:$0xf]
                %490 = vst [vmem:[%s232 + $0x200] sm:$0xf] %v489
                %v491 = vld [vmem:[%s231 + $0xa14] sm:$0xf]
                %492 = vst [vmem:[%s232 + $0x204] sm:$0xf] %v491
                %v493 = vld [vmem:[%s231 + $0xa28] sm:$0xf]
                %494 = vst [vmem:[%s232 + $0x208] sm:$0xf] %v493
                %v495 = vld [vmem:[%s231 + $0xa3c] sm:$0xf]
                %496 = vst [vmem:[%s232 + $0x20c] sm:$0xf] %v495
                %v497 = vld [vmem:[%s231 + $0xa50] sm:$0xf]
                %498 = vst [vmem:[%s232 + $0x210] sm:$0xf] %v497
                %v499 = vld [vmem:[%s231 + $0xa64] sm:$0xf]
                %500 = vst [vmem:[%s232 + $0x214] sm:$0xf] %v499
                %v501 = vld [vmem:[%s231 + $0xa78] sm:$0xf]
                %502 = vst [vmem:[%s232 + $0x218] sm:$0xf] %v501
                %v503 = vld [vmem:[%s231 + $0xa8c] sm:$0xf]
                %504 = vst [vmem:[%s232 + $0x21c] sm:$0xf] %v503
                %v505 = vld [vmem:[%s231 + $0xaa0] sm:$0xf]
                %506 = vst [vmem:[%s232 + $0x220] sm:$0xf] %v505
                %v507 = vld [vmem:[%s231 + $0xab4] sm:$0xf]
                %508 = vst [vmem:[%s232 + $0x224] sm:$0xf] %v507
                %v509 = vld [vmem:[%s231 + $0xac8] sm:$0xf]
                %510 = vst [vmem:[%s232 + $0x228] sm:$0xf] %v509
                %v511 = vld [vmem:[%s231 + $0xadc] sm:$0xf]
                %512 = vst [vmem:[%s232 + $0x22c] sm:$0xf] %v511
                %v513 = vld [vmem:[%s231 + $0xaf0] sm:$0xf]
                %514 = vst [vmem:[%s232 + $0x230] sm:$0xf] %v513
                %v515 = vld [vmem:[%s231 + $0xb04] sm:$0xf]
                %516 = vst [vmem:[%s232 + $0x234] sm:$0xf] %v515
                %v517 = vld [vmem:[%s231 + $0xb18] sm:$0xf]
                %518 = vst [vmem:[%s232 + $0x238] sm:$0xf] %v517
                %v519 = vld [vmem:[%s231 + $0xb2c] sm:$0xf]
                %520 = vst [vmem:[%s232 + $0x23c] sm:$0xf] %v519
                %v521 = vld [vmem:[%s231 + $0xb40] sm:$0xf]
                %522 = vst [vmem:[%s232 + $0x240] sm:$0xf] %v521
                %v523 = vld [vmem:[%s231 + $0xb54] sm:$0xf]
                %524 = vst [vmem:[%s232 + $0x244] sm:$0xf] %v523
                %v525 = vld [vmem:[%s231 + $0xb68] sm:$0xf]
                %526 = vst [vmem:[%s232 + $0x248] sm:$0xf] %v525
                %v527 = vld [vmem:[%s231 + $0xb7c] sm:$0xf]
                %528 = vst [vmem:[%s232 + $0x24c] sm:$0xf] %v527
                %v529 = vld [vmem:[%s231 + $0xb90] sm:$0xf]
                %530 = vst [vmem:[%s232 + $0x250] sm:$0xf] %v529
                %v531 = vld [vmem:[%s231 + $0xba4] sm:$0xf]
                %532 = vst [vmem:[%s232 + $0x254] sm:$0xf] %v531
                %v533 = vld [vmem:[%s231 + $0xbb8] sm:$0xf]
                %534 = vst [vmem:[%s232 + $0x258] sm:$0xf] %v533
                %v535 = vld [vmem:[%s231 + $0xbcc] sm:$0xf]
                %536 = vst [vmem:[%s232 + $0x25c] sm:$0xf] %v535
                %v537 = vld [vmem:[%s231 + $0xbe0] sm:$0xf]
                %538 = vst [vmem:[%s232 + $0x260] sm:$0xf] %v537
                %v539 = vld [vmem:[%s231 + $0xbf4] sm:$0xf]
                %540 = vst [vmem:[%s232 + $0x264] sm:$0xf] %v539
                %v541 = vld [vmem:[%s231 + $0xc08] sm:$0xf]
                %542 = vst [vmem:[%s232 + $0x268] sm:$0xf] %v541
                %v543 = vld [vmem:[%s231 + $0xc1c] sm:$0xf]
                %544 = vst [vmem:[%s232 + $0x26c] sm:$0xf] %v543
                %v545 = vld [vmem:[%s231 + $0xc30] sm:$0xf]
                %546 = vst [vmem:[%s232 + $0x270] sm:$0xf] %v545
                %v547 = vld [vmem:[%s231 + $0xc44] sm:$0xf]
                %548 = vst [vmem:[%s232 + $0x274] sm:$0xf] %v547
                %v549 = vld [vmem:[%s231 + $0xc58] sm:$0xf]
                %550 = vst [vmem:[%s232 + $0x278] sm:$0xf] %v549
                %v551 = vld [vmem:[%s231 + $0xc6c] sm:$0xf]
                %552 = vst [vmem:[%s232 + $0x27c] sm:$0xf] %v551
                %v553 = vld [vmem:[%s231 + $0xc80] sm:$0xf]
                %554 = vst [vmem:[%s232 + $0x280] sm:$0xf] %v553
                %v555 = vld [vmem:[%s231 + $0xc94] sm:$0xf]
                %556 = vst [vmem:[%s232 + $0x284] sm:$0xf] %v555
                %v557 = vld [vmem:[%s231 + $0xca8] sm:$0xf]
                %558 = vst [vmem:[%s232 + $0x288] sm:$0xf] %v557
                %v559 = vld [vmem:[%s231 + $0xcbc] sm:$0xf]
                %560 = vst [vmem:[%s232 + $0x28c] sm:$0xf] %v559
                %v561 = vld [vmem:[%s231 + $0xcd0] sm:$0xf]
                %562 = vst [vmem:[%s232 + $0x290] sm:$0xf] %v561
                %v563 = vld [vmem:[%s231 + $0xce4] sm:$0xf]
                %564 = vst [vmem:[%s232 + $0x294] sm:$0xf] %v563
                %v565 = vld [vmem:[%s231 + $0xcf8] sm:$0xf]
                %566 = vst [vmem:[%s232 + $0x298] sm:$0xf] %v565
                %v567 = vld [vmem:[%s231 + $0xd0c] sm:$0xf]
                %568 = vst [vmem:[%s232 + $0x29c] sm:$0xf] %v567
                %v569 = vld [vmem:[%s231 + $0xd20] sm:$0xf]
                %570 = vst [vmem:[%s232 + $0x2a0] sm:$0xf] %v569
                %v571 = vld [vmem:[%s231 + $0xd34] sm:$0xf]
                %572 = vst [vmem:[%s232 + $0x2a4] sm:$0xf] %v571
                %v573 = vld [vmem:[%s231 + $0xd48] sm:$0xf]
                %574 = vst [vmem:[%s232 + $0x2a8] sm:$0xf] %v573
                %v575 = vld [vmem:[%s231 + $0xd5c] sm:$0xf]
                %576 = vst [vmem:[%s232 + $0x2ac] sm:$0xf] %v575
                %v577 = vld [vmem:[%s231 + $0xd70] sm:$0xf]
                %578 = vst [vmem:[%s232 + $0x2b0] sm:$0xf] %v577
                %v579 = vld [vmem:[%s231 + $0xd84] sm:$0xf]
                %580 = vst [vmem:[%s232 + $0x2b4] sm:$0xf] %v579
                %v581 = vld [vmem:[%s231 + $0xd98] sm:$0xf]
                %582 = vst [vmem:[%s232 + $0x2b8] sm:$0xf] %v581
                %v583 = vld [vmem:[%s231 + $0xdac] sm:$0xf]
                %584 = vst [vmem:[%s232 + $0x2bc] sm:$0xf] %v583
                %v585 = vld [vmem:[%s231 + $0xdc0] sm:$0xf]
                %586 = vst [vmem:[%s232 + $0x2c0] sm:$0xf] %v585
                %v587 = vld [vmem:[%s231 + $0xdd4] sm:$0xf]
                %588 = vst [vmem:[%s232 + $0x2c4] sm:$0xf] %v587
                %v589 = vld [vmem:[%s231 + $0xde8] sm:$0xf]
                %590 = vst [vmem:[%s232 + $0x2c8] sm:$0xf] %v589
                %v591 = vld [vmem:[%s231 + $0xdfc] sm:$0xf]
                %592 = vst [vmem:[%s232 + $0x2cc] sm:$0xf] %v591
                %v593 = vld [vmem:[%s231 + $0xe10] sm:$0xf]
                %594 = vst [vmem:[%s232 + $0x2d0] sm:$0xf] %v593
                %v595 = vld [vmem:[%s231 + $0xe24] sm:$0xf]
                %596 = vst [vmem:[%s232 + $0x2d4] sm:$0xf] %v595
                %v597 = vld [vmem:[%s231 + $0xe38] sm:$0xf]
                %598 = vst [vmem:[%s232 + $0x2d8] sm:$0xf] %v597
                %v599 = vld [vmem:[%s231 + $0xe4c] sm:$0xf]
                %600 = vst [vmem:[%s232 + $0x2dc] sm:$0xf] %v599
                %v601 = vld [vmem:[%s231 + $0xe60] sm:$0xf]
                %602 = vst [vmem:[%s232 + $0x2e0] sm:$0xf] %v601
                %v603 = vld [vmem:[%s231 + $0xe74] sm:$0xf]
                %604 = vst [vmem:[%s232 + $0x2e4] sm:$0xf] %v603
                %v605 = vld [vmem:[%s231 + $0xe88] sm:$0xf]
                %606 = vst [vmem:[%s232 + $0x2e8] sm:$0xf] %v605
                %v607 = vld [vmem:[%s231 + $0xe9c] sm:$0xf]
                %608 = vst [vmem:[%s232 + $0x2ec] sm:$0xf] %v607
                %v609 = vld [vmem:[%s231 + $0xeb0] sm:$0xf]
                %610 = vst [vmem:[%s232 + $0x2f0] sm:$0xf] %v609
                %v611 = vld [vmem:[%s231 + $0xec4] sm:$0xf]
                %612 = vst [vmem:[%s232 + $0x2f4] sm:$0xf] %v611
                %v613 = vld [vmem:[%s231 + $0xed8] sm:$0xf]
                %614 = vst [vmem:[%s232 + $0x2f8] sm:$0xf] %v613
                %v615 = vld [vmem:[%s231 + $0xeec] sm:$0xf]
                %616 = vst [vmem:[%s232 + $0x2fc] sm:$0xf] %v615
                %v617 = vld [vmem:[%s231 + $0xf00] sm:$0xf]
                %618 = vst [vmem:[%s232 + $0x300] sm:$0xf] %v617
                %v619 = vld [vmem:[%s231 + $0xf14] sm:$0xf]
                %620 = vst [vmem:[%s232 + $0x304] sm:$0xf] %v619
                %v621 = vld [vmem:[%s231 + $0xf28] sm:$0xf]
                %622 = vst [vmem:[%s232 + $0x308] sm:$0xf] %v621
                %v623 = vld [vmem:[%s231 + $0xf3c] sm:$0xf]
                %624 = vst [vmem:[%s232 + $0x30c] sm:$0xf] %v623
                %v625 = vld [vmem:[%s231 + $0xf50] sm:$0xf]
                %626 = vst [vmem:[%s232 + $0x310] sm:$0xf] %v625
                %v627 = vld [vmem:[%s231 + $0xf64] sm:$0xf]
                %628 = vst [vmem:[%s232 + $0x314] sm:$0xf] %v627
                %v629 = vld [vmem:[%s231 + $0xf78] sm:$0xf]
                %630 = vst [vmem:[%s232 + $0x318] sm:$0xf] %v629
                %v631 = vld [vmem:[%s231 + $0xf8c] sm:$0xf]
                %632 = vst [vmem:[%s232 + $0x31c] sm:$0xf] %v631
                %v633 = vld [vmem:[%s231 + $0xfa0] sm:$0xf]
                %634 = vst [vmem:[%s232 + $0x320] sm:$0xf] %v633
                %v635 = vld [vmem:[%s231 + $0xfb4] sm:$0xf]
                %636 = vst [vmem:[%s232 + $0x324] sm:$0xf] %v635
                %v637 = vld [vmem:[%s231 + $0xfc8] sm:$0xf]
                %638 = vst [vmem:[%s232 + $0x328] sm:$0xf] %v637
                %v639 = vld [vmem:[%s231 + $0xfdc] sm:$0xf]
                %640 = vst [vmem:[%s232 + $0x32c] sm:$0xf] %v639
                %v641 = vld [vmem:[%s231 + $0xff0] sm:$0xf]
                %642 = vst [vmem:[%s232 + $0x330] sm:$0xf] %v641
                %v643 = vld [vmem:[%s231 + $0x1004] sm:$0xf]
                %644 = vst [vmem:[%s232 + $0x334] sm:$0xf] %v643
                %v645 = vld [vmem:[%s231 + $0x1018] sm:$0xf]
                %646 = vst [vmem:[%s232 + $0x338] sm:$0xf] %v645
                %v647 = vld [vmem:[%s231 + $0x102c] sm:$0xf]
                %648 = vst [vmem:[%s232 + $0x33c] sm:$0xf] %v647
                %v649 = vld [vmem:[%s231 + $0x1040] sm:$0xf]
                %650 = vst [vmem:[%s232 + $0x340] sm:$0xf] %v649
                %v651 = vld [vmem:[%s231 + $0x1054] sm:$0xf]
                %652 = vst [vmem:[%s232 + $0x344] sm:$0xf] %v651
                %v653 = vld [vmem:[%s231 + $0x1068] sm:$0xf]
                %654 = vst [vmem:[%s232 + $0x348] sm:$0xf] %v653
                %v655 = vld [vmem:[%s231 + $0x107c] sm:$0xf]
                %656 = vst [vmem:[%s232 + $0x34c] sm:$0xf] %v655
                %v657 = vld [vmem:[%s231 + $0x1090] sm:$0xf]
                %658 = vst [vmem:[%s232 + $0x350] sm:$0xf] %v657
                %v659 = vld [vmem:[%s231 + $0x10a4] sm:$0xf]
                %660 = vst [vmem:[%s232 + $0x354] sm:$0xf] %v659
                %v661 = vld [vmem:[%s231 + $0x10b8] sm:$0xf]
                %662 = vst [vmem:[%s232 + $0x358] sm:$0xf] %v661
                %v663 = vld [vmem:[%s231 + $0x10cc] sm:$0xf]
                %664 = vst [vmem:[%s232 + $0x35c] sm:$0xf] %v663
                %v665 = vld [vmem:[%s231 + $0x10e0] sm:$0xf]
                %666 = vst [vmem:[%s232 + $0x360] sm:$0xf] %v665
                %v667 = vld [vmem:[%s231 + $0x10f4] sm:$0xf]
                %668 = vst [vmem:[%s232 + $0x364] sm:$0xf] %v667
                %v669 = vld [vmem:[%s231 + $0x1108] sm:$0xf]
                %670 = vst [vmem:[%s232 + $0x368] sm:$0xf] %v669
                %v671 = vld [vmem:[%s231 + $0x111c] sm:$0xf]
                %672 = vst [vmem:[%s232 + $0x36c] sm:$0xf] %v671
                %v673 = vld [vmem:[%s231 + $0x1130] sm:$0xf]
                %674 = vst [vmem:[%s232 + $0x370] sm:$0xf] %v673
                %v675 = vld [vmem:[%s231 + $0x1144] sm:$0xf]
                %676 = vst [vmem:[%s232 + $0x374] sm:$0xf] %v675
                %v677 = vld [vmem:[%s231 + $0x1158] sm:$0xf]
                %678 = vst [vmem:[%s232 + $0x378] sm:$0xf] %v677
                %v679 = vld [vmem:[%s231 + $0x116c] sm:$0xf]
                %680 = vst [vmem:[%s232 + $0x37c] sm:$0xf] %v679
                %v681 = vld [vmem:[%s231 + $0x1180] sm:$0xf]
                %682 = vst [vmem:[%s232 + $0x380] sm:$0xf] %v681
                %v683 = vld [vmem:[%s231 + $0x1194] sm:$0xf]
                %684 = vst [vmem:[%s232 + $0x384] sm:$0xf] %v683
                %v685 = vld [vmem:[%s231 + $0x11a8] sm:$0xf]
                %686 = vst [vmem:[%s232 + $0x388] sm:$0xf] %v685
                %v687 = vld [vmem:[%s231 + $0x11bc] sm:$0xf]
                %688 = vst [vmem:[%s232 + $0x38c] sm:$0xf] %v687
                %v689 = vld [vmem:[%s231 + $0x11d0] sm:$0xf]
                %690 = vst [vmem:[%s232 + $0x390] sm:$0xf] %v689
                %v691 = vld [vmem:[%s231 + $0x11e4] sm:$0xf]
                %692 = vst [vmem:[%s232 + $0x394] sm:$0xf] %v691
                %v693 = vld [vmem:[%s231 + $0x11f8] sm:$0xf]
                %694 = vst [vmem:[%s232 + $0x398] sm:$0xf] %v693
                %v695 = vld [vmem:[%s231 + $0x120c] sm:$0xf]
                %696 = vst [vmem:[%s232 + $0x39c] sm:$0xf] %v695
                %v697 = vld [vmem:[%s231 + $0x1220] sm:$0xf]
                %698 = vst [vmem:[%s232 + $0x3a0] sm:$0xf] %v697
                %v699 = vld [vmem:[%s231 + $0x1234] sm:$0xf]
                %700 = vst [vmem:[%s232 + $0x3a4] sm:$0xf] %v699
                %v701 = vld [vmem:[%s231 + $0x1248] sm:$0xf]
                %702 = vst [vmem:[%s232 + $0x3a8] sm:$0xf] %v701
                %v703 = vld [vmem:[%s231 + $0x125c] sm:$0xf]
                %704 = vst [vmem:[%s232 + $0x3ac] sm:$0xf] %v703
                %v705 = vld [vmem:[%s231 + $0x1270] sm:$0xf]
                %706 = vst [vmem:[%s232 + $0x3b0] sm:$0xf] %v705
                %v707 = vld [vmem:[%s231 + $0x1284] sm:$0xf]
                %708 = vst [vmem:[%s232 + $0x3b4] sm:$0xf] %v707
                %v709 = vld [vmem:[%s231 + $0x1298] sm:$0xf]
                %710 = vst [vmem:[%s232 + $0x3b8] sm:$0xf] %v709
                %v711 = vld [vmem:[%s231 + $0x12ac] sm:$0xf]
                %712 = vst [vmem:[%s232 + $0x3bc] sm:$0xf] %v711
                %v713 = vld [vmem:[%s231 + $0x12c0] sm:$0xf]
                %714 = vst [vmem:[%s232 + $0x3c0] sm:$0xf] %v713
                %v715 = vld [vmem:[%s231 + $0x12d4] sm:$0xf]
                %716 = vst [vmem:[%s232 + $0x3c4] sm:$0xf] %v715
                %v717 = vld [vmem:[%s231 + $0x12e8] sm:$0xf]
                %718 = vst [vmem:[%s232 + $0x3c8] sm:$0xf] %v717
                %v719 = vld [vmem:[%s231 + $0x12fc] sm:$0xf]
                %720 = vst [vmem:[%s232 + $0x3cc] sm:$0xf] %v719
                %v721 = vld [vmem:[%s231 + $0x1310] sm:$0xf]
                %722 = vst [vmem:[%s232 + $0x3d0] sm:$0xf] %v721
                %v723 = vld [vmem:[%s231 + $0x1324] sm:$0xf]
                %724 = vst [vmem:[%s232 + $0x3d4] sm:$0xf] %v723
                %v725 = vld [vmem:[%s231 + $0x1338] sm:$0xf]
                %726 = vst [vmem:[%s232 + $0x3d8] sm:$0xf] %v725
                %v727 = vld [vmem:[%s231 + $0x134c] sm:$0xf]
                %728 = vst [vmem:[%s232 + $0x3dc] sm:$0xf] %v727
                %v729 = vld [vmem:[%s231 + $0x1360] sm:$0xf]
                %730 = vst [vmem:[%s232 + $0x3e0] sm:$0xf] %v729
                %v731 = vld [vmem:[%s231 + $0x1374] sm:$0xf]
                %732 = vst [vmem:[%s232 + $0x3e4] sm:$0xf] %v731
                %v733 = vld [vmem:[%s231 + $0x1388] sm:$0xf]
                %734 = vst [vmem:[%s232 + $0x3e8] sm:$0xf] %v733
                %v735 = vld [vmem:[%s231 + $0x139c] sm:$0xf]
                %736 = vst [vmem:[%s232 + $0x3ec] sm:$0xf] %v735
                %v737 = vld [vmem:[%s231 + $0x13b0] sm:$0xf]
                %738 = vst [vmem:[%s232 + $0x3f0] sm:$0xf] %v737
                %v739 = vld [vmem:[%s231 + $0x13c4] sm:$0xf]
                %740 = vst [vmem:[%s232 + $0x3f4] sm:$0xf] %v739
                %v741 = vld [vmem:[%s231 + $0x13d8] sm:$0xf]
                %742 = vst [vmem:[%s232 + $0x3f8] sm:$0xf] %v741
                %v743 = vld [vmem:[%s231 + $0x13ec] sm:$0xf]
                %744 = vst [vmem:[%s232 + $0x3fc] sm:$0xf] %v743
              $region49: #{generator_head_forward.1} parent=43 // loop_footer
                %s230 = sadd.s32 1, %s226
              $region50: #{generator_head_forward.1} parent=43 // loop_footer_branch
                %225 = sbr.rel target = $region46
              $region51: #{generator_head_forward.1} parent=43 // loop_exit
                _
            $region44: #{generator_head_forward.1} parent=35 // pred_fallthru
              _
          $region36: #{generator_head_forward.1} parent=31 // pred_fallthru
            _
          %1276 = vnop
        $region32: #{generator_head_forward.1} parent=27 // pred_fallthru
          _
        // Predicated region
        $region70: #{generator_head_forward.1} parent=27 // pred_check
          %p1277 = pneg %p140
        $region71: #{generator_head_forward.1} parent=27 // pred_check_branch
          %1279 = sbr.rel (%p1277) target = $region73
        $region72: #{generator_head_forward.1} parent=27 // pred_region
          %p1280 = scmp.lt.s32.totalorder %s22, 4
          %s1281 = scalar_select %p1280, %s22, 4
          %s1282 = scalar_lea.vmem %s4, %s1281
        $region73: #{generator_head_forward.1} parent=27 // pred_fallthru
          _
      $region28: #{generator_head_forward.1} parent=5 // pred_fallthru
        _
      %p1283 = scmp.le.s32.totalorder 1, %s14
      %p1284 = scmp.lt.s32.totalorder %s14, 6
      %p1285 = pnand %p1283, %p1284
      %p1286 = pneg %p1285
      // Predicated region
      $region74: #{generator_head_forward.1} parent=5 // pred_check
        _
      $region75: #{generator_head_forward.1} parent=5 // pred_check_branch
        %1288 = sbr.rel (%p1285) target = $region77
      $region76: #{generator_head_forward.1} parent=5 // pred_region
        %s1289 = ssub.s32 %s14, 1
        %s1290 = sand.u32 %s107, 1
        %s1291 = sand.u32 %s107, 1
        %s1292 = smul.addr %s1291, 1024
        %s1293 = scalar_lea.vmem [#allocation3], %s1292
        // Predicated region
        $region78: #{generator_head_forward.1} parent=76 // pred_check
          %p1294 = pneg %p120
        $region79: #{generator_head_forward.1} parent=76 // pred_check_branch
          %1296 = sbr.rel (%p1294) target = $region81
        $region80: #{generator_head_forward.1} parent=76 // pred_region
          _
        $region81: #{generator_head_forward.1} parent=76 // pred_fallthru
          _
        %s1297 = smul.u32 2, %s23
        %p1298 = scmp.lt.s32.totalorder %s1297, 1
        %s1299 = scalar_select %p1298, %s1297, 1
        %s1300 = smul.addr %s1299, 2
        %s1301 = smul.addr %s1300, 4
        %s1302 = scalar_lea.vmem %s0, %s1301
        %p1303 = pneg %p52
        %p1304 = pneg %p49
        %p1305 = pneg %p73
        %p1306 = pneg %p70
        %p1307 = pneg %p94
        %p1308 = pneg %p91
        %s1309 = sand.u32 %s107, 1
        %s1310 = sand.u32 %s107, 1
        %s1311 = smul.addr %s1310, 1024
        %s1312 = scalar_lea.vmem [#allocation3], %s1311
        %p1313 = pneg %p120
        %p1314 = pneg %p117
        %p1315 = scmp.lt.s32.totalorder %s24, 4
        %s1316 = scalar_select %p1315, %s24, 4
        %s1317 = scalar_lea.vmem %s4, %s1316
        %p1318 = pneg %p146
        %p1319 = pneg %p143
        %p1320 = pneg %p174
        %p1321 = pneg %p171
        %s1322 = sand.u32 %s161, 1
        %s1323 = scalar_lea.sflag [#allocation5], %s1322
        %s1324 = sand.u32 %s161, 1
        %s1325 = smul.addr %s1324, 16
        %s1326 = scalar_lea.vmem [#allocation4], %s1325
        %s1327 = smul.u32 2, %s23
        %p1328 = scmp.lt.s32.totalorder %s1327, 1
        %s1329 = scalar_select %p1328, %s1327, 1
        %s1330 = smul.addr %s1329, 2
        %s1331 = smul.addr %s1330, 4
        %s1332 = scalar_lea.vmem %s0, %s1331
        %s1333 = smul.u32 2, %s23
        %p1334 = scmp.lt.s32.totalorder %s24, 4
        %s1335 = scalar_select %p1334, %s24, 4
        %s1336 = scalar_lea.vmem %s4, %s1335
        %s1337 = smul.u32 2, %s23
        %p1339 = scmp.eq.s32.totalorder %s24, 0
        // Predicated region
        $region82: #{generator_head_forward.1} parent=76 // pred_check
          %p1340 = pneg %p1339
        $region83: #{generator_head_forward.1} parent=76 // pred_check_branch
          %1342 = sbr.rel (%p1340) target = $region85
        $region84: #{generator_head_forward.1} parent=76 // pred_region
          %v1343 = vld [vmem:[%s1332] sm:$0xff]
          %v1344 = vld [vmem:[%s1332 + $0x8] sm:$0xff]
          %v1345 = vld [vmem:[%s1] sm:$0xff]
          %v1346 = vld [vmem:[%s1 + $0x8] sm:$0xff]
          %v1347 = vld [vmem:[%s1 + $0x10] sm:$0xff]
          %v1348 = vld [vmem:[%s1 + $0x18] sm:$0xff]
          %v1349 = vld [vmem:[%s1 + $0x20] sm:$0xff]
          %v1350 = vld [vmem:[%s1 + $0x28] sm:$0xff]
          %v1351 = vld [vmem:[%s1 + $0x30] sm:$0xff]
          %v1352 = vld [vmem:[%s1 + $0x38] sm:$0xff]
          %v1353 = vld [vmem:[%s1 + $0x40] sm:$0xff]
          %v1354 = vld [vmem:[%s1 + $0x48] sm:$0xff]
          %v1355 = vld [vmem:[%s1 + $0x50] sm:$0xff]
          %v1356 = vld [vmem:[%s1 + $0x58] sm:$0xff]
          %v1357 = vld [vmem:[%s1 + $0x60] sm:$0xff]
          %v1358 = vld [vmem:[%s1 + $0x68] sm:$0xff]
          %v1359 = vld [vmem:[%s1 + $0x70] sm:$0xff]
          %v1360 = vld [vmem:[%s1 + $0x78] sm:$0xff]
          %v1361 = vld [vmem:[%s1 + $0x80] sm:$0xff]
          %v1362 = vld [vmem:[%s1 + $0x88] sm:$0xff]
          %v1363 = vld [vmem:[%s1 + $0x90] sm:$0xff]
          %v1364 = vld [vmem:[%s1 + $0x98] sm:$0xff]
          %v1365 = vld [vmem:[%s1 + $0xa0] sm:$0xff]
          %v1366 = vld [vmem:[%s1 + $0xa8] sm:$0xff]
          %v1367 = vld [vmem:[%s1 + $0xb0] sm:$0xff]
          %v1368 = vld [vmem:[%s1 + $0xb8] sm:$0xff]
          %v1369 = vld [vmem:[%s1 + $0xc0] sm:$0xff]
          %v1370 = vld [vmem:[%s1 + $0xc8] sm:$0xff]
          %v1371 = vld [vmem:[%s1 + $0xd0] sm:$0xff]
          %v1372 = vld [vmem:[%s1 + $0xd8] sm:$0xff]
          %v1373 = vld [vmem:[%s1 + $0xe0] sm:$0xff]
          %v1374 = vld [vmem:[%s1 + $0xe8] sm:$0xff]
          %v1375 = vld [vmem:[%s1 + $0xf0] sm:$0xff]
          %v1376 = vld [vmem:[%s1 + $0xf8] sm:$0xff]
          %v1377 = vld [vmem:[%s1 + $0x100] sm:$0xff]
          %v1378 = vld [vmem:[%s1 + $0x108] sm:$0xff]
          %v1379 = vld [vmem:[%s1 + $0x110] sm:$0xff]
          %v1380 = vld [vmem:[%s1 + $0x118] sm:$0xff]
          %v1381 = vld [vmem:[%s1 + $0x120] sm:$0xff]
          %v1382 = vld [vmem:[%s1 + $0x128] sm:$0xff]
          %v1383 = vld [vmem:[%s1 + $0x130] sm:$0xff]
          %v1384 = vld [vmem:[%s1 + $0x138] sm:$0xff]
          %v1385 = vld [vmem:[%s1 + $0x140] sm:$0xff]
          %v1386 = vld [vmem:[%s1 + $0x148] sm:$0xff]
          %v1387 = vld [vmem:[%s1 + $0x150] sm:$0xff]
          %v1388 = vld [vmem:[%s1 + $0x158] sm:$0xff]
          %v1389 = vld [vmem:[%s1 + $0x160] sm:$0xff]
          %v1390 = vld [vmem:[%s1 + $0x168] sm:$0xff]
          %v1391 = vld [vmem:[%s1 + $0x170] sm:$0xff]
          %v1392 = vld [vmem:[%s1 + $0x178] sm:$0xff]
          %v1393 = vld [vmem:[%s1 + $0x180] sm:$0xff]
          %v1394 = vld [vmem:[%s1 + $0x188] sm:$0xff]
          %v1395 = vld [vmem:[%s1 + $0x190] sm:$0xff]
          %v1396 = vld [vmem:[%s1 + $0x198] sm:$0xff]
          %v1397 = vld [vmem:[%s1 + $0x1a0] sm:$0xff]
          %v1398 = vld [vmem:[%s1 + $0x1a8] sm:$0xff]
          %v1399 = vld [vmem:[%s1 + $0x1b0] sm:$0xff]
          %v1400 = vld [vmem:[%s1 + $0x1b8] sm:$0xff]
          %v1401 = vld [vmem:[%s1 + $0x1c0] sm:$0xff]
          %v1402 = vld [vmem:[%s1 + $0x1c8] sm:$0xff]
          %v1403 = vld [vmem:[%s1 + $0x1d0] sm:$0xff]
          %v1404 = vld [vmem:[%s1 + $0x1d8] sm:$0xff]
          %v1405 = vld [vmem:[%s1 + $0x1e0] sm:$0xff]
          %v1406 = vld [vmem:[%s1 + $0x1e8] sm:$0xff]
          %v1407 = vld [vmem:[%s1 + $0x1f0] sm:$0xff]
          %v1408 = vld [vmem:[%s1 + $0x1f8] sm:$0xff]
          %v1409 = vld [vmem:[%s1 + $0x200] sm:$0xff]
          %v1410 = vld [vmem:[%s1 + $0x208] sm:$0xff]
          %v1411 = vld [vmem:[%s1 + $0x210] sm:$0xff]
          %v1412 = vld [vmem:[%s1 + $0x218] sm:$0xff]
          %v1413 = vld [vmem:[%s1 + $0x220] sm:$0xff]
          %v1414 = vld [vmem:[%s1 + $0x228] sm:$0xff]
          %v1415 = vld [vmem:[%s1 + $0x230] sm:$0xff]
          %v1416 = vld [vmem:[%s1 + $0x238] sm:$0xff]
          %v1417 = vld [vmem:[%s1 + $0x240] sm:$0xff]
          %v1418 = vld [vmem:[%s1 + $0x248] sm:$0xff]
          %v1419 = vld [vmem:[%s1 + $0x250] sm:$0xff]
          %v1420 = vld [vmem:[%s1 + $0x258] sm:$0xff]
          %v1421 = vld [vmem:[%s1 + $0x260] sm:$0xff]
          %v1422 = vld [vmem:[%s1 + $0x268] sm:$0xff]
          %v1423 = vld [vmem:[%s1 + $0x270] sm:$0xff]
          %v1424 = vld [vmem:[%s1 + $0x278] sm:$0xff]
          %v1425 = vld [vmem:[%s1 + $0x280] sm:$0xff]
          %v1426 = vld [vmem:[%s1 + $0x288] sm:$0xff]
          %v1427 = vld [vmem:[%s1 + $0x290] sm:$0xff]
          %v1428 = vld [vmem:[%s1 + $0x298] sm:$0xff]
          %v1429 = vld [vmem:[%s1 + $0x2a0] sm:$0xff]
          %v1430 = vld [vmem:[%s1 + $0x2a8] sm:$0xff]
          %v1431 = vld [vmem:[%s1 + $0x2b0] sm:$0xff]
          %v1432 = vld [vmem:[%s1 + $0x2b8] sm:$0xff]
          %v1433 = vld [vmem:[%s1 + $0x2c0] sm:$0xff]
          %v1434 = vld [vmem:[%s1 + $0x2c8] sm:$0xff]
          %v1435 = vld [vmem:[%s1 + $0x2d0] sm:$0xff]
          %v1436 = vld [vmem:[%s1 + $0x2d8] sm:$0xff]
          %v1437 = vld [vmem:[%s1 + $0x2e0] sm:$0xff]
          %v1438 = vld [vmem:[%s1 + $0x2e8] sm:$0xff]
          %v1439 = vld [vmem:[%s1 + $0x2f0] sm:$0xff]
          %v1440 = vld [vmem:[%s1 + $0x2f8] sm:$0xff]
          %v1441 = vld [vmem:[%s1 + $0x300] sm:$0xff]
          %v1442 = vld [vmem:[%s1 + $0x308] sm:$0xff]
          %v1443 = vld [vmem:[%s1 + $0x310] sm:$0xff]
          %v1444 = vld [vmem:[%s1 + $0x318] sm:$0xff]
          %v1445 = vld [vmem:[%s1 + $0x320] sm:$0xff]
          %v1446 = vld [vmem:[%s1 + $0x328] sm:$0xff]
          %v1447 = vld [vmem:[%s1 + $0x330] sm:$0xff]
          %v1448 = vld [vmem:[%s1 + $0x338] sm:$0xff]
          %v1449 = vld [vmem:[%s1 + $0x340] sm:$0xff]
          %v1450 = vld [vmem:[%s1 + $0x348] sm:$0xff]
          %v1451 = vld [vmem:[%s1 + $0x350] sm:$0xff]
          %v1452 = vld [vmem:[%s1 + $0x358] sm:$0xff]
          %v1453 = vld [vmem:[%s1 + $0x360] sm:$0xff]
          %v1454 = vld [vmem:[%s1 + $0x368] sm:$0xff]
          %v1455 = vld [vmem:[%s1 + $0x370] sm:$0xff]
          %v1456 = vld [vmem:[%s1 + $0x378] sm:$0xff]
          %v1457 = vld [vmem:[%s1 + $0x380] sm:$0xff]
          %v1458 = vld [vmem:[%s1 + $0x388] sm:$0xff]
          %v1459 = vld [vmem:[%s1 + $0x390] sm:$0xff]
          %v1460 = vld [vmem:[%s1 + $0x398] sm:$0xff]
          %v1461 = vld [vmem:[%s1 + $0x3a0] sm:$0xff]
          %v1462 = vld [vmem:[%s1 + $0x3a8] sm:$0xff]
          %v1463 = vld [vmem:[%s1 + $0x3b0] sm:$0xff]
          %v1464 = vld [vmem:[%s1 + $0x3b8] sm:$0xff]
          %v1465 = vld [vmem:[%s1 + $0x3c0] sm:$0xff]
          %v1466 = vld [vmem:[%s1 + $0x3c8] sm:$0xff]
          %v1467 = vld [vmem:[%s1 + $0x3d0] sm:$0xff]
          %v1468 = vld [vmem:[%s1 + $0x3d8] sm:$0xff]
          %v1469 = vld [vmem:[%s1 + $0x3e0] sm:$0xff]
          %v1470 = vld [vmem:[%s1 + $0x3e8] sm:$0xff]
          %v1471 = vld [vmem:[%s1 + $0x3f0] sm:$0xff]
          %v1472 = vld [vmem:[%s1 + $0x3f8] sm:$0xff]
          %v1473 = vld [vmem:[%s1 + $0x400] sm:$0xff]
          %v1474 = vld [vmem:[%s1 + $0x408] sm:$0xff]
          %v1475 = vld [vmem:[%s1 + $0x410] sm:$0xff]
          %v1476 = vld [vmem:[%s1 + $0x418] sm:$0xff]
          %v1477 = vld [vmem:[%s1 + $0x420] sm:$0xff]
          %v1478 = vld [vmem:[%s1 + $0x428] sm:$0xff]
          %v1479 = vld [vmem:[%s1 + $0x430] sm:$0xff]
          %v1480 = vld [vmem:[%s1 + $0x438] sm:$0xff]
          %v1481 = vld [vmem:[%s1 + $0x440] sm:$0xff]
          %v1482 = vld [vmem:[%s1 + $0x448] sm:$0xff]
          %v1483 = vld [vmem:[%s1 + $0x450] sm:$0xff]
          %v1484 = vld [vmem:[%s1 + $0x458] sm:$0xff]
          %v1485 = vld [vmem:[%s1 + $0x460] sm:$0xff]
          %v1486 = vld [vmem:[%s1 + $0x468] sm:$0xff]
          %v1487 = vld [vmem:[%s1 + $0x470] sm:$0xff]
          %v1488 = vld [vmem:[%s1 + $0x478] sm:$0xff]
          %v1489 = vld [vmem:[%s1 + $0x480] sm:$0xff]
          %v1490 = vld [vmem:[%s1 + $0x488] sm:$0xff]
          %v1491 = vld [vmem:[%s1 + $0x490] sm:$0xff]
          %v1492 = vld [vmem:[%s1 + $0x498] sm:$0xff]
          %v1493 = vld [vmem:[%s1 + $0x4a0] sm:$0xff]
          %v1494 = vld [vmem:[%s1 + $0x4a8] sm:$0xff]
          %v1495 = vld [vmem:[%s1 + $0x4b0] sm:$0xff]
          %v1496 = vld [vmem:[%s1 + $0x4b8] sm:$0xff]
          %v1497 = vld [vmem:[%s1 + $0x4c0] sm:$0xff]
          %v1498 = vld [vmem:[%s1 + $0x4c8] sm:$0xff]
          %v1499 = vld [vmem:[%s1 + $0x4d0] sm:$0xff]
          %v1500 = vld [vmem:[%s1 + $0x4d8] sm:$0xff]
          %v1501 = vld [vmem:[%s1 + $0x4e0] sm:$0xff]
          %v1502 = vld [vmem:[%s1 + $0x4e8] sm:$0xff]
          %v1503 = vld [vmem:[%s1 + $0x4f0] sm:$0xff]
          %v1504 = vld [vmem:[%s1 + $0x4f8] sm:$0xff]
          %v1505 = vld [vmem:[%s1 + $0x500] sm:$0xff]
          %v1506 = vld [vmem:[%s1 + $0x508] sm:$0xff]
          %v1507 = vld [vmem:[%s1 + $0x510] sm:$0xff]
          %v1508 = vld [vmem:[%s1 + $0x518] sm:$0xff]
          %v1509 = vld [vmem:[%s1 + $0x520] sm:$0xff]
          %v1510 = vld [vmem:[%s1 + $0x528] sm:$0xff]
          %v1511 = vld [vmem:[%s1 + $0x530] sm:$0xff]
          %v1512 = vld [vmem:[%s1 + $0x538] sm:$0xff]
          %v1513 = vld [vmem:[%s1 + $0x540] sm:$0xff]
          %v1514 = vld [vmem:[%s1 + $0x548] sm:$0xff]
          %v1515 = vld [vmem:[%s1 + $0x550] sm:$0xff]
          %v1516 = vld [vmem:[%s1 + $0x558] sm:$0xff]
          %v1517 = vld [vmem:[%s1 + $0x560] sm:$0xff]
          %v1518 = vld [vmem:[%s1 + $0x568] sm:$0xff]
          %v1519 = vld [vmem:[%s1 + $0x570] sm:$0xff]
          %v1520 = vld [vmem:[%s1 + $0x578] sm:$0xff]
          %v1521 = vld [vmem:[%s1 + $0x580] sm:$0xff]
          %v1522 = vld [vmem:[%s1 + $0x588] sm:$0xff]
          %v1523 = vld [vmem:[%s1 + $0x590] sm:$0xff]
          %v1524 = vld [vmem:[%s1 + $0x598] sm:$0xff]
          %v1525 = vld [vmem:[%s1 + $0x5a0] sm:$0xff]
          %v1526 = vld [vmem:[%s1 + $0x5a8] sm:$0xff]
          %v1527 = vld [vmem:[%s1 + $0x5b0] sm:$0xff]
          %v1528 = vld [vmem:[%s1 + $0x5b8] sm:$0xff]
          %v1529 = vld [vmem:[%s1 + $0x5c0] sm:$0xff]
          %v1530 = vld [vmem:[%s1 + $0x5c8] sm:$0xff]
          %v1531 = vld [vmem:[%s1 + $0x5d0] sm:$0xff]
          %v1532 = vld [vmem:[%s1 + $0x5d8] sm:$0xff]
          %v1533 = vld [vmem:[%s1 + $0x5e0] sm:$0xff]
          %v1534 = vld [vmem:[%s1 + $0x5e8] sm:$0xff]
          %v1535 = vld [vmem:[%s1 + $0x5f0] sm:$0xff]
          %v1536 = vld [vmem:[%s1 + $0x5f8] sm:$0xff]
          %v1537 = vld [vmem:[%s1 + $0x600] sm:$0xff]
          %v1538 = vld [vmem:[%s1 + $0x608] sm:$0xff]
          %v1539 = vld [vmem:[%s1 + $0x610] sm:$0xff]
          %v1540 = vld [vmem:[%s1 + $0x618] sm:$0xff]
          %v1541 = vld [vmem:[%s1 + $0x620] sm:$0xff]
          %v1542 = vld [vmem:[%s1 + $0x628] sm:$0xff]
          %v1543 = vld [vmem:[%s1 + $0x630] sm:$0xff]
          %v1544 = vld [vmem:[%s1 + $0x638] sm:$0xff]
          %v1545 = vld [vmem:[%s1 + $0x640] sm:$0xff]
          %v1546 = vld [vmem:[%s1 + $0x648] sm:$0xff]
          %v1547 = vld [vmem:[%s1 + $0x650] sm:$0xff]
          %v1548 = vld [vmem:[%s1 + $0x658] sm:$0xff]
          %v1549 = vld [vmem:[%s1 + $0x660] sm:$0xff]
          %v1550 = vld [vmem:[%s1 + $0x668] sm:$0xff]
          %v1551 = vld [vmem:[%s1 + $0x670] sm:$0xff]
          %v1552 = vld [vmem:[%s1 + $0x678] sm:$0xff]
          %v1553 = vld [vmem:[%s1 + $0x680] sm:$0xff]
          %v1554 = vld [vmem:[%s1 + $0x688] sm:$0xff]
          %v1555 = vld [vmem:[%s1 + $0x690] sm:$0xff]
          %v1556 = vld [vmem:[%s1 + $0x698] sm:$0xff]
          %v1557 = vld [vmem:[%s1 + $0x6a0] sm:$0xff]
          %v1558 = vld [vmem:[%s1 + $0x6a8] sm:$0xff]
          %v1559 = vld [vmem:[%s1 + $0x6b0] sm:$0xff]
          %v1560 = vld [vmem:[%s1 + $0x6b8] sm:$0xff]
          %v1561 = vld [vmem:[%s1 + $0x6c0] sm:$0xff]
          %v1562 = vld [vmem:[%s1 + $0x6c8] sm:$0xff]
          %v1563 = vld [vmem:[%s1 + $0x6d0] sm:$0xff]
          %v1564 = vld [vmem:[%s1 + $0x6d8] sm:$0xff]
          %v1565 = vld [vmem:[%s1 + $0x6e0] sm:$0xff]
          %v1566 = vld [vmem:[%s1 + $0x6e8] sm:$0xff]
          %v1567 = vld [vmem:[%s1 + $0x6f0] sm:$0xff]
          %v1568 = vld [vmem:[%s1 + $0x6f8] sm:$0xff]
          %v1569 = vld [vmem:[%s1 + $0x700] sm:$0xff]
          %v1570 = vld [vmem:[%s1 + $0x708] sm:$0xff]
          %v1571 = vld [vmem:[%s1 + $0x710] sm:$0xff]
          %v1572 = vld [vmem:[%s1 + $0x718] sm:$0xff]
          %v1573 = vld [vmem:[%s1 + $0x720] sm:$0xff]
          %v1574 = vld [vmem:[%s1 + $0x728] sm:$0xff]
          %v1575 = vld [vmem:[%s1 + $0x730] sm:$0xff]
          %v1576 = vld [vmem:[%s1 + $0x738] sm:$0xff]
          %v1577 = vld [vmem:[%s1 + $0x740] sm:$0xff]
          %v1578 = vld [vmem:[%s1 + $0x748] sm:$0xff]
          %v1579 = vld [vmem:[%s1 + $0x750] sm:$0xff]
          %v1580 = vld [vmem:[%s1 + $0x758] sm:$0xff]
          %v1581 = vld [vmem:[%s1 + $0x760] sm:$0xff]
          %v1582 = vld [vmem:[%s1 + $0x768] sm:$0xff]
          %v1583 = vld [vmem:[%s1 + $0x770] sm:$0xff]
          %v1584 = vld [vmem:[%s1 + $0x778] sm:$0xff]
          %v1585 = vld [vmem:[%s1 + $0x780] sm:$0xff]
          %v1586 = vld [vmem:[%s1 + $0x788] sm:$0xff]
          %v1587 = vld [vmem:[%s1 + $0x790] sm:$0xff]
          %v1588 = vld [vmem:[%s1 + $0x798] sm:$0xff]
          %v1589 = vld [vmem:[%s1 + $0x7a0] sm:$0xff]
          %v1590 = vld [vmem:[%s1 + $0x7a8] sm:$0xff]
          %v1591 = vld [vmem:[%s1 + $0x7b0] sm:$0xff]
          %v1592 = vld [vmem:[%s1 + $0x7b8] sm:$0xff]
          %v1593 = vld [vmem:[%s1 + $0x7c0] sm:$0xff]
          %v1594 = vld [vmem:[%s1 + $0x7c8] sm:$0xff]
          %v1595 = vld [vmem:[%s1 + $0x7d0] sm:$0xff]
          %v1596 = vld [vmem:[%s1 + $0x7d8] sm:$0xff]
          %v1597 = vld [vmem:[%s1 + $0x7e0] sm:$0xff]
          %v1598 = vld [vmem:[%s1 + $0x7e8] sm:$0xff]
          %v1599 = vld [vmem:[%s1 + $0x7f0] sm:$0xff]
          %v1600 = vld [vmem:[%s1 + $0x7f8] sm:$0xff]
          %v1601 = vld [vmem:[%s2] sm:$0xff]
          %v1602 = vld [vmem:[%s2 + $0x8] sm:$0xff]
          %v1605 = vlaneseq
          %v1606 = vshrl.u32 %v1605, 7
          %v1607 = vsub.s32 0, %v1606
          %v1608 = vrot.slane %v1601, %v1607
          %v1609 = vlaneseq
          %v1610 = vshrl.u32 %v1609, 7
          %v1611 = vsub.s32 1, %v1610
          %v1612 = vrot.slane %v1601, %v1611
          %v1613 = vlaneseq
          %v1614 = vshrl.u32 %v1613, 7
          %v1615 = vsub.s32 2, %v1614
          %v1616 = vrot.slane %v1601, %v1615
          %v1617 = vlaneseq
          %v1618 = vshrl.u32 %v1617, 7
          %v1619 = vsub.s32 3, %v1618
          %v1620 = vrot.slane %v1601, %v1619
          %v1621 = vlaneseq
          %v1622 = vshrl.u32 %v1621, 7
          %v1623 = vsub.s32 4, %v1622
          %v1624 = vrot.slane %v1601, %v1623
          %v1625 = vlaneseq
          %v1626 = vshrl.u32 %v1625, 7
          %v1627 = vsub.s32 5, %v1626
          %v1628 = vrot.slane %v1601, %v1627
          %v1629 = vlaneseq
          %v1630 = vshrl.u32 %v1629, 7
          %v1631 = vsub.s32 6, %v1630
          %v1632 = vrot.slane %v1601, %v1631
          %v1633 = vlaneseq
          %v1634 = vshrl.u32 %v1633, 7
          %v1635 = vsub.s32 7, %v1634
          %v1636 = vrot.slane %v1601, %v1635
          %v1637 = vlaneseq
          %v1638 = vshrl.u32 %v1637, 7
          %v1639 = vsub.s32 0, %v1638
          %v1640 = vrot.slane %v1602, %v1639
          %v1641 = vlaneseq
          %v1642 = vshrl.u32 %v1641, 7
          %v1643 = vsub.s32 1, %v1642
          %v1644 = vrot.slane %v1602, %v1643
          %v1645 = vlaneseq
          %v1646 = vshrl.u32 %v1645, 7
          %v1647 = vsub.s32 2, %v1646
          %v1648 = vrot.slane %v1602, %v1647
          %v1649 = vlaneseq
          %v1650 = vshrl.u32 %v1649, 7
          %v1651 = vsub.s32 3, %v1650
          %v1652 = vrot.slane %v1602, %v1651
          %v1653 = vlaneseq
          %v1654 = vshrl.u32 %v1653, 7
          %v1655 = vsub.s32 4, %v1654
          %v1656 = vrot.slane %v1602, %v1655
          %v1657 = vlaneseq
          %v1658 = vshrl.u32 %v1657, 7
          %v1659 = vsub.s32 5, %v1658
          %v1660 = vrot.slane %v1602, %v1659
          %v1661 = vlaneseq
          %v1662 = vshrl.u32 %v1661, 7
          %v1663 = vsub.s32 6, %v1662
          %v1664 = vrot.slane %v1602, %v1663
          %v1665 = vlaneseq
          %v1666 = vshrl.u32 %v1665, 7
          %v1667 = vsub.s32 7, %v1666
          %v1668 = vrot.slane %v1602, %v1667
          %v1687 = vunpack.c.l.b16 %v1343
          %v1688 = vunpack.c.h.b16 %v1343
          %v1689 = vunpack.c.l.b16 %v1344
          %v1690 = vunpack.c.h.b16 %v1344
          %v1691 = vpack.c.b16 %v1689, %v1687
          %v1692 = vpack.c.b16 %v1690, %v1688
          %v1951 = vunpack.c.l.b16 %v1345
          %v1952 = vunpack.c.h.b16 %v1345
          %v1953 = vunpack.c.l.b16 %v1346
          %v1954 = vunpack.c.h.b16 %v1346
          %v1955 = vunpack.c.l.b16 %v1347
          %v1956 = vunpack.c.h.b16 %v1347
          %v1957 = vunpack.c.l.b16 %v1348
          %v1958 = vunpack.c.h.b16 %v1348
          %v1959 = vunpack.c.l.b16 %v1349
          %v1960 = vunpack.c.h.b16 %v1349
          %v1961 = vunpack.c.l.b16 %v1350
          %v1962 = vunpack.c.h.b16 %v1350
          %v1963 = vunpack.c.l.b16 %v1351
          %v1964 = vunpack.c.h.b16 %v1351
          %v1965 = vunpack.c.l.b16 %v1352
          %v1966 = vunpack.c.h.b16 %v1352
          %v1967 = vunpack.c.l.b16 %v1353
          %v1968 = vunpack.c.h.b16 %v1353
          %v1969 = vunpack.c.l.b16 %v1354
          %v1970 = vunpack.c.h.b16 %v1354
          %v1971 = vunpack.c.l.b16 %v1355
          %v1972 = vunpack.c.h.b16 %v1355
          %v1973 = vunpack.c.l.b16 %v1356
          %v1974 = vunpack.c.h.b16 %v1356
          %v1975 = vunpack.c.l.b16 %v1357
          %v1976 = vunpack.c.h.b16 %v1357
          %v1977 = vunpack.c.l.b16 %v1358
          %v1978 = vunpack.c.h.b16 %v1358
          %v1979 = vunpack.c.l.b16 %v1359
          %v1980 = vunpack.c.h.b16 %v1359
          %v1981 = vunpack.c.l.b16 %v1360
          %v1982 = vunpack.c.h.b16 %v1360
          %v1983 = vunpack.c.l.b16 %v1361
          %v1984 = vunpack.c.h.b16 %v1361
          %v1985 = vunpack.c.l.b16 %v1362
          %v1986 = vunpack.c.h.b16 %v1362
          %v1987 = vunpack.c.l.b16 %v1363
          %v1988 = vunpack.c.h.b16 %v1363
          %v1989 = vunpack.c.l.b16 %v1364
          %v1990 = vunpack.c.h.b16 %v1364
          %v1991 = vunpack.c.l.b16 %v1365
          %v1992 = vunpack.c.h.b16 %v1365
          %v1993 = vunpack.c.l.b16 %v1366
          %v1994 = vunpack.c.h.b16 %v1366
          %v1995 = vunpack.c.l.b16 %v1367
          %v1996 = vunpack.c.h.b16 %v1367
          %v1997 = vunpack.c.l.b16 %v1368
          %v1998 = vunpack.c.h.b16 %v1368
          %v1999 = vunpack.c.l.b16 %v1369
          %v2000 = vunpack.c.h.b16 %v1369
          %v2001 = vunpack.c.l.b16 %v1370
          %v2002 = vunpack.c.h.b16 %v1370
          %v2003 = vunpack.c.l.b16 %v1371
          %v2004 = vunpack.c.h.b16 %v1371
          %v2005 = vunpack.c.l.b16 %v1372
          %v2006 = vunpack.c.h.b16 %v1372
          %v2007 = vunpack.c.l.b16 %v1373
          %v2008 = vunpack.c.h.b16 %v1373
          %v2009 = vunpack.c.l.b16 %v1374
          %v2010 = vunpack.c.h.b16 %v1374
          %v2011 = vunpack.c.l.b16 %v1375
          %v2012 = vunpack.c.h.b16 %v1375
          %v2013 = vunpack.c.l.b16 %v1376
          %v2014 = vunpack.c.h.b16 %v1376
          %v2015 = vunpack.c.l.b16 %v1377
          %v2016 = vunpack.c.h.b16 %v1377
          %v2017 = vunpack.c.l.b16 %v1378
          %v2018 = vunpack.c.h.b16 %v1378
          %v2019 = vunpack.c.l.b16 %v1379
          %v2020 = vunpack.c.h.b16 %v1379
          %v2021 = vunpack.c.l.b16 %v1380
          %v2022 = vunpack.c.h.b16 %v1380
          %v2023 = vunpack.c.l.b16 %v1381
          %v2024 = vunpack.c.h.b16 %v1381
          %v2025 = vunpack.c.l.b16 %v1382
          %v2026 = vunpack.c.h.b16 %v1382
          %v2027 = vunpack.c.l.b16 %v1383
          %v2028 = vunpack.c.h.b16 %v1383
          %v2029 = vunpack.c.l.b16 %v1384
          %v2030 = vunpack.c.h.b16 %v1384
          %v2031 = vunpack.c.l.b16 %v1385
          %v2032 = vunpack.c.h.b16 %v1385
          %v2033 = vunpack.c.l.b16 %v1386
          %v2034 = vunpack.c.h.b16 %v1386
          %v2035 = vunpack.c.l.b16 %v1387
          %v2036 = vunpack.c.h.b16 %v1387
          %v2037 = vunpack.c.l.b16 %v1388
          %v2038 = vunpack.c.h.b16 %v1388
          %v2039 = vunpack.c.l.b16 %v1389
          %v2040 = vunpack.c.h.b16 %v1389
          %v2041 = vunpack.c.l.b16 %v1390
          %v2042 = vunpack.c.h.b16 %v1390
          %v2043 = vunpack.c.l.b16 %v1391
          %v2044 = vunpack.c.h.b16 %v1391
          %v2045 = vunpack.c.l.b16 %v1392
          %v2046 = vunpack.c.h.b16 %v1392
          %v2047 = vunpack.c.l.b16 %v1393
          %v2048 = vunpack.c.h.b16 %v1393
          %v2049 = vunpack.c.l.b16 %v1394
          %v2050 = vunpack.c.h.b16 %v1394
          %v2051 = vunpack.c.l.b16 %v1395
          %v2052 = vunpack.c.h.b16 %v1395
          %v2053 = vunpack.c.l.b16 %v1396
          %v2054 = vunpack.c.h.b16 %v1396
          %v2055 = vunpack.c.l.b16 %v1397
          %v2056 = vunpack.c.h.b16 %v1397
          %v2057 = vunpack.c.l.b16 %v1398
          %v2058 = vunpack.c.h.b16 %v1398
          %v2059 = vunpack.c.l.b16 %v1399
          %v2060 = vunpack.c.h.b16 %v1399
          %v2061 = vunpack.c.l.b16 %v1400
          %v2062 = vunpack.c.h.b16 %v1400
          %v2063 = vunpack.c.l.b16 %v1401
          %v2064 = vunpack.c.h.b16 %v1401
          %v2065 = vunpack.c.l.b16 %v1402
          %v2066 = vunpack.c.h.b16 %v1402
          %v2067 = vunpack.c.l.b16 %v1403
          %v2068 = vunpack.c.h.b16 %v1403
          %v2069 = vunpack.c.l.b16 %v1404
          %v2070 = vunpack.c.h.b16 %v1404
          %v2071 = vunpack.c.l.b16 %v1405
          %v2072 = vunpack.c.h.b16 %v1405
          %v2073 = vunpack.c.l.b16 %v1406
          %v2074 = vunpack.c.h.b16 %v1406
          %v2075 = vunpack.c.l.b16 %v1407
          %v2076 = vunpack.c.h.b16 %v1407
          %v2077 = vunpack.c.l.b16 %v1408
          %v2078 = vunpack.c.h.b16 %v1408
          %v2079 = vunpack.c.l.b16 %v1409
          %v2080 = vunpack.c.h.b16 %v1409
          %v2081 = vunpack.c.l.b16 %v1410
          %v2082 = vunpack.c.h.b16 %v1410
          %v2083 = vunpack.c.l.b16 %v1411
          %v2084 = vunpack.c.h.b16 %v1411
          %v2085 = vunpack.c.l.b16 %v1412
          %v2086 = vunpack.c.h.b16 %v1412
          %v2087 = vunpack.c.l.b16 %v1413
          %v2088 = vunpack.c.h.b16 %v1413
          %v2089 = vunpack.c.l.b16 %v1414
          %v2090 = vunpack.c.h.b16 %v1414
          %v2091 = vunpack.c.l.b16 %v1415
          %v2092 = vunpack.c.h.b16 %v1415
          %v2093 = vunpack.c.l.b16 %v1416
          %v2094 = vunpack.c.h.b16 %v1416
          %v2095 = vunpack.c.l.b16 %v1417
          %v2096 = vunpack.c.h.b16 %v1417
          %v2097 = vunpack.c.l.b16 %v1418
          %v2098 = vunpack.c.h.b16 %v1418
          %v2099 = vunpack.c.l.b16 %v1419
          %v2100 = vunpack.c.h.b16 %v1419
          %v2101 = vunpack.c.l.b16 %v1420
          %v2102 = vunpack.c.h.b16 %v1420
          %v2103 = vunpack.c.l.b16 %v1421
          %v2104 = vunpack.c.h.b16 %v1421
          %v2105 = vunpack.c.l.b16 %v1422
          %v2106 = vunpack.c.h.b16 %v1422
          %v2107 = vunpack.c.l.b16 %v1423
          %v2108 = vunpack.c.h.b16 %v1423
          %v2109 = vunpack.c.l.b16 %v1424
          %v2110 = vunpack.c.h.b16 %v1424
          %v2111 = vunpack.c.l.b16 %v1425
          %v2112 = vunpack.c.h.b16 %v1425
          %v2113 = vunpack.c.l.b16 %v1426
          %v2114 = vunpack.c.h.b16 %v1426
          %v2115 = vunpack.c.l.b16 %v1427
          %v2116 = vunpack.c.h.b16 %v1427
          %v2117 = vunpack.c.l.b16 %v1428
          %v2118 = vunpack.c.h.b16 %v1428
          %v2119 = vunpack.c.l.b16 %v1429
          %v2120 = vunpack.c.h.b16 %v1429
          %v2121 = vunpack.c.l.b16 %v1430
          %v2122 = vunpack.c.h.b16 %v1430
          %v2123 = vunpack.c.l.b16 %v1431
          %v2124 = vunpack.c.h.b16 %v1431
          %v2125 = vunpack.c.l.b16 %v1432
          %v2126 = vunpack.c.h.b16 %v1432
          %v2127 = vunpack.c.l.b16 %v1433
          %v2128 = vunpack.c.h.b16 %v1433
          %v2129 = vunpack.c.l.b16 %v1434
          %v2130 = vunpack.c.h.b16 %v1434
          %v2131 = vunpack.c.l.b16 %v1435
          %v2132 = vunpack.c.h.b16 %v1435
          %v2133 = vunpack.c.l.b16 %v1436
          %v2134 = vunpack.c.h.b16 %v1436
          %v2135 = vunpack.c.l.b16 %v1437
          %v2136 = vunpack.c.h.b16 %v1437
          %v2137 = vunpack.c.l.b16 %v1438
          %v2138 = vunpack.c.h.b16 %v1438
          %v2139 = vunpack.c.l.b16 %v1439
          %v2140 = vunpack.c.h.b16 %v1439
          %v2141 = vunpack.c.l.b16 %v1440
          %v2142 = vunpack.c.h.b16 %v1440
          %v2143 = vunpack.c.l.b16 %v1441
          %v2144 = vunpack.c.h.b16 %v1441
          %v2145 = vunpack.c.l.b16 %v1442
          %v2146 = vunpack.c.h.b16 %v1442
          %v2147 = vunpack.c.l.b16 %v1443
          %v2148 = vunpack.c.h.b16 %v1443
          %v2149 = vunpack.c.l.b16 %v1444
          %v2150 = vunpack.c.h.b16 %v1444
          %v2151 = vunpack.c.l.b16 %v1445
          %v2152 = vunpack.c.h.b16 %v1445
          %v2153 = vunpack.c.l.b16 %v1446
          %v2154 = vunpack.c.h.b16 %v1446
          %v2155 = vunpack.c.l.b16 %v1447
          %v2156 = vunpack.c.h.b16 %v1447
          %v2157 = vunpack.c.l.b16 %v1448
          %v2158 = vunpack.c.h.b16 %v1448
          %v2159 = vunpack.c.l.b16 %v1449
          %v2160 = vunpack.c.h.b16 %v1449
          %v2161 = vunpack.c.l.b16 %v1450
          %v2162 = vunpack.c.h.b16 %v1450
          %v2163 = vunpack.c.l.b16 %v1451
          %v2164 = vunpack.c.h.b16 %v1451
          %v2165 = vunpack.c.l.b16 %v1452
          %v2166 = vunpack.c.h.b16 %v1452
          %v2167 = vunpack.c.l.b16 %v1453
          %v2168 = vunpack.c.h.b16 %v1453
          %v2169 = vunpack.c.l.b16 %v1454
          %v2170 = vunpack.c.h.b16 %v1454
          %v2171 = vunpack.c.l.b16 %v1455
          %v2172 = vunpack.c.h.b16 %v1455
          %v2173 = vunpack.c.l.b16 %v1456
          %v2174 = vunpack.c.h.b16 %v1456
          %v2175 = vunpack.c.l.b16 %v1457
          %v2176 = vunpack.c.h.b16 %v1457
          %v2177 = vunpack.c.l.b16 %v1458
          %v2178 = vunpack.c.h.b16 %v1458
          %v2179 = vunpack.c.l.b16 %v1459
          %v2180 = vunpack.c.h.b16 %v1459
          %v2181 = vunpack.c.l.b16 %v1460
          %v2182 = vunpack.c.h.b16 %v1460
          %v2183 = vunpack.c.l.b16 %v1461
          %v2184 = vunpack.c.h.b16 %v1461
          %v2185 = vunpack.c.l.b16 %v1462
          %v2186 = vunpack.c.h.b16 %v1462
          %v2187 = vunpack.c.l.b16 %v1463
          %v2188 = vunpack.c.h.b16 %v1463
          %v2189 = vunpack.c.l.b16 %v1464
          %v2190 = vunpack.c.h.b16 %v1464
          %v2191 = vunpack.c.l.b16 %v1465
          %v2192 = vunpack.c.h.b16 %v1465
          %v2193 = vunpack.c.l.b16 %v1466
          %v2194 = vunpack.c.h.b16 %v1466
          %v2195 = vunpack.c.l.b16 %v1467
          %v2196 = vunpack.c.h.b16 %v1467
          %v2197 = vunpack.c.l.b16 %v1468
          %v2198 = vunpack.c.h.b16 %v1468
          %v2199 = vunpack.c.l.b16 %v1469
          %v2200 = vunpack.c.h.b16 %v1469
          %v2201 = vunpack.c.l.b16 %v1470
          %v2202 = vunpack.c.h.b16 %v1470
          %v2203 = vunpack.c.l.b16 %v1471
          %v2204 = vunpack.c.h.b16 %v1471
          %v2205 = vunpack.c.l.b16 %v1472
          %v2206 = vunpack.c.h.b16 %v1472
          %v2207 = vunpack.c.l.b16 %v1473
          %v2208 = vunpack.c.h.b16 %v1473
          %v2209 = vunpack.c.l.b16 %v1474
          %v2210 = vunpack.c.h.b16 %v1474
          %v2211 = vunpack.c.l.b16 %v1475
          %v2212 = vunpack.c.h.b16 %v1475
          %v2213 = vunpack.c.l.b16 %v1476
          %v2214 = vunpack.c.h.b16 %v1476
          %v2215 = vunpack.c.l.b16 %v1477
          %v2216 = vunpack.c.h.b16 %v1477
          %v2217 = vunpack.c.l.b16 %v1478
          %v2218 = vunpack.c.h.b16 %v1478
          %v2219 = vunpack.c.l.b16 %v1479
          %v2220 = vunpack.c.h.b16 %v1479
          %v2221 = vunpack.c.l.b16 %v1480
          %v2222 = vunpack.c.h.b16 %v1480
          %v2223 = vunpack.c.l.b16 %v1481
          %v2224 = vunpack.c.h.b16 %v1481
          %v2225 = vunpack.c.l.b16 %v1482
          %v2226 = vunpack.c.h.b16 %v1482
          %v2227 = vunpack.c.l.b16 %v1483
          %v2228 = vunpack.c.h.b16 %v1483
          %v2229 = vunpack.c.l.b16 %v1484
          %v2230 = vunpack.c.h.b16 %v1484
          %v2231 = vunpack.c.l.b16 %v1485
          %v2232 = vunpack.c.h.b16 %v1485
          %v2233 = vunpack.c.l.b16 %v1486
          %v2234 = vunpack.c.h.b16 %v1486
          %v2235 = vunpack.c.l.b16 %v1487
          %v2236 = vunpack.c.h.b16 %v1487
          %v2237 = vunpack.c.l.b16 %v1488
          %v2238 = vunpack.c.h.b16 %v1488
          %v2239 = vunpack.c.l.b16 %v1489
          %v2240 = vunpack.c.h.b16 %v1489
          %v2241 = vunpack.c.l.b16 %v1490
          %v2242 = vunpack.c.h.b16 %v1490
          %v2243 = vunpack.c.l.b16 %v1491
          %v2244 = vunpack.c.h.b16 %v1491
          %v2245 = vunpack.c.l.b16 %v1492
          %v2246 = vunpack.c.h.b16 %v1492
          %v2247 = vunpack.c.l.b16 %v1493
          %v2248 = vunpack.c.h.b16 %v1493
          %v2249 = vunpack.c.l.b16 %v1494
          %v2250 = vunpack.c.h.b16 %v1494
          %v2251 = vunpack.c.l.b16 %v1495
          %v2252 = vunpack.c.h.b16 %v1495
          %v2253 = vunpack.c.l.b16 %v1496
          %v2254 = vunpack.c.h.b16 %v1496
          %v2255 = vunpack.c.l.b16 %v1497
          %v2256 = vunpack.c.h.b16 %v1497
          %v2257 = vunpack.c.l.b16 %v1498
          %v2258 = vunpack.c.h.b16 %v1498
          %v2259 = vunpack.c.l.b16 %v1499
          %v2260 = vunpack.c.h.b16 %v1499
          %v2261 = vunpack.c.l.b16 %v1500
          %v2262 = vunpack.c.h.b16 %v1500
          %v2263 = vunpack.c.l.b16 %v1501
          %v2264 = vunpack.c.h.b16 %v1501
          %v2265 = vunpack.c.l.b16 %v1502
          %v2266 = vunpack.c.h.b16 %v1502
          %v2267 = vunpack.c.l.b16 %v1503
          %v2268 = vunpack.c.h.b16 %v1503
          %v2269 = vunpack.c.l.b16 %v1504
          %v2270 = vunpack.c.h.b16 %v1504
          %v2271 = vunpack.c.l.b16 %v1505
          %v2272 = vunpack.c.h.b16 %v1505
          %v2273 = vunpack.c.l.b16 %v1506
          %v2274 = vunpack.c.h.b16 %v1506
          %v2275 = vunpack.c.l.b16 %v1507
          %v2276 = vunpack.c.h.b16 %v1507
          %v2277 = vunpack.c.l.b16 %v1508
          %v2278 = vunpack.c.h.b16 %v1508
          %v2279 = vunpack.c.l.b16 %v1509
          %v2280 = vunpack.c.h.b16 %v1509
          %v2281 = vunpack.c.l.b16 %v1510
          %v2282 = vunpack.c.h.b16 %v1510
          %v2283 = vunpack.c.l.b16 %v1511
          %v2284 = vunpack.c.h.b16 %v1511
          %v2285 = vunpack.c.l.b16 %v1512
          %v2286 = vunpack.c.h.b16 %v1512
          %v2287 = vunpack.c.l.b16 %v1513
          %v2288 = vunpack.c.h.b16 %v1513
          %v2289 = vunpack.c.l.b16 %v1514
          %v2290 = vunpack.c.h.b16 %v1514
          %v2291 = vunpack.c.l.b16 %v1515
          %v2292 = vunpack.c.h.b16 %v1515
          %v2293 = vunpack.c.l.b16 %v1516
          %v2294 = vunpack.c.h.b16 %v1516
          %v2295 = vunpack.c.l.b16 %v1517
          %v2296 = vunpack.c.h.b16 %v1517
          %v2297 = vunpack.c.l.b16 %v1518
          %v2298 = vunpack.c.h.b16 %v1518
          %v2299 = vunpack.c.l.b16 %v1519
          %v2300 = vunpack.c.h.b16 %v1519
          %v2301 = vunpack.c.l.b16 %v1520
          %v2302 = vunpack.c.h.b16 %v1520
          %v2303 = vunpack.c.l.b16 %v1521
          %v2304 = vunpack.c.h.b16 %v1521
          %v2305 = vunpack.c.l.b16 %v1522
          %v2306 = vunpack.c.h.b16 %v1522
          %v2307 = vunpack.c.l.b16 %v1523
          %v2308 = vunpack.c.h.b16 %v1523
          %v2309 = vunpack.c.l.b16 %v1524
          %v2310 = vunpack.c.h.b16 %v1524
          %v2311 = vunpack.c.l.b16 %v1525
          %v2312 = vunpack.c.h.b16 %v1525
          %v2313 = vunpack.c.l.b16 %v1526
          %v2314 = vunpack.c.h.b16 %v1526
          %v2315 = vunpack.c.l.b16 %v1527
          %v2316 = vunpack.c.h.b16 %v1527
          %v2317 = vunpack.c.l.b16 %v1528
          %v2318 = vunpack.c.h.b16 %v1528
          %v2319 = vunpack.c.l.b16 %v1529
          %v2320 = vunpack.c.h.b16 %v1529
          %v2321 = vunpack.c.l.b16 %v1530
          %v2322 = vunpack.c.h.b16 %v1530
          %v2323 = vunpack.c.l.b16 %v1531
          %v2324 = vunpack.c.h.b16 %v1531
          %v2325 = vunpack.c.l.b16 %v1532
          %v2326 = vunpack.c.h.b16 %v1532
          %v2327 = vunpack.c.l.b16 %v1533
          %v2328 = vunpack.c.h.b16 %v1533
          %v2329 = vunpack.c.l.b16 %v1534
          %v2330 = vunpack.c.h.b16 %v1534
          %v2331 = vunpack.c.l.b16 %v1535
          %v2332 = vunpack.c.h.b16 %v1535
          %v2333 = vunpack.c.l.b16 %v1536
          %v2334 = vunpack.c.h.b16 %v1536
          %v2335 = vunpack.c.l.b16 %v1537
          %v2336 = vunpack.c.h.b16 %v1537
          %v2337 = vunpack.c.l.b16 %v1538
          %v2338 = vunpack.c.h.b16 %v1538
          %v2339 = vunpack.c.l.b16 %v1539
          %v2340 = vunpack.c.h.b16 %v1539
          %v2341 = vunpack.c.l.b16 %v1540
          %v2342 = vunpack.c.h.b16 %v1540
          %v2343 = vunpack.c.l.b16 %v1541
          %v2344 = vunpack.c.h.b16 %v1541
          %v2345 = vunpack.c.l.b16 %v1542
          %v2346 = vunpack.c.h.b16 %v1542
          %v2347 = vunpack.c.l.b16 %v1543
          %v2348 = vunpack.c.h.b16 %v1543
          %v2349 = vunpack.c.l.b16 %v1544
          %v2350 = vunpack.c.h.b16 %v1544
          %v2351 = vunpack.c.l.b16 %v1545
          %v2352 = vunpack.c.h.b16 %v1545
          %v2353 = vunpack.c.l.b16 %v1546
          %v2354 = vunpack.c.h.b16 %v1546
          %v2355 = vunpack.c.l.b16 %v1547
          %v2356 = vunpack.c.h.b16 %v1547
          %v2357 = vunpack.c.l.b16 %v1548
          %v2358 = vunpack.c.h.b16 %v1548
          %v2359 = vunpack.c.l.b16 %v1549
          %v2360 = vunpack.c.h.b16 %v1549
          %v2361 = vunpack.c.l.b16 %v1550
          %v2362 = vunpack.c.h.b16 %v1550
          %v2363 = vunpack.c.l.b16 %v1551
          %v2364 = vunpack.c.h.b16 %v1551
          %v2365 = vunpack.c.l.b16 %v1552
          %v2366 = vunpack.c.h.b16 %v1552
          %v2367 = vunpack.c.l.b16 %v1553
          %v2368 = vunpack.c.h.b16 %v1553
          %v2369 = vunpack.c.l.b16 %v1554
          %v2370 = vunpack.c.h.b16 %v1554
          %v2371 = vunpack.c.l.b16 %v1555
          %v2372 = vunpack.c.h.b16 %v1555
          %v2373 = vunpack.c.l.b16 %v1556
          %v2374 = vunpack.c.h.b16 %v1556
          %v2375 = vunpack.c.l.b16 %v1557
          %v2376 = vunpack.c.h.b16 %v1557
          %v2377 = vunpack.c.l.b16 %v1558
          %v2378 = vunpack.c.h.b16 %v1558
          %v2379 = vunpack.c.l.b16 %v1559
          %v2380 = vunpack.c.h.b16 %v1559
          %v2381 = vunpack.c.l.b16 %v1560
          %v2382 = vunpack.c.h.b16 %v1560
          %v2383 = vunpack.c.l.b16 %v1561
          %v2384 = vunpack.c.h.b16 %v1561
          %v2385 = vunpack.c.l.b16 %v1562
          %v2386 = vunpack.c.h.b16 %v1562
          %v2387 = vunpack.c.l.b16 %v1563
          %v2388 = vunpack.c.h.b16 %v1563
          %v2389 = vunpack.c.l.b16 %v1564
          %v2390 = vunpack.c.h.b16 %v1564
          %v2391 = vunpack.c.l.b16 %v1565
          %v2392 = vunpack.c.h.b16 %v1565
          %v2393 = vunpack.c.l.b16 %v1566
          %v2394 = vunpack.c.h.b16 %v1566
          %v2395 = vunpack.c.l.b16 %v1567
          %v2396 = vunpack.c.h.b16 %v1567
          %v2397 = vunpack.c.l.b16 %v1568
          %v2398 = vunpack.c.h.b16 %v1568
          %v2399 = vunpack.c.l.b16 %v1569
          %v2400 = vunpack.c.h.b16 %v1569
          %v2401 = vunpack.c.l.b16 %v1570
          %v2402 = vunpack.c.h.b16 %v1570
          %v2403 = vunpack.c.l.b16 %v1571
          %v2404 = vunpack.c.h.b16 %v1571
          %v2405 = vunpack.c.l.b16 %v1572
          %v2406 = vunpack.c.h.b16 %v1572
          %v2407 = vunpack.c.l.b16 %v1573
          %v2408 = vunpack.c.h.b16 %v1573
          %v2409 = vunpack.c.l.b16 %v1574
          %v2410 = vunpack.c.h.b16 %v1574
          %v2411 = vunpack.c.l.b16 %v1575
          %v2412 = vunpack.c.h.b16 %v1575
          %v2413 = vunpack.c.l.b16 %v1576
          %v2414 = vunpack.c.h.b16 %v1576
          %v2415 = vunpack.c.l.b16 %v1577
          %v2416 = vunpack.c.h.b16 %v1577
          %v2417 = vunpack.c.l.b16 %v1578
          %v2418 = vunpack.c.h.b16 %v1578
          %v2419 = vunpack.c.l.b16 %v1579
          %v2420 = vunpack.c.h.b16 %v1579
          %v2421 = vunpack.c.l.b16 %v1580
          %v2422 = vunpack.c.h.b16 %v1580
          %v2423 = vunpack.c.l.b16 %v1581
          %v2424 = vunpack.c.h.b16 %v1581
          %v2425 = vunpack.c.l.b16 %v1582
          %v2426 = vunpack.c.h.b16 %v1582
          %v2427 = vunpack.c.l.b16 %v1583
          %v2428 = vunpack.c.h.b16 %v1583
          %v2429 = vunpack.c.l.b16 %v1584
          %v2430 = vunpack.c.h.b16 %v1584
          %v2431 = vunpack.c.l.b16 %v1585
          %v2432 = vunpack.c.h.b16 %v1585
          %v2433 = vunpack.c.l.b16 %v1586
          %v2434 = vunpack.c.h.b16 %v1586
          %v2435 = vunpack.c.l.b16 %v1587
          %v2436 = vunpack.c.h.b16 %v1587
          %v2437 = vunpack.c.l.b16 %v1588
          %v2438 = vunpack.c.h.b16 %v1588
          %v2439 = vunpack.c.l.b16 %v1589
          %v2440 = vunpack.c.h.b16 %v1589
          %v2441 = vunpack.c.l.b16 %v1590
          %v2442 = vunpack.c.h.b16 %v1590
          %v2443 = vunpack.c.l.b16 %v1591
          %v2444 = vunpack.c.h.b16 %v1591
          %v2445 = vunpack.c.l.b16 %v1592
          %v2446 = vunpack.c.h.b16 %v1592
          %v2447 = vunpack.c.l.b16 %v1593
          %v2448 = vunpack.c.h.b16 %v1593
          %v2449 = vunpack.c.l.b16 %v1594
          %v2450 = vunpack.c.h.b16 %v1594
          %v2451 = vunpack.c.l.b16 %v1595
          %v2452 = vunpack.c.h.b16 %v1595
          %v2453 = vunpack.c.l.b16 %v1596
          %v2454 = vunpack.c.h.b16 %v1596
          %v2455 = vunpack.c.l.b16 %v1597
          %v2456 = vunpack.c.h.b16 %v1597
          %v2457 = vunpack.c.l.b16 %v1598
          %v2458 = vunpack.c.h.b16 %v1598
          %v2459 = vunpack.c.l.b16 %v1599
          %v2460 = vunpack.c.h.b16 %v1599
          %v2461 = vunpack.c.l.b16 %v1600
          %v2462 = vunpack.c.h.b16 %v1600
          %v2463 = vpack.c.b16 %v1967, %v1951
          %v2464 = vpack.c.b16 %v1968, %v1952
          %v2465 = vpack.c.b16 %v1969, %v1953
          %v2466 = vpack.c.b16 %v1970, %v1954
          %v2467 = vpack.c.b16 %v1971, %v1955
          %v2468 = vpack.c.b16 %v1972, %v1956
          %v2469 = vpack.c.b16 %v1973, %v1957
          %v2470 = vpack.c.b16 %v1974, %v1958
          %v2471 = vpack.c.b16 %v1975, %v1959
          %v2472 = vpack.c.b16 %v1976, %v1960
          %v2473 = vpack.c.b16 %v1977, %v1961
          %v2474 = vpack.c.b16 %v1978, %v1962
          %v2475 = vpack.c.b16 %v1979, %v1963
          %v2476 = vpack.c.b16 %v1980, %v1964
          %v2477 = vpack.c.b16 %v1981, %v1965
          %v2478 = vpack.c.b16 %v1982, %v1966
          %v2479 = vpack.c.b16 %v1999, %v1983
          %v2480 = vpack.c.b16 %v2000, %v1984
          %v2481 = vpack.c.b16 %v2001, %v1985
          %v2482 = vpack.c.b16 %v2002, %v1986
          %v2483 = vpack.c.b16 %v2003, %v1987
          %v2484 = vpack.c.b16 %v2004, %v1988
          %v2485 = vpack.c.b16 %v2005, %v1989
          %v2486 = vpack.c.b16 %v2006, %v1990
          %v2487 = vpack.c.b16 %v2007, %v1991
          %v2488 = vpack.c.b16 %v2008, %v1992
          %v2489 = vpack.c.b16 %v2009, %v1993
          %v2490 = vpack.c.b16 %v2010, %v1994
          %v2491 = vpack.c.b16 %v2011, %v1995
          %v2492 = vpack.c.b16 %v2012, %v1996
          %v2493 = vpack.c.b16 %v2013, %v1997
          %v2494 = vpack.c.b16 %v2014, %v1998
          %v2495 = vpack.c.b16 %v2031, %v2015
          %v2496 = vpack.c.b16 %v2032, %v2016
          %v2497 = vpack.c.b16 %v2033, %v2017
          %v2498 = vpack.c.b16 %v2034, %v2018
          %v2499 = vpack.c.b16 %v2035, %v2019
          %v2500 = vpack.c.b16 %v2036, %v2020
          %v2501 = vpack.c.b16 %v2037, %v2021
          %v2502 = vpack.c.b16 %v2038, %v2022
          %v2503 = vpack.c.b16 %v2039, %v2023
          %v2504 = vpack.c.b16 %v2040, %v2024
          %v2505 = vpack.c.b16 %v2041, %v2025
          %v2506 = vpack.c.b16 %v2042, %v2026
          %v2507 = vpack.c.b16 %v2043, %v2027
          %v2508 = vpack.c.b16 %v2044, %v2028
          %v2509 = vpack.c.b16 %v2045, %v2029
          %v2510 = vpack.c.b16 %v2046, %v2030
          %v2511 = vpack.c.b16 %v2063, %v2047
          %v2512 = vpack.c.b16 %v2064, %v2048
          %v2513 = vpack.c.b16 %v2065, %v2049
          %v2514 = vpack.c.b16 %v2066, %v2050
          %v2515 = vpack.c.b16 %v2067, %v2051
          %v2516 = vpack.c.b16 %v2068, %v2052
          %v2517 = vpack.c.b16 %v2069, %v2053
          %v2518 = vpack.c.b16 %v2070, %v2054
          %v2519 = vpack.c.b16 %v2071, %v2055
          %v2520 = vpack.c.b16 %v2072, %v2056
          %v2521 = vpack.c.b16 %v2073, %v2057
          %v2522 = vpack.c.b16 %v2074, %v2058
          %v2523 = vpack.c.b16 %v2075, %v2059
          %v2524 = vpack.c.b16 %v2076, %v2060
          %v2525 = vpack.c.b16 %v2077, %v2061
          %v2526 = vpack.c.b16 %v2078, %v2062
          %v2527 = vpack.c.b16 %v2095, %v2079
          %v2528 = vpack.c.b16 %v2096, %v2080
          %v2529 = vpack.c.b16 %v2097, %v2081
          %v2530 = vpack.c.b16 %v2098, %v2082
          %v2531 = vpack.c.b16 %v2099, %v2083
          %v2532 = vpack.c.b16 %v2100, %v2084
          %v2533 = vpack.c.b16 %v2101, %v2085
          %v2534 = vpack.c.b16 %v2102, %v2086
          %v2535 = vpack.c.b16 %v2103, %v2087
          %v2536 = vpack.c.b16 %v2104, %v2088
          %v2537 = vpack.c.b16 %v2105, %v2089
          %v2538 = vpack.c.b16 %v2106, %v2090
          %v2539 = vpack.c.b16 %v2107, %v2091
          %v2540 = vpack.c.b16 %v2108, %v2092
          %v2541 = vpack.c.b16 %v2109, %v2093
          %v2542 = vpack.c.b16 %v2110, %v2094
          %v2543 = vpack.c.b16 %v2127, %v2111
          %v2544 = vpack.c.b16 %v2128, %v2112
          %v2545 = vpack.c.b16 %v2129, %v2113
          %v2546 = vpack.c.b16 %v2130, %v2114
          %v2547 = vpack.c.b16 %v2131, %v2115
          %v2548 = vpack.c.b16 %v2132, %v2116
          %v2549 = vpack.c.b16 %v2133, %v2117
          %v2550 = vpack.c.b16 %v2134, %v2118
          %v2551 = vpack.c.b16 %v2135, %v2119
          %v2552 = vpack.c.b16 %v2136, %v2120
          %v2553 = vpack.c.b16 %v2137, %v2121
          %v2554 = vpack.c.b16 %v2138, %v2122
          %v2555 = vpack.c.b16 %v2139, %v2123
          %v2556 = vpack.c.b16 %v2140, %v2124
          %v2557 = vpack.c.b16 %v2141, %v2125
          %v2558 = vpack.c.b16 %v2142, %v2126
          %v2559 = vpack.c.b16 %v2159, %v2143
          %v2560 = vpack.c.b16 %v2160, %v2144
          %v2561 = vpack.c.b16 %v2161, %v2145
          %v2562 = vpack.c.b16 %v2162, %v2146
          %v2563 = vpack.c.b16 %v2163, %v2147
          %v2564 = vpack.c.b16 %v2164, %v2148
          %v2565 = vpack.c.b16 %v2165, %v2149
          %v2566 = vpack.c.b16 %v2166, %v2150
          %v2567 = vpack.c.b16 %v2167, %v2151
          %v2568 = vpack.c.b16 %v2168, %v2152
          %v2569 = vpack.c.b16 %v2169, %v2153
          %v2570 = vpack.c.b16 %v2170, %v2154
          %v2571 = vpack.c.b16 %v2171, %v2155
          %v2572 = vpack.c.b16 %v2172, %v2156
          %v2573 = vpack.c.b16 %v2173, %v2157
          %v2574 = vpack.c.b16 %v2174, %v2158
          %v2575 = vpack.c.b16 %v2191, %v2175
          %v2576 = vpack.c.b16 %v2192, %v2176
          %v2577 = vpack.c.b16 %v2193, %v2177
          %v2578 = vpack.c.b16 %v2194, %v2178
          %v2579 = vpack.c.b16 %v2195, %v2179
          %v2580 = vpack.c.b16 %v2196, %v2180
          %v2581 = vpack.c.b16 %v2197, %v2181
          %v2582 = vpack.c.b16 %v2198, %v2182
          %v2583 = vpack.c.b16 %v2199, %v2183
          %v2584 = vpack.c.b16 %v2200, %v2184
          %v2585 = vpack.c.b16 %v2201, %v2185
          %v2586 = vpack.c.b16 %v2202, %v2186
          %v2587 = vpack.c.b16 %v2203, %v2187
          %v2588 = vpack.c.b16 %v2204, %v2188
          %v2589 = vpack.c.b16 %v2205, %v2189
          %v2590 = vpack.c.b16 %v2206, %v2190
          %v2591 = vpack.c.b16 %v2223, %v2207
          %v2592 = vpack.c.b16 %v2224, %v2208
          %v2593 = vpack.c.b16 %v2225, %v2209
          %v2594 = vpack.c.b16 %v2226, %v2210
          %v2595 = vpack.c.b16 %v2227, %v2211
          %v2596 = vpack.c.b16 %v2228, %v2212
          %v2597 = vpack.c.b16 %v2229, %v2213
          %v2598 = vpack.c.b16 %v2230, %v2214
          %v2599 = vpack.c.b16 %v2231, %v2215
          %v2600 = vpack.c.b16 %v2232, %v2216
          %v2601 = vpack.c.b16 %v2233, %v2217
          %v2602 = vpack.c.b16 %v2234, %v2218
          %v2603 = vpack.c.b16 %v2235, %v2219
          %v2604 = vpack.c.b16 %v2236, %v2220
          %v2605 = vpack.c.b16 %v2237, %v2221
          %v2606 = vpack.c.b16 %v2238, %v2222
          %v2607 = vpack.c.b16 %v2255, %v2239
          %v2608 = vpack.c.b16 %v2256, %v2240
          %v2609 = vpack.c.b16 %v2257, %v2241
          %v2610 = vpack.c.b16 %v2258, %v2242
          %v2611 = vpack.c.b16 %v2259, %v2243
          %v2612 = vpack.c.b16 %v2260, %v2244
          %v2613 = vpack.c.b16 %v2261, %v2245
          %v2614 = vpack.c.b16 %v2262, %v2246
          %v2615 = vpack.c.b16 %v2263, %v2247
          %v2616 = vpack.c.b16 %v2264, %v2248
          %v2617 = vpack.c.b16 %v2265, %v2249
          %v2618 = vpack.c.b16 %v2266, %v2250
          %v2619 = vpack.c.b16 %v2267, %v2251
          %v2620 = vpack.c.b16 %v2268, %v2252
          %v2621 = vpack.c.b16 %v2269, %v2253
          %v2622 = vpack.c.b16 %v2270, %v2254
          %v2623 = vpack.c.b16 %v2287, %v2271
          %v2624 = vpack.c.b16 %v2288, %v2272
          %v2625 = vpack.c.b16 %v2289, %v2273
          %v2626 = vpack.c.b16 %v2290, %v2274
          %v2627 = vpack.c.b16 %v2291, %v2275
          %v2628 = vpack.c.b16 %v2292, %v2276
          %v2629 = vpack.c.b16 %v2293, %v2277
          %v2630 = vpack.c.b16 %v2294, %v2278
          %v2631 = vpack.c.b16 %v2295, %v2279
          %v2632 = vpack.c.b16 %v2296, %v2280
          %v2633 = vpack.c.b16 %v2297, %v2281
          %v2634 = vpack.c.b16 %v2298, %v2282
          %v2635 = vpack.c.b16 %v2299, %v2283
          %v2636 = vpack.c.b16 %v2300, %v2284
          %v2637 = vpack.c.b16 %v2301, %v2285
          %v2638 = vpack.c.b16 %v2302, %v2286
          %v2639 = vpack.c.b16 %v2319, %v2303
          %v2640 = vpack.c.b16 %v2320, %v2304
          %v2641 = vpack.c.b16 %v2321, %v2305
          %v2642 = vpack.c.b16 %v2322, %v2306
          %v2643 = vpack.c.b16 %v2323, %v2307
          %v2644 = vpack.c.b16 %v2324, %v2308
          %v2645 = vpack.c.b16 %v2325, %v2309
          %v2646 = vpack.c.b16 %v2326, %v2310
          %v2647 = vpack.c.b16 %v2327, %v2311
          %v2648 = vpack.c.b16 %v2328, %v2312
          %v2649 = vpack.c.b16 %v2329, %v2313
          %v2650 = vpack.c.b16 %v2330, %v2314
          %v2651 = vpack.c.b16 %v2331, %v2315
          %v2652 = vpack.c.b16 %v2332, %v2316
          %v2653 = vpack.c.b16 %v2333, %v2317
          %v2654 = vpack.c.b16 %v2334, %v2318
          %v2655 = vpack.c.b16 %v2351, %v2335
          %v2656 = vpack.c.b16 %v2352, %v2336
          %v2657 = vpack.c.b16 %v2353, %v2337
          %v2658 = vpack.c.b16 %v2354, %v2338
          %v2659 = vpack.c.b16 %v2355, %v2339
          %v2660 = vpack.c.b16 %v2356, %v2340
          %v2661 = vpack.c.b16 %v2357, %v2341
          %v2662 = vpack.c.b16 %v2358, %v2342
          %v2663 = vpack.c.b16 %v2359, %v2343
          %v2664 = vpack.c.b16 %v2360, %v2344
          %v2665 = vpack.c.b16 %v2361, %v2345
          %v2666 = vpack.c.b16 %v2362, %v2346
          %v2667 = vpack.c.b16 %v2363, %v2347
          %v2668 = vpack.c.b16 %v2364, %v2348
          %v2669 = vpack.c.b16 %v2365, %v2349
          %v2670 = vpack.c.b16 %v2366, %v2350
          %v2671 = vpack.c.b16 %v2383, %v2367
          %v2672 = vpack.c.b16 %v2384, %v2368
          %v2673 = vpack.c.b16 %v2385, %v2369
          %v2674 = vpack.c.b16 %v2386, %v2370
          %v2675 = vpack.c.b16 %v2387, %v2371
          %v2676 = vpack.c.b16 %v2388, %v2372
          %v2677 = vpack.c.b16 %v2389, %v2373
          %v2678 = vpack.c.b16 %v2390, %v2374
          %v2679 = vpack.c.b16 %v2391, %v2375
          %v2680 = vpack.c.b16 %v2392, %v2376
          %v2681 = vpack.c.b16 %v2393, %v2377
          %v2682 = vpack.c.b16 %v2394, %v2378
          %v2683 = vpack.c.b16 %v2395, %v2379
          %v2684 = vpack.c.b16 %v2396, %v2380
          %v2685 = vpack.c.b16 %v2397, %v2381
          %v2686 = vpack.c.b16 %v2398, %v2382
          %v2687 = vpack.c.b16 %v2415, %v2399
          %v2688 = vpack.c.b16 %v2416, %v2400
          %v2689 = vpack.c.b16 %v2417, %v2401
          %v2690 = vpack.c.b16 %v2418, %v2402
          %v2691 = vpack.c.b16 %v2419, %v2403
          %v2692 = vpack.c.b16 %v2420, %v2404
          %v2693 = vpack.c.b16 %v2421, %v2405
          %v2694 = vpack.c.b16 %v2422, %v2406
          %v2695 = vpack.c.b16 %v2423, %v2407
          %v2696 = vpack.c.b16 %v2424, %v2408
          %v2697 = vpack.c.b16 %v2425, %v2409
          %v2698 = vpack.c.b16 %v2426, %v2410
          %v2699 = vpack.c.b16 %v2427, %v2411
          %v2700 = vpack.c.b16 %v2428, %v2412
          %v2701 = vpack.c.b16 %v2429, %v2413
          %v2702 = vpack.c.b16 %v2430, %v2414
          %v2703 = vpack.c.b16 %v2447, %v2431
          %v2704 = vpack.c.b16 %v2448, %v2432
          %v2705 = vpack.c.b16 %v2449, %v2433
          %v2706 = vpack.c.b16 %v2450, %v2434
          %v2707 = vpack.c.b16 %v2451, %v2435
          %v2708 = vpack.c.b16 %v2452, %v2436
          %v2709 = vpack.c.b16 %v2453, %v2437
          %v2710 = vpack.c.b16 %v2454, %v2438
          %v2711 = vpack.c.b16 %v2455, %v2439
          %v2712 = vpack.c.b16 %v2456, %v2440
          %v2713 = vpack.c.b16 %v2457, %v2441
          %v2714 = vpack.c.b16 %v2458, %v2442
          %v2715 = vpack.c.b16 %v2459, %v2443
          %v2716 = vpack.c.b16 %v2460, %v2444
          %v2717 = vpack.c.b16 %v2461, %v2445
          %v2718 = vpack.c.b16 %v2462, %v2446
          %2975 = vmatprep.subr.bf16.mxu0 %v2464
          %2976 = vmatpush1.bf16.msra.mxu0 %v2463
          %2977 = vmatprep.subr.bf16.mxu0 %v2480
          %2978 = vmatpush1.bf16.msra.mxu0 %v2479
          %2979 = vmatprep.subr.bf16.mxu0 %v2496
          %2980 = vmatpush1.bf16.msra.mxu0 %v2495
          %2981 = vmatprep.subr.bf16.mxu0 %v2512
          %2982 = vmatpush1.bf16.msra.mxu0 %v2511
          %2983 = vmatprep.subr.bf16.mxu0 %v2528
          %2984 = vmatpush1.bf16.msra.mxu0 %v2527
          %2985 = vmatprep.subr.bf16.mxu0 %v2544
          %2986 = vmatpush1.bf16.msra.mxu0 %v2543
          %2987 = vmatprep.subr.bf16.mxu0 %v2560
          %2988 = vmatpush1.bf16.msra.mxu0 %v2559
          %2989 = vmatprep.subr.bf16.mxu0 %v2576
          %2990 = vmatpush1.bf16.msra.mxu0 %v2575
          %2991 = vmatprep.subr.bf16.mxu0 %v2592
          %2992 = vmatpush1.bf16.msra.mxu0 %v2591
          %2993 = vmatprep.subr.bf16.mxu0 %v2608
          %2994 = vmatpush1.bf16.msra.mxu0 %v2607
          %2995 = vmatprep.subr.bf16.mxu0 %v2624
          %2996 = vmatpush1.bf16.msra.mxu0 %v2623
          %2997 = vmatprep.subr.bf16.mxu0 %v2640
          %2998 = vmatpush1.bf16.msra.mxu0 %v2639
          %2999 = vmatprep.subr.bf16.mxu0 %v2656
          %3000 = vmatpush1.bf16.msra.mxu0 %v2655
          %3001 = vmatprep.subr.bf16.mxu0 %v2672
          %3002 = vmatpush1.bf16.msra.mxu0 %v2671
          %3003 = vmatprep.subr.bf16.mxu0 %v2688
          %3004 = vmatpush1.bf16.msra.mxu0 %v2687
          %3005 = vmatprep.subr.bf16.mxu0 %v2704
          %3006 = vmatpush1.bf16.msra.mxu0 %v2703
          %3007 = vmatprep.mubr.bf16.mxu0 %v1692
          %3008 = vmatmul.mubr.bf16.gmra.mrb[0].mxu0 %v1691
          %v3009 = vpop.f32.mrb[0].mxu0
          %v3010 = vadd.f32 %v1608, %v3009
          %v3011 = vpop.f32.mrb[0].mxu0
          %v3012 = vadd.f32 %v1612, %v3011
          %v3013 = vpop.f32.mrb[0].mxu0
          %v3014 = vadd.f32 %v1608, %v3013
          %v3015 = vpop.f32.mrb[0].mxu0
          %v3016 = vadd.f32 %v1612, %v3015
          %3017 = vdwg.mxu0
          %3018 = vmatprep.subr.bf16.mxu0 %v2466
          %3019 = vmatpush1.bf16.msra.mxu0 %v2465
          %3020 = vmatprep.subr.bf16.mxu0 %v2482
          %3021 = vmatpush1.bf16.msra.mxu0 %v2481
          %3022 = vmatprep.subr.bf16.mxu0 %v2498
          %3023 = vmatpush1.bf16.msra.mxu0 %v2497
          %3024 = vmatprep.subr.bf16.mxu0 %v2514
          %3025 = vmatpush1.bf16.msra.mxu0 %v2513
          %3026 = vmatprep.subr.bf16.mxu0 %v2530
          %3027 = vmatpush1.bf16.msra.mxu0 %v2529
          %3028 = vmatprep.subr.bf16.mxu0 %v2546
          %3029 = vmatpush1.bf16.msra.mxu0 %v2545
          %3030 = vmatprep.subr.bf16.mxu0 %v2562
          %3031 = vmatpush1.bf16.msra.mxu0 %v2561
          %3032 = vmatprep.subr.bf16.mxu0 %v2578
          %3033 = vmatpush1.bf16.msra.mxu0 %v2577
          %3034 = vmatprep.subr.bf16.mxu0 %v2594
          %3035 = vmatpush1.bf16.msra.mxu0 %v2593
          %3036 = vmatprep.subr.bf16.mxu0 %v2610
          %3037 = vmatpush1.bf16.msra.mxu0 %v2609
          %3038 = vmatprep.subr.bf16.mxu0 %v2626
          %3039 = vmatpush1.bf16.msra.mxu0 %v2625
          %3040 = vmatprep.subr.bf16.mxu0 %v2642
          %3041 = vmatpush1.bf16.msra.mxu0 %v2641
          %3042 = vmatprep.subr.bf16.mxu0 %v2658
          %3043 = vmatpush1.bf16.msra.mxu0 %v2657
          %3044 = vmatprep.subr.bf16.mxu0 %v2674
          %3045 = vmatpush1.bf16.msra.mxu0 %v2673
          %3046 = vmatprep.subr.bf16.mxu0 %v2690
          %3047 = vmatpush1.bf16.msra.mxu0 %v2689
          %3048 = vmatprep.subr.bf16.mxu0 %v2706
          %3049 = vmatpush1.bf16.msra.mxu0 %v2705
          %3050 = vmatprep.mubr.bf16.mxu0 %v1692
          %3051 = vmatmul.mubr.bf16.gmra.mrb[0].mxu0 %v1691
          %v3052 = vpop.f32.mrb[0].mxu0
          %v3053 = vadd.f32 %v1616, %v3052
          %v3054 = vpop.f32.mrb[0].mxu0
          %v3055 = vadd.f32 %v1620, %v3054
          %v3056 = vpop.f32.mrb[0].mxu0
          %v3057 = vadd.f32 %v1616, %v3056
          %v3058 = vpop.f32.mrb[0].mxu0
          %v3059 = vadd.f32 %v1620, %v3058
          %3060 = vdwg.mxu0
          %3061 = vmatprep.subr.bf16.mxu0 %v2468
          %3062 = vmatpush1.bf16.msra.mxu0 %v2467
          %3063 = vmatprep.subr.bf16.mxu0 %v2484
          %3064 = vmatpush1.bf16.msra.mxu0 %v2483
          %3065 = vmatprep.subr.bf16.mxu0 %v2500
          %3066 = vmatpush1.bf16.msra.mxu0 %v2499
          %3067 = vmatprep.subr.bf16.mxu0 %v2516
          %3068 = vmatpush1.bf16.msra.mxu0 %v2515
          %3069 = vmatprep.subr.bf16.mxu0 %v2532
          %3070 = vmatpush1.bf16.msra.mxu0 %v2531
          %3071 = vmatprep.subr.bf16.mxu0 %v2548
          %3072 = vmatpush1.bf16.msra.mxu0 %v2547
          %3073 = vmatprep.subr.bf16.mxu0 %v2564
          %3074 = vmatpush1.bf16.msra.mxu0 %v2563
          %3075 = vmatprep.subr.bf16.mxu0 %v2580
          %3076 = vmatpush1.bf16.msra.mxu0 %v2579
          %3077 = vmatprep.subr.bf16.mxu0 %v2596
          %3078 = vmatpush1.bf16.msra.mxu0 %v2595
          %3079 = vmatprep.subr.bf16.mxu0 %v2612
          %3080 = vmatpush1.bf16.msra.mxu0 %v2611
          %3081 = vmatprep.subr.bf16.mxu0 %v2628
          %3082 = vmatpush1.bf16.msra.mxu0 %v2627
          %3083 = vmatprep.subr.bf16.mxu0 %v2644
          %3084 = vmatpush1.bf16.msra.mxu0 %v2643
          %3085 = vmatprep.subr.bf16.mxu0 %v2660
          %3086 = vmatpush1.bf16.msra.mxu0 %v2659
          %3087 = vmatprep.subr.bf16.mxu0 %v2676
          %3088 = vmatpush1.bf16.msra.mxu0 %v2675
          %3089 = vmatprep.subr.bf16.mxu0 %v2692
          %3090 = vmatpush1.bf16.msra.mxu0 %v2691
          %3091 = vmatprep.subr.bf16.mxu0 %v2708
          %3092 = vmatpush1.bf16.msra.mxu0 %v2707
          %3093 = vmatprep.mubr.bf16.mxu0 %v1692
          %3094 = vmatmul.mubr.bf16.gmra.mrb[0].mxu0 %v1691
          %v3095 = vpop.f32.mrb[0].mxu0
          %v3096 = vadd.f32 %v1624, %v3095
          %v3097 = vpop.f32.mrb[0].mxu0
          %v3098 = vadd.f32 %v1628, %v3097
          %v3099 = vpop.f32.mrb[0].mxu0
          %v3100 = vadd.f32 %v1624, %v3099
          %v3101 = vpop.f32.mrb[0].mxu0
          %v3102 = vadd.f32 %v1628, %v3101
          %3103 = vdwg.mxu0
          %3104 = vmatprep.subr.bf16.mxu0 %v2470
          %3105 = vmatpush1.bf16.msra.mxu0 %v2469
          %3106 = vmatprep.subr.bf16.mxu0 %v2486
          %3107 = vmatpush1.bf16.msra.mxu0 %v2485
          %3108 = vmatprep.subr.bf16.mxu0 %v2502
          %3109 = vmatpush1.bf16.msra.mxu0 %v2501
          %3110 = vmatprep.subr.bf16.mxu0 %v2518
          %3111 = vmatpush1.bf16.msra.mxu0 %v2517
          %3112 = vmatprep.subr.bf16.mxu0 %v2534
          %3113 = vmatpush1.bf16.msra.mxu0 %v2533
          %3114 = vmatprep.subr.bf16.mxu0 %v2550
          %3115 = vmatpush1.bf16.msra.mxu0 %v2549
          %3116 = vmatprep.subr.bf16.mxu0 %v2566
          %3117 = vmatpush1.bf16.msra.mxu0 %v2565
          %3118 = vmatprep.subr.bf16.mxu0 %v2582
          %3119 = vmatpush1.bf16.msra.mxu0 %v2581
          %3120 = vmatprep.subr.bf16.mxu0 %v2598
          %3121 = vmatpush1.bf16.msra.mxu0 %v2597
          %3122 = vmatprep.subr.bf16.mxu0 %v2614
          %3123 = vmatpush1.bf16.msra.mxu0 %v2613
          %3124 = vmatprep.subr.bf16.mxu0 %v2630
          %3125 = vmatpush1.bf16.msra.mxu0 %v2629
          %3126 = vmatprep.subr.bf16.mxu0 %v2646
          %3127 = vmatpush1.bf16.msra.mxu0 %v2645
          %3128 = vmatprep.subr.bf16.mxu0 %v2662
          %3129 = vmatpush1.bf16.msra.mxu0 %v2661
          %3130 = vmatprep.subr.bf16.mxu0 %v2678
          %3131 = vmatpush1.bf16.msra.mxu0 %v2677
          %3132 = vmatprep.subr.bf16.mxu0 %v2694
          %3133 = vmatpush1.bf16.msra.mxu0 %v2693
          %3134 = vmatprep.subr.bf16.mxu0 %v2710
          %3135 = vmatpush1.bf16.msra.mxu0 %v2709
          %3136 = vmatprep.mubr.bf16.mxu0 %v1692
          %3137 = vmatmul.mubr.bf16.gmra.mrb[0].mxu0 %v1691
          %v3138 = vpop.f32.mrb[0].mxu0
          %v3139 = vadd.f32 %v1632, %v3138
          %v3140 = vpop.f32.mrb[0].mxu0
          %v3141 = vadd.f32 %v1636, %v3140
          %v3142 = vpop.f32.mrb[0].mxu0
          %v3143 = vadd.f32 %v1632, %v3142
          %v3144 = vpop.f32.mrb[0].mxu0
          %v3145 = vadd.f32 %v1636, %v3144
          %3146 = vdwg.mxu0
          %3147 = vmatprep.subr.bf16.mxu0 %v2472
          %3148 = vmatpush1.bf16.msra.mxu0 %v2471
          %3149 = vmatprep.subr.bf16.mxu0 %v2488
          %3150 = vmatpush1.bf16.msra.mxu0 %v2487
          %3151 = vmatprep.subr.bf16.mxu0 %v2504
          %3152 = vmatpush1.bf16.msra.mxu0 %v2503
          %3153 = vmatprep.subr.bf16.mxu0 %v2520
          %3154 = vmatpush1.bf16.msra.mxu0 %v2519
          %3155 = vmatprep.subr.bf16.mxu0 %v2536
          %3156 = vmatpush1.bf16.msra.mxu0 %v2535
          %3157 = vmatprep.subr.bf16.mxu0 %v2552
          %3158 = vmatpush1.bf16.msra.mxu0 %v2551
          %3159 = vmatprep.subr.bf16.mxu0 %v2568
          %3160 = vmatpush1.bf16.msra.mxu0 %v2567
          %3161 = vmatprep.subr.bf16.mxu0 %v2584
          %3162 = vmatpush1.bf16.msra.mxu0 %v2583
          %3163 = vmatprep.subr.bf16.mxu0 %v2600
          %3164 = vmatpush1.bf16.msra.mxu0 %v2599
          %3165 = vmatprep.subr.bf16.mxu0 %v2616
          %3166 = vmatpush1.bf16.msra.mxu0 %v2615
          %3167 = vmatprep.subr.bf16.mxu0 %v2632
          %3168 = vmatpush1.bf16.msra.mxu0 %v2631
          %3169 = vmatprep.subr.bf16.mxu0 %v2648
          %3170 = vmatpush1.bf16.msra.mxu0 %v2647
          %3171 = vmatprep.subr.bf16.mxu0 %v2664
          %3172 = vmatpush1.bf16.msra.mxu0 %v2663
          %3173 = vmatprep.subr.bf16.mxu0 %v2680
          %3174 = vmatpush1.bf16.msra.mxu0 %v2679
          %3175 = vmatprep.subr.bf16.mxu0 %v2696
          %3176 = vmatpush1.bf16.msra.mxu0 %v2695
          %3177 = vmatprep.subr.bf16.mxu0 %v2712
          %3178 = vmatpush1.bf16.msra.mxu0 %v2711
          %3179 = vmatprep.mubr.bf16.mxu0 %v1692
          %3180 = vmatmul.mubr.bf16.gmra.mrb[0].mxu0 %v1691
          %v3181 = vpop.f32.mrb[0].mxu0
          %v3182 = vadd.f32 %v1640, %v3181
          %v3183 = vpop.f32.mrb[0].mxu0
          %v3184 = vadd.f32 %v1644, %v3183
          %v3185 = vpop.f32.mrb[0].mxu0
          %v3186 = vadd.f32 %v1640, %v3185
          %v3187 = vpop.f32.mrb[0].mxu0
          %v3188 = vadd.f32 %v1644, %v3187
          %3189 = vdwg.mxu0
          %3190 = vmatprep.subr.bf16.mxu0 %v2474
          %3191 = vmatpush1.bf16.msra.mxu0 %v2473
          %3192 = vmatprep.subr.bf16.mxu0 %v2490
          %3193 = vmatpush1.bf16.msra.mxu0 %v2489
          %3194 = vmatprep.subr.bf16.mxu0 %v2506
          %3195 = vmatpush1.bf16.msra.mxu0 %v2505
          %3196 = vmatprep.subr.bf16.mxu0 %v2522
          %3197 = vmatpush1.bf16.msra.mxu0 %v2521
          %3198 = vmatprep.subr.bf16.mxu0 %v2538
          %3199 = vmatpush1.bf16.msra.mxu0 %v2537
          %3200 = vmatprep.subr.bf16.mxu0 %v2554
          %3201 = vmatpush1.bf16.msra.mxu0 %v2553
          %3202 = vmatprep.subr.bf16.mxu0 %v2570
          %3203 = vmatpush1.bf16.msra.mxu0 %v2569
          %3204 = vmatprep.subr.bf16.mxu0 %v2586
          %3205 = vmatpush1.bf16.msra.mxu0 %v2585
          %3206 = vmatprep.subr.bf16.mxu0 %v2602
          %3207 = vmatpush1.bf16.msra.mxu0 %v2601
          %3208 = vmatprep.subr.bf16.mxu0 %v2618
          %3209 = vmatpush1.bf16.msra.mxu0 %v2617
          %3210 = vmatprep.subr.bf16.mxu0 %v2634
          %3211 = vmatpush1.bf16.msra.mxu0 %v2633
          %3212 = vmatprep.subr.bf16.mxu0 %v2650
          %3213 = vmatpush1.bf16.msra.mxu0 %v2649
          %3214 = vmatprep.subr.bf16.mxu0 %v2666
          %3215 = vmatpush1.bf16.msra.mxu0 %v2665
          %3216 = vmatprep.subr.bf16.mxu0 %v2682
          %3217 = vmatpush1.bf16.msra.mxu0 %v2681
          %3218 = vmatprep.subr.bf16.mxu0 %v2698
          %3219 = vmatpush1.bf16.msra.mxu0 %v2697
          %3220 = vmatprep.subr.bf16.mxu0 %v2714
          %3221 = vmatpush1.bf16.msra.mxu0 %v2713
          %3222 = vmatprep.mubr.bf16.mxu0 %v1692
          %3223 = vmatmul.mubr.bf16.gmra.mrb[0].mxu0 %v1691
          %v3224 = vpop.f32.mrb[0].mxu0
          %v3225 = vadd.f32 %v1648, %v3224
          %v3226 = vpop.f32.mrb[0].mxu0
          %v3227 = vadd.f32 %v1652, %v3226
          %v3228 = vpop.f32.mrb[0].mxu0
          %v3229 = vadd.f32 %v1648, %v3228
          %v3230 = vpop.f32.mrb[0].mxu0
          %v3231 = vadd.f32 %v1652, %v3230
          %3232 = vdwg.mxu0
          %3233 = vmatprep.subr.bf16.mxu0 %v2476
          %3234 = vmatpush1.bf16.msra.mxu0 %v2475
          %3235 = vmatprep.subr.bf16.mxu0 %v2492
          %3236 = vmatpush1.bf16.msra.mxu0 %v2491
          %3237 = vmatprep.subr.bf16.mxu0 %v2508
          %3238 = vmatpush1.bf16.msra.mxu0 %v2507
          %3239 = vmatprep.subr.bf16.mxu0 %v2524
          %3240 = vmatpush1.bf16.msra.mxu0 %v2523
          %3241 = vmatprep.subr.bf16.mxu0 %v2540
          %3242 = vmatpush1.bf16.msra.mxu0 %v2539
          %3243 = vmatprep.subr.bf16.mxu0 %v2556
          %3244 = vmatpush1.bf16.msra.mxu0 %v2555
          %3245 = vmatprep.subr.bf16.mxu0 %v2572
          %3246 = vmatpush1.bf16.msra.mxu0 %v2571
          %3247 = vmatprep.subr.bf16.mxu0 %v2588
          %3248 = vmatpush1.bf16.msra.mxu0 %v2587
          %3249 = vmatprep.subr.bf16.mxu0 %v2604
          %3250 = vmatpush1.bf16.msra.mxu0 %v2603
          %3251 = vmatprep.subr.bf16.mxu0 %v2620
          %3252 = vmatpush1.bf16.msra.mxu0 %v2619
          %3253 = vmatprep.subr.bf16.mxu0 %v2636
          %3254 = vmatpush1.bf16.msra.mxu0 %v2635
          %3255 = vmatprep.subr.bf16.mxu0 %v2652
          %3256 = vmatpush1.bf16.msra.mxu0 %v2651
          %3257 = vmatprep.subr.bf16.mxu0 %v2668
          %3258 = vmatpush1.bf16.msra.mxu0 %v2667
          %3259 = vmatprep.subr.bf16.mxu0 %v2684
          %3260 = vmatpush1.bf16.msra.mxu0 %v2683
          %3261 = vmatprep.subr.bf16.mxu0 %v2700
          %3262 = vmatpush1.bf16.msra.mxu0 %v2699
          %3263 = vmatprep.subr.bf16.mxu0 %v2716
          %3264 = vmatpush1.bf16.msra.mxu0 %v2715
          %3265 = vmatprep.mubr.bf16.mxu0 %v1692
          %3266 = vmatmul.mubr.bf16.gmra.mrb[0].mxu0 %v1691
          %v3267 = vpop.f32.mrb[0].mxu0
          %v3268 = vadd.f32 %v1656, %v3267
          %v3269 = vpop.f32.mrb[0].mxu0
          %v3270 = vadd.f32 %v1660, %v3269
          %v3271 = vpop.f32.mrb[0].mxu0
          %v3272 = vadd.f32 %v1656, %v3271
          %v3273 = vpop.f32.mrb[0].mxu0
          %v3274 = vadd.f32 %v1660, %v3273
          %3275 = vdwg.mxu0
          %3276 = vmatprep.subr.bf16.mxu0 %v2478
          %3277 = vmatpush1.bf16.msra.mxu0 %v2477
          %3278 = vmatprep.subr.bf16.mxu0 %v2494
          %3279 = vmatpush1.bf16.msra.mxu0 %v2493
          %3280 = vmatprep.subr.bf16.mxu0 %v2510
          %3281 = vmatpush1.bf16.msra.mxu0 %v2509
          %3282 = vmatprep.subr.bf16.mxu0 %v2526
          %3283 = vmatpush1.bf16.msra.mxu0 %v2525
          %3284 = vmatprep.subr.bf16.mxu0 %v2542
          %3285 = vmatpush1.bf16.msra.mxu0 %v2541
          %3286 = vmatprep.subr.bf16.mxu0 %v2558
          %3287 = vmatpush1.bf16.msra.mxu0 %v2557
          %3288 = vmatprep.subr.bf16.mxu0 %v2574
          %3289 = vmatpush1.bf16.msra.mxu0 %v2573
          %3290 = vmatprep.subr.bf16.mxu0 %v2590
          %3291 = vmatpush1.bf16.msra.mxu0 %v2589
          %3292 = vmatprep.subr.bf16.mxu0 %v2606
          %3293 = vmatpush1.bf16.msra.mxu0 %v2605
          %3294 = vmatprep.subr.bf16.mxu0 %v2622
          %3295 = vmatpush1.bf16.msra.mxu0 %v2621
          %3296 = vmatprep.subr.bf16.mxu0 %v2638
          %3297 = vmatpush1.bf16.msra.mxu0 %v2637
          %3298 = vmatprep.subr.bf16.mxu0 %v2654
          %3299 = vmatpush1.bf16.msra.mxu0 %v2653
          %3300 = vmatprep.subr.bf16.mxu0 %v2670
          %3301 = vmatpush1.bf16.msra.mxu0 %v2669
          %3302 = vmatprep.subr.bf16.mxu0 %v2686
          %3303 = vmatpush1.bf16.msra.mxu0 %v2685
          %3304 = vmatprep.subr.bf16.mxu0 %v2702
          %3305 = vmatpush1.bf16.msra.mxu0 %v2701
          %3306 = vmatprep.subr.bf16.mxu0 %v2718
          %3307 = vmatpush1.bf16.msra.mxu0 %v2717
          %3308 = vmatprep.mubr.bf16.mxu0 %v1692
          %3309 = vmatmul.mubr.bf16.gmra.mrb[0].mxu0 %v1691
          %v3310 = vpop.f32.mrb[0].mxu0
          %v3311 = vadd.f32 %v1664, %v3310
          %v3312 = vpop.f32.mrb[0].mxu0
          %v3313 = vadd.f32 %v1668, %v3312
          %v3314 = vpop.f32.mrb[0].mxu0
          %v3315 = vadd.f32 %v1664, %v3314
          %v3316 = vpop.f32.mrb[0].mxu0
          %v3317 = vadd.f32 %v1668, %v3316
          %3318 = vdwg.mxu0
          %vm3319 = vcmp.gt.f32.partialorder %v3010, 0.0
          %vm3320 = vcmp.gt.f32.partialorder %v3012, 0.0
          %vm3321 = vcmp.gt.f32.partialorder %v3053, 0.0
          %vm3322 = vcmp.gt.f32.partialorder %v3055, 0.0
          %vm3323 = vcmp.gt.f32.partialorder %v3096, 0.0
          %vm3324 = vcmp.gt.f32.partialorder %v3098, 0.0
          %vm3325 = vcmp.gt.f32.partialorder %v3139, 0.0
          %vm3326 = vcmp.gt.f32.partialorder %v3141, 0.0
          %vm3327 = vcmp.gt.f32.partialorder %v3182, 0.0
          %vm3328 = vcmp.gt.f32.partialorder %v3184, 0.0
          %vm3329 = vcmp.gt.f32.partialorder %v3225, 0.0
          %vm3330 = vcmp.gt.f32.partialorder %v3227, 0.0
          %vm3331 = vcmp.gt.f32.partialorder %v3268, 0.0
          %vm3332 = vcmp.gt.f32.partialorder %v3270, 0.0
          %vm3333 = vcmp.gt.f32.partialorder %v3311, 0.0
          %vm3334 = vcmp.gt.f32.partialorder %v3313, 0.0
          %vm3335 = vcmp.gt.f32.partialorder %v3014, 0.0
          %vm3336 = vcmp.gt.f32.partialorder %v3016, 0.0
          %vm3337 = vcmp.gt.f32.partialorder %v3057, 0.0
          %vm3338 = vcmp.gt.f32.partialorder %v3059, 0.0
          %vm3339 = vcmp.gt.f32.partialorder %v3100, 0.0
          %vm3340 = vcmp.gt.f32.partialorder %v3102, 0.0
          %vm3341 = vcmp.gt.f32.partialorder %v3143, 0.0
          %vm3342 = vcmp.gt.f32.partialorder %v3145, 0.0
          %vm3343 = vcmp.gt.f32.partialorder %v3186, 0.0
          %vm3344 = vcmp.gt.f32.partialorder %v3188, 0.0
          %vm3345 = vcmp.gt.f32.partialorder %v3229, 0.0
          %vm3346 = vcmp.gt.f32.partialorder %v3231, 0.0
          %vm3347 = vcmp.gt.f32.partialorder %v3272, 0.0
          %vm3348 = vcmp.gt.f32.partialorder %v3274, 0.0
          %vm3349 = vcmp.gt.f32.partialorder %v3315, 0.0
          %vm3350 = vcmp.gt.f32.partialorder %v3317, 0.0
          %v3351 = vmul.f32 %v3010, 0.2
          %v3352 = vmul.f32 %v3012, 0.2
          %v3353 = vmul.f32 %v3053, 0.2
          %v3354 = vmul.f32 %v3055, 0.2
          %v3355 = vmul.f32 %v3096, 0.2
          %v3356 = vmul.f32 %v3098, 0.2
          %v3357 = vmul.f32 %v3139, 0.2
          %v3358 = vmul.f32 %v3141, 0.2
          %v3359 = vmul.f32 %v3182, 0.2
          %v3360 = vmul.f32 %v3184, 0.2
          %v3361 = vmul.f32 %v3225, 0.2
          %v3362 = vmul.f32 %v3227, 0.2
          %v3363 = vmul.f32 %v3268, 0.2
          %v3364 = vmul.f32 %v3270, 0.2
          %v3365 = vmul.f32 %v3311, 0.2
          %v3366 = vmul.f32 %v3313, 0.2
          %v3367 = vmul.f32 %v3014, 0.2
          %v3368 = vmul.f32 %v3016, 0.2
          %v3369 = vmul.f32 %v3057, 0.2
          %v3370 = vmul.f32 %v3059, 0.2
          %v3371 = vmul.f32 %v3100, 0.2
          %v3372 = vmul.f32 %v3102, 0.2
          %v3373 = vmul.f32 %v3143, 0.2
          %v3374 = vmul.f32 %v3145, 0.2
          %v3375 = vmul.f32 %v3186, 0.2
          %v3376 = vmul.f32 %v3188, 0.2
          %v3377 = vmul.f32 %v3229, 0.2
          %v3378 = vmul.f32 %v3231, 0.2
          %v3379 = vmul.f32 %v3272, 0.2
          %v3380 = vmul.f32 %v3274, 0.2
          %v3381 = vmul.f32 %v3315, 0.2
          %v3382 = vmul.f32 %v3317, 0.2
          %v3383 = vsel %vm3319, %v3010, %v3351
          %v3384 = vsel %vm3320, %v3012, %v3352
          %v3385 = vsel %vm3321, %v3053, %v3353
          %v3386 = vsel %vm3322, %v3055, %v3354
          %v3387 = vsel %vm3323, %v3096, %v3355
          %v3388 = vsel %vm3324, %v3098, %v3356
          %v3389 = vsel %vm3325, %v3139, %v3357
          %v3390 = vsel %vm3326, %v3141, %v3358
          %v3391 = vsel %vm3327, %v3182, %v3359
          %v3392 = vsel %vm3328, %v3184, %v3360
          %v3393 = vsel %vm3329, %v3225, %v3361
          %v3394 = vsel %vm3330, %v3227, %v3362
          %v3395 = vsel %vm3331, %v3268, %v3363
          %v3396 = vsel %vm3332, %v3270, %v3364
          %v3397 = vsel %vm3333, %v3311, %v3365
          %v3398 = vsel %vm3334, %v3313, %v3366
          %v3399 = vsel %vm3335, %v3014, %v3367
          %v3400 = vsel %vm3336, %v3016, %v3368
          %v3401 = vsel %vm3337, %v3057, %v3369
          %v3402 = vsel %vm3338, %v3059, %v3370
          %v3403 = vsel %vm3339, %v3100, %v3371
          %v3404 = vsel %vm3340, %v3102, %v3372
          %v3405 = vsel %vm3341, %v3143, %v3373
          %v3406 = vsel %vm3342, %v3145, %v3374
          %v3407 = vsel %vm3343, %v3186, %v3375
          %v3408 = vsel %vm3344, %v3188, %v3376
          %v3409 = vsel %vm3345, %v3229, %v3377
          %v3410 = vsel %vm3346, %v3231, %v3378
          %v3411 = vsel %vm3347, %v3272, %v3379
          %v3412 = vsel %vm3348, %v3274, %v3380
          %v3413 = vsel %vm3349, %v3315, %v3381
          %v3414 = vsel %vm3350, %v3317, %v3382
          %v3415 = vpack.c.bf16 %v3399, %v3383
          %v3416 = vpack.c.bf16 %v3400, %v3384
          %v3417 = vpack.c.bf16 %v3401, %v3385
          %v3418 = vpack.c.bf16 %v3402, %v3386
          %v3419 = vpack.c.bf16 %v3403, %v3387
          %v3420 = vpack.c.bf16 %v3404, %v3388
          %v3421 = vpack.c.bf16 %v3405, %v3389
          %v3422 = vpack.c.bf16 %v3406, %v3390
          %v3423 = vpack.c.bf16 %v3407, %v3391
          %v3424 = vpack.c.bf16 %v3408, %v3392
          %v3425 = vpack.c.bf16 %v3409, %v3393
          %v3426 = vpack.c.bf16 %v3410, %v3394
          %v3427 = vpack.c.bf16 %v3411, %v3395
          %v3428 = vpack.c.bf16 %v3412, %v3396
          %v3429 = vpack.c.bf16 %v3413, %v3397
          %v3430 = vpack.c.bf16 %v3414, %v3398
          %3431 = vst [vmem:[#allocation2] sm:$0xff] %v3415
          %3432 = vst [vmem:[#allocation2 + $0x8] sm:$0xff] %v3416
          %3433 = vst [vmem:[#allocation2 + $0x10] sm:$0xff] %v3417
          %3434 = vst [vmem:[#allocation2 + $0x18] sm:$0xff] %v3418
          %3435 = vst [vmem:[#allocation2 + $0x20] sm:$0xff] %v3419
          %3436 = vst [vmem:[#allocation2 + $0x28] sm:$0xff] %v3420
          %3437 = vst [vmem:[#allocation2 + $0x30] sm:$0xff] %v3421
          %3438 = vst [vmem:[#allocation2 + $0x38] sm:$0xff] %v3422
          %3439 = vst [vmem:[#allocation2 + $0x40] sm:$0xff] %v3423
          %3440 = vst [vmem:[#allocation2 + $0x48] sm:$0xff] %v3424
          %3441 = vst [vmem:[#allocation2 + $0x50] sm:$0xff] %v3425
          %3442 = vst [vmem:[#allocation2 + $0x58] sm:$0xff] %v3426
          %3443 = vst [vmem:[#allocation2 + $0x60] sm:$0xff] %v3427
          %3444 = vst [vmem:[#allocation2 + $0x68] sm:$0xff] %v3428
          %3445 = vst [vmem:[#allocation2 + $0x70] sm:$0xff] %v3429
          %3446 = vst [vmem:[#allocation2 + $0x78] sm:$0xff] %v3430
        $region85: #{generator_head_forward.1} parent=76 // pred_fallthru
          _
        %v3447 = vld [vmem:[#allocation2] sm:$0xff]
        %v3448 = vld [vmem:[#allocation2 + $0x8] sm:$0xff]
        %v3449 = vld [vmem:[#allocation2 + $0x10] sm:$0xff]
        %v3450 = vld [vmem:[#allocation2 + $0x18] sm:$0xff]
        %v3451 = vld [vmem:[#allocation2 + $0x20] sm:$0xff]
        %v3452 = vld [vmem:[#allocation2 + $0x28] sm:$0xff]
        %v3453 = vld [vmem:[#allocation2 + $0x30] sm:$0xff]
        %v3454 = vld [vmem:[#allocation2 + $0x38] sm:$0xff]
        %v3455 = vld [vmem:[#allocation2 + $0x40] sm:$0xff]
        %v3456 = vld [vmem:[#allocation2 + $0x48] sm:$0xff]
        %v3457 = vld [vmem:[#allocation2 + $0x50] sm:$0xff]
        %v3458 = vld [vmem:[#allocation2 + $0x58] sm:$0xff]
        %v3459 = vld [vmem:[#allocation2 + $0x60] sm:$0xff]
        %v3460 = vld [vmem:[#allocation2 + $0x68] sm:$0xff]
        %v3461 = vld [vmem:[#allocation2 + $0x70] sm:$0xff]
        %v3462 = vld [vmem:[#allocation2 + $0x78] sm:$0xff]
        %v3463 = vld [vmem:[%s1293] sm:$0xf]
        %v3464 = vld [vmem:[%s1293 + $0x4] sm:$0xf]
        %v3465 = vld [vmem:[%s1293 + $0x8] sm:$0xf]
        %v3466 = vld [vmem:[%s1293 + $0xc] sm:$0xf]
        %v3467 = vld [vmem:[%s1293 + $0x10] sm:$0xf]
        %v3468 = vld [vmem:[%s1293 + $0x14] sm:$0xf]
        %v3469 = vld [vmem:[%s1293 + $0x18] sm:$0xf]
        %v3470 = vld [vmem:[%s1293 + $0x1c] sm:$0xf]
        %v3471 = vld [vmem:[%s1293 + $0x20] sm:$0xf]
        %v3472 = vld [vmem:[%s1293 + $0x24] sm:$0xf]
        %v3473 = vld [vmem:[%s1293 + $0x28] sm:$0xf]
        %v3474 = vld [vmem:[%s1293 + $0x2c] sm:$0xf]
        %v3475 = vld [vmem:[%s1293 + $0x30] sm:$0xf]
        %v3476 = vld [vmem:[%s1293 + $0x34] sm:$0xf]
        %v3477 = vld [vmem:[%s1293 + $0x38] sm:$0xf]
        %v3478 = vld [vmem:[%s1293 + $0x3c] sm:$0xf]
        %v3479 = vld [vmem:[%s1293 + $0x40] sm:$0xf]
        %v3480 = vld [vmem:[%s1293 + $0x44] sm:$0xf]
        %v3481 = vld [vmem:[%s1293 + $0x48] sm:$0xf]
        %v3482 = vld [vmem:[%s1293 + $0x4c] sm:$0xf]
        %v3483 = vld [vmem:[%s1293 + $0x50] sm:$0xf]
        %v3484 = vld [vmem:[%s1293 + $0x54] sm:$0xf]
        %v3485 = vld [vmem:[%s1293 + $0x58] sm:$0xf]
        %v3486 = vld [vmem:[%s1293 + $0x5c] sm:$0xf]
        %v3487 = vld [vmem:[%s1293 + $0x60] sm:$0xf]
        %v3488 = vld [vmem:[%s1293 + $0x64] sm:$0xf]
        %v3489 = vld [vmem:[%s1293 + $0x68] sm:$0xf]
        %v3490 = vld [vmem:[%s1293 + $0x6c] sm:$0xf]
        %v3491 = vld [vmem:[%s1293 + $0x70] sm:$0xf]
        %v3492 = vld [vmem:[%s1293 + $0x74] sm:$0xf]
        %v3493 = vld [vmem:[%s1293 + $0x78] sm:$0xf]
        %v3494 = vld [vmem:[%s1293 + $0x7c] sm:$0xf]
        %v3495 = vld [vmem:[%s1293 + $0x80] sm:$0xf]
        %v3496 = vld [vmem:[%s1293 + $0x84] sm:$0xf]
        %v3497 = vld [vmem:[%s1293 + $0x88] sm:$0xf]
        %v3498 = vld [vmem:[%s1293 + $0x8c] sm:$0xf]
        %v3499 = vld [vmem:[%s1293 + $0x90] sm:$0xf]
        %v3500 = vld [vmem:[%s1293 + $0x94] sm:$0xf]
        %v3501 = vld [vmem:[%s1293 + $0x98] sm:$0xf]
        %v3502 = vld [vmem:[%s1293 + $0x9c] sm:$0xf]
        %v3503 = vld [vmem:[%s1293 + $0xa0] sm:$0xf]
        %v3504 = vld [vmem:[%s1293 + $0xa4] sm:$0xf]
        %v3505 = vld [vmem:[%s1293 + $0xa8] sm:$0xf]
        %v3506 = vld [vmem:[%s1293 + $0xac] sm:$0xf]
        %v3507 = vld [vmem:[%s1293 + $0xb0] sm:$0xf]
        %v3508 = vld [vmem:[%s1293 + $0xb4] sm:$0xf]
        %v3509 = vld [vmem:[%s1293 + $0xb8] sm:$0xf]
        %v3510 = vld [vmem:[%s1293 + $0xbc] sm:$0xf]
        %v3511 = vld [vmem:[%s1293 + $0xc0] sm:$0xf]
        %v3512 = vld [vmem:[%s1293 + $0xc4] sm:$0xf]
        %v3513 = vld [vmem:[%s1293 + $0xc8] sm:$0xf]
        %v3514 = vld [vmem:[%s1293 + $0xcc] sm:$0xf]
        %v3515 = vld [vmem:[%s1293 + $0xd0] sm:$0xf]
        %v3516 = vld [vmem:[%s1293 + $0xd4] sm:$0xf]
        %v3517 = vld [vmem:[%s1293 + $0xd8] sm:$0xf]
        %v3518 = vld [vmem:[%s1293 + $0xdc] sm:$0xf]
        %v3519 = vld [vmem:[%s1293 + $0xe0] sm:$0xf]
        %v3520 = vld [vmem:[%s1293 + $0xe4] sm:$0xf]
        %v3521 = vld [vmem:[%s1293 + $0xe8] sm:$0xf]
        %v3522 = vld [vmem:[%s1293 + $0xec] sm:$0xf]
        %v3523 = vld [vmem:[%s1293 + $0xf0] sm:$0xf]
        %v3524 = vld [vmem:[%s1293 + $0xf4] sm:$0xf]
        %v3525 = vld [vmem:[%s1293 + $0xf8] sm:$0xf]
        %v3526 = vld [vmem:[%s1293 + $0xfc] sm:$0xf]
        %v3527 = vld [vmem:[%s1293 + $0x100] sm:$0xf]
        %v3528 = vld [vmem:[%s1293 + $0x104] sm:$0xf]
        %v3529 = vld [vmem:[%s1293 + $0x108] sm:$0xf]
        %v3530 = vld [vmem:[%s1293 + $0x10c] sm:$0xf]
        %v3531 = vld [vmem:[%s1293 + $0x110] sm:$0xf]
        %v3532 = vld [vmem:[%s1293 + $0x114] sm:$0xf]
        %v3533 = vld [vmem:[%s1293 + $0x118] sm:$0xf]
        %v3534 = vld [vmem:[%s1293 + $0x11c] sm:$0xf]
        %v3535 = vld [vmem:[%s1293 + $0x120] sm:$0xf]
        %v3536 = vld [vmem:[%s1293 + $0x124] sm:$0xf]
        %v3537 = vld [vmem:[%s1293 + $0x128] sm:$0xf]
        %v3538 = vld [vmem:[%s1293 + $0x12c] sm:$0xf]
        %v3539 = vld [vmem:[%s1293 + $0x130] sm:$0xf]
        %v3540 = vld [vmem:[%s1293 + $0x134] sm:$0xf]
        %v3541 = vld [vmem:[%s1293 + $0x138] sm:$0xf]
        %v3542 = vld [vmem:[%s1293 + $0x13c] sm:$0xf]
        %v3543 = vld [vmem:[%s1293 + $0x140] sm:$0xf]
        %v3544 = vld [vmem:[%s1293 + $0x144] sm:$0xf]
        %v3545 = vld [vmem:[%s1293 + $0x148] sm:$0xf]
        %v3546 = vld [vmem:[%s1293 + $0x14c] sm:$0xf]
        %v3547 = vld [vmem:[%s1293 + $0x150] sm:$0xf]
        %v3548 = vld [vmem:[%s1293 + $0x154] sm:$0xf]
        %v3549 = vld [vmem:[%s1293 + $0x158] sm:$0xf]
        %v3550 = vld [vmem:[%s1293 + $0x15c] sm:$0xf]
        %v3551 = vld [vmem:[%s1293 + $0x160] sm:$0xf]
        %v3552 = vld [vmem:[%s1293 + $0x164] sm:$0xf]
        %v3553 = vld [vmem:[%s1293 + $0x168] sm:$0xf]
        %v3554 = vld [vmem:[%s1293 + $0x16c] sm:$0xf]
        %v3555 = vld [vmem:[%s1293 + $0x170] sm:$0xf]
        %v3556 = vld [vmem:[%s1293 + $0x174] sm:$0xf]
        %v3557 = vld [vmem:[%s1293 + $0x178] sm:$0xf]
        %v3558 = vld [vmem:[%s1293 + $0x17c] sm:$0xf]
        %v3559 = vld [vmem:[%s1293 + $0x180] sm:$0xf]
        %v3560 = vld [vmem:[%s1293 + $0x184] sm:$0xf]
        %v3561 = vld [vmem:[%s1293 + $0x188] sm:$0xf]
        %v3562 = vld [vmem:[%s1293 + $0x18c] sm:$0xf]
        %v3563 = vld [vmem:[%s1293 + $0x190] sm:$0xf]
        %v3564 = vld [vmem:[%s1293 + $0x194] sm:$0xf]
        %v3565 = vld [vmem:[%s1293 + $0x198] sm:$0xf]
        %v3566 = vld [vmem:[%s1293 + $0x19c] sm:$0xf]
        %v3567 = vld [vmem:[%s1293 + $0x1a0] sm:$0xf]
        %v3568 = vld [vmem:[%s1293 + $0x1a4] sm:$0xf]
        %v3569 = vld [vmem:[%s1293 + $0x1a8] sm:$0xf]
        %v3570 = vld [vmem:[%s1293 + $0x1ac] sm:$0xf]
        %v3571 = vld [vmem:[%s1293 + $0x1b0] sm:$0xf]
        %v3572 = vld [vmem:[%s1293 + $0x1b4] sm:$0xf]
        %v3573 = vld [vmem:[%s1293 + $0x1b8] sm:$0xf]
        %v3574 = vld [vmem:[%s1293 + $0x1bc] sm:$0xf]
        %v3575 = vld [vmem:[%s1293 + $0x1c0] sm:$0xf]
        %v3576 = vld [vmem:[%s1293 + $0x1c4] sm:$0xf]
        %v3577 = vld [vmem:[%s1293 + $0x1c8] sm:$0xf]
        %v3578 = vld [vmem:[%s1293 + $0x1cc] sm:$0xf]
        %v3579 = vld [vmem:[%s1293 + $0x1d0] sm:$0xf]
        %v3580 = vld [vmem:[%s1293 + $0x1d4] sm:$0xf]
        %v3581 = vld [vmem:[%s1293 + $0x1d8] sm:$0xf]
        %v3582 = vld [vmem:[%s1293 + $0x1dc] sm:$0xf]
        %v3583 = vld [vmem:[%s1293 + $0x1e0] sm:$0xf]
        %v3584 = vld [vmem:[%s1293 + $0x1e4] sm:$0xf]
        %v3585 = vld [vmem:[%s1293 + $0x1e8] sm:$0xf]
        %v3586 = vld [vmem:[%s1293 + $0x1ec] sm:$0xf]
        %v3587 = vld [vmem:[%s1293 + $0x1f0] sm:$0xf]
        %v3588 = vld [vmem:[%s1293 + $0x1f4] sm:$0xf]
        %v3589 = vld [vmem:[%s1293 + $0x1f8] sm:$0xf]
        %v3590 = vld [vmem:[%s1293 + $0x1fc] sm:$0xf]
        %v3591 = vld [vmem:[%s1293 + $0x200] sm:$0xf]
        %v3592 = vld [vmem:[%s1293 + $0x204] sm:$0xf]
        %v3593 = vld [vmem:[%s1293 + $0x208] sm:$0xf]
        %v3594 = vld [vmem:[%s1293 + $0x20c] sm:$0xf]
        %v3595 = vld [vmem:[%s1293 + $0x210] sm:$0xf]
        %v3596 = vld [vmem:[%s1293 + $0x214] sm:$0xf]
        %v3597 = vld [vmem:[%s1293 + $0x218] sm:$0xf]
        %v3598 = vld [vmem:[%s1293 + $0x21c] sm:$0xf]
        %v3599 = vld [vmem:[%s1293 + $0x220] sm:$0xf]
        %v3600 = vld [vmem:[%s1293 + $0x224] sm:$0xf]
        %v3601 = vld [vmem:[%s1293 + $0x228] sm:$0xf]
        %v3602 = vld [vmem:[%s1293 + $0x22c] sm:$0xf]
        %v3603 = vld [vmem:[%s1293 + $0x230] sm:$0xf]
        %v3604 = vld [vmem:[%s1293 + $0x234] sm:$0xf]
        %v3605 = vld [vmem:[%s1293 + $0x238] sm:$0xf]
        %v3606 = vld [vmem:[%s1293 + $0x23c] sm:$0xf]
        %v3607 = vld [vmem:[%s1293 + $0x240] sm:$0xf]
        %v3608 = vld [vmem:[%s1293 + $0x244] sm:$0xf]
        %v3609 = vld [vmem:[%s1293 + $0x248] sm:$0xf]
        %v3610 = vld [vmem:[%s1293 + $0x24c] sm:$0xf]
        %v3611 = vld [vmem:[%s1293 + $0x250] sm:$0xf]
        %v3612 = vld [vmem:[%s1293 + $0x254] sm:$0xf]
        %v3613 = vld [vmem:[%s1293 + $0x258] sm:$0xf]
        %v3614 = vld [vmem:[%s1293 + $0x25c] sm:$0xf]
        %v3615 = vld [vmem:[%s1293 + $0x260] sm:$0xf]
        %v3616 = vld [vmem:[%s1293 + $0x264] sm:$0xf]
        %v3617 = vld [vmem:[%s1293 + $0x268] sm:$0xf]
        %v3618 = vld [vmem:[%s1293 + $0x26c] sm:$0xf]
        %v3619 = vld [vmem:[%s1293 + $0x270] sm:$0xf]
        %v3620 = vld [vmem:[%s1293 + $0x274] sm:$0xf]
        %v3621 = vld [vmem:[%s1293 + $0x278] sm:$0xf]
        %v3622 = vld [vmem:[%s1293 + $0x27c] sm:$0xf]
        %v3623 = vld [vmem:[%s1293 + $0x280] sm:$0xf]
        %v3624 = vld [vmem:[%s1293 + $0x284] sm:$0xf]
        %v3625 = vld [vmem:[%s1293 + $0x288] sm:$0xf]
        %v3626 = vld [vmem:[%s1293 + $0x28c] sm:$0xf]
        %v3627 = vld [vmem:[%s1293 + $0x290] sm:$0xf]
        %v3628 = vld [vmem:[%s1293 + $0x294] sm:$0xf]
        %v3629 = vld [vmem:[%s1293 + $0x298] sm:$0xf]
        %v3630 = vld [vmem:[%s1293 + $0x29c] sm:$0xf]
        %v3631 = vld [vmem:[%s1293 + $0x2a0] sm:$0xf]
        %v3632 = vld [vmem:[%s1293 + $0x2a4] sm:$0xf]
        %v3633 = vld [vmem:[%s1293 + $0x2a8] sm:$0xf]
        %v3634 = vld [vmem:[%s1293 + $0x2ac] sm:$0xf]
        %v3635 = vld [vmem:[%s1293 + $0x2b0] sm:$0xf]
        %v3636 = vld [vmem:[%s1293 + $0x2b4] sm:$0xf]
        %v3637 = vld [vmem:[%s1293 + $0x2b8] sm:$0xf]
        %v3638 = vld [vmem:[%s1293 + $0x2bc] sm:$0xf]
        %v3639 = vld [vmem:[%s1293 + $0x2c0] sm:$0xf]
        %v3640 = vld [vmem:[%s1293 + $0x2c4] sm:$0xf]
        %v3641 = vld [vmem:[%s1293 + $0x2c8] sm:$0xf]
        %v3642 = vld [vmem:[%s1293 + $0x2cc] sm:$0xf]
        %v3643 = vld [vmem:[%s1293 + $0x2d0] sm:$0xf]
        %v3644 = vld [vmem:[%s1293 + $0x2d4] sm:$0xf]
        %v3645 = vld [vmem:[%s1293 + $0x2d8] sm:$0xf]
        %v3646 = vld [vmem:[%s1293 + $0x2dc] sm:$0xf]
        %v3647 = vld [vmem:[%s1293 + $0x2e0] sm:$0xf]
        %v3648 = vld [vmem:[%s1293 + $0x2e4] sm:$0xf]
        %v3649 = vld [vmem:[%s1293 + $0x2e8] sm:$0xf]
        %v3650 = vld [vmem:[%s1293 + $0x2ec] sm:$0xf]
        %v3651 = vld [vmem:[%s1293 + $0x2f0] sm:$0xf]
        %v3652 = vld [vmem:[%s1293 + $0x2f4] sm:$0xf]
        %v3653 = vld [vmem:[%s1293 + $0x2f8] sm:$0xf]
        %v3654 = vld [vmem:[%s1293 + $0x2fc] sm:$0xf]
        %v3655 = vld [vmem:[%s1293 + $0x300] sm:$0xf]
        %v3656 = vld [vmem:[%s1293 + $0x304] sm:$0xf]
        %v3657 = vld [vmem:[%s1293 + $0x308] sm:$0xf]
        %v3658 = vld [vmem:[%s1293 + $0x30c] sm:$0xf]
        %v3659 = vld [vmem:[%s1293 + $0x310] sm:$0xf]
        %v3660 = vld [vmem:[%s1293 + $0x314] sm:$0xf]
        %v3661 = vld [vmem:[%s1293 + $0x318] sm:$0xf]
        %v3662 = vld [vmem:[%s1293 + $0x31c] sm:$0xf]
        %v3663 = vld [vmem:[%s1293 + $0x320] sm:$0xf]
        %v3664 = vld [vmem:[%s1293 + $0x324] sm:$0xf]
        %v3665 = vld [vmem:[%s1293 + $0x328] sm:$0xf]
        %v3666 = vld [vmem:[%s1293 + $0x32c] sm:$0xf]
        %v3667 = vld [vmem:[%s1293 + $0x330] sm:$0xf]
        %v3668 = vld [vmem:[%s1293 + $0x334] sm:$0xf]
        %v3669 = vld [vmem:[%s1293 + $0x338] sm:$0xf]
        %v3670 = vld [vmem:[%s1293 + $0x33c] sm:$0xf]
        %v3671 = vld [vmem:[%s1293 + $0x340] sm:$0xf]
        %v3672 = vld [vmem:[%s1293 + $0x344] sm:$0xf]
        %v3673 = vld [vmem:[%s1293 + $0x348] sm:$0xf]
        %v3674 = vld [vmem:[%s1293 + $0x34c] sm:$0xf]
        %v3675 = vld [vmem:[%s1293 + $0x350] sm:$0xf]
        %v3676 = vld [vmem:[%s1293 + $0x354] sm:$0xf]
        %v3677 = vld [vmem:[%s1293 + $0x358] sm:$0xf]
        %v3678 = vld [vmem:[%s1293 + $0x35c] sm:$0xf]
        %v3679 = vld [vmem:[%s1293 + $0x360] sm:$0xf]
        %v3680 = vld [vmem:[%s1293 + $0x364] sm:$0xf]
        %v3681 = vld [vmem:[%s1293 + $0x368] sm:$0xf]
        %v3682 = vld [vmem:[%s1293 + $0x36c] sm:$0xf]
        %v3683 = vld [vmem:[%s1293 + $0x370] sm:$0xf]
        %v3684 = vld [vmem:[%s1293 + $0x374] sm:$0xf]
        %v3685 = vld [vmem:[%s1293 + $0x378] sm:$0xf]
        %v3686 = vld [vmem:[%s1293 + $0x37c] sm:$0xf]
        %v3687 = vld [vmem:[%s1293 + $0x380] sm:$0xf]
        %v3688 = vld [vmem:[%s1293 + $0x384] sm:$0xf]
        %v3689 = vld [vmem:[%s1293 + $0x388] sm:$0xf]
        %v3690 = vld [vmem:[%s1293 + $0x38c] sm:$0xf]
        %v3691 = vld [vmem:[%s1293 + $0x390] sm:$0xf]
        %v3692 = vld [vmem:[%s1293 + $0x394] sm:$0xf]
        %v3693 = vld [vmem:[%s1293 + $0x398] sm:$0xf]
        %v3694 = vld [vmem:[%s1293 + $0x39c] sm:$0xf]
        %v3695 = vld [vmem:[%s1293 + $0x3a0] sm:$0xf]
        %v3696 = vld [vmem:[%s1293 + $0x3a4] sm:$0xf]
        %v3697 = vld [vmem:[%s1293 + $0x3a8] sm:$0xf]
        %v3698 = vld [vmem:[%s1293 + $0x3ac] sm:$0xf]
        %v3699 = vld [vmem:[%s1293 + $0x3b0] sm:$0xf]
        %v3700 = vld [vmem:[%s1293 + $0x3b4] sm:$0xf]
        %v3701 = vld [vmem:[%s1293 + $0x3b8] sm:$0xf]
        %v3702 = vld [vmem:[%s1293 + $0x3bc] sm:$0xf]
        %v3703 = vld [vmem:[%s1293 + $0x3c0] sm:$0xf]
        %v3704 = vld [vmem:[%s1293 + $0x3c4] sm:$0xf]
        %v3705 = vld [vmem:[%s1293 + $0x3c8] sm:$0xf]
        %v3706 = vld [vmem:[%s1293 + $0x3cc] sm:$0xf]
        %v3707 = vld [vmem:[%s1293 + $0x3d0] sm:$0xf]
        %v3708 = vld [vmem:[%s1293 + $0x3d4] sm:$0xf]
        %v3709 = vld [vmem:[%s1293 + $0x3d8] sm:$0xf]
        %v3710 = vld [vmem:[%s1293 + $0x3dc] sm:$0xf]
        %v3711 = vld [vmem:[%s1293 + $0x3e0] sm:$0xf]
        %v3712 = vld [vmem:[%s1293 + $0x3e4] sm:$0xf]
        %v3713 = vld [vmem:[%s1293 + $0x3e8] sm:$0xf]
        %v3714 = vld [vmem:[%s1293 + $0x3ec] sm:$0xf]
        %v3715 = vld [vmem:[%s1293 + $0x3f0] sm:$0xf]
        %v3716 = vld [vmem:[%s1293 + $0x3f4] sm:$0xf]
        %v3717 = vld [vmem:[%s1293 + $0x3f8] sm:$0xf]
        %v3718 = vld [vmem:[%s1293 + $0x3fc] sm:$0xf]
        %v3719 = vld [vmem:[%s1336] sm:$0x1]
        %v3721 = vlaneseq
        %v3722 = vshrl.u32 %v3721, 7
        %v3723 = vsub.s32 0, %v3722
        %v3724 = vrot.slane %v3719, %v3723
        %v3982 = vunpack.c.l.b16 %v3463
        %v3983 = vunpack.c.l.b16 %v3464
        %v3984 = vunpack.c.l.b16 %v3465
        %v3985 = vunpack.c.l.b16 %v3466
        %v3986 = vunpack.c.l.b16 %v3467
        %v3987 = vunpack.c.l.b16 %v3468
        %v3988 = vunpack.c.l.b16 %v3469
        %v3989 = vunpack.c.l.b16 %v3470
        %v3990 = vunpack.c.l.b16 %v3471
        %v3991 = vunpack.c.l.b16 %v3472
        %v3992 = vunpack.c.l.b16 %v3473
        %v3993 = vunpack.c.l.b16 %v3474
        %v3994 = vunpack.c.l.b16 %v3475
        %v3995 = vunpack.c.l.b16 %v3476
        %v3996 = vunpack.c.l.b16 %v3477
        %v3997 = vunpack.c.l.b16 %v3478
        %v3998 = vunpack.c.l.b16 %v3479
        %v3999 = vunpack.c.l.b16 %v3480
        %v4000 = vunpack.c.l.b16 %v3481
        %v4001 = vunpack.c.l.b16 %v3482
        %v4002 = vunpack.c.l.b16 %v3483
        %v4003 = vunpack.c.l.b16 %v3484
        %v4004 = vunpack.c.l.b16 %v3485
        %v4005 = vunpack.c.l.b16 %v3486
        %v4006 = vunpack.c.l.b16 %v3487
        %v4007 = vunpack.c.l.b16 %v3488
        %v4008 = vunpack.c.l.b16 %v3489
        %v4009 = vunpack.c.l.b16 %v3490
        %v4010 = vunpack.c.l.b16 %v3491
        %v4011 = vunpack.c.l.b16 %v3492
        %v4012 = vunpack.c.l.b16 %v3493
        %v4013 = vunpack.c.l.b16 %v3494
        %v4014 = vunpack.c.l.b16 %v3495
        %v4015 = vunpack.c.l.b16 %v3496
        %v4016 = vunpack.c.l.b16 %v3497
        %v4017 = vunpack.c.l.b16 %v3498
        %v4018 = vunpack.c.l.b16 %v3499
        %v4019 = vunpack.c.l.b16 %v3500
        %v4020 = vunpack.c.l.b16 %v3501
        %v4021 = vunpack.c.l.b16 %v3502
        %v4022 = vunpack.c.l.b16 %v3503
        %v4023 = vunpack.c.l.b16 %v3504
        %v4024 = vunpack.c.l.b16 %v3505
        %v4025 = vunpack.c.l.b16 %v3506
        %v4026 = vunpack.c.l.b16 %v3507
        %v4027 = vunpack.c.l.b16 %v3508
        %v4028 = vunpack.c.l.b16 %v3509
        %v4029 = vunpack.c.l.b16 %v3510
        %v4030 = vunpack.c.l.b16 %v3511
        %v4031 = vunpack.c.l.b16 %v3512
        %v4032 = vunpack.c.l.b16 %v3513
        %v4033 = vunpack.c.l.b16 %v3514
        %v4034 = vunpack.c.l.b16 %v3515
        %v4035 = vunpack.c.l.b16 %v3516
        %v4036 = vunpack.c.l.b16 %v3517
        %v4037 = vunpack.c.l.b16 %v3518
        %v4038 = vunpack.c.l.b16 %v3519
        %v4039 = vunpack.c.l.b16 %v3520
        %v4040 = vunpack.c.l.b16 %v3521
        %v4041 = vunpack.c.l.b16 %v3522
        %v4042 = vunpack.c.l.b16 %v3523
        %v4043 = vunpack.c.l.b16 %v3524
        %v4044 = vunpack.c.l.b16 %v3525
        %v4045 = vunpack.c.l.b16 %v3526
        %v4046 = vunpack.c.l.b16 %v3527
        %v4047 = vunpack.c.l.b16 %v3528
        %v4048 = vunpack.c.l.b16 %v3529
        %v4049 = vunpack.c.l.b16 %v3530
        %v4050 = vunpack.c.l.b16 %v3531
        %v4051 = vunpack.c.l.b16 %v3532
        %v4052 = vunpack.c.l.b16 %v3533
        %v4053 = vunpack.c.l.b16 %v3534
        %v4054 = vunpack.c.l.b16 %v3535
        %v4055 = vunpack.c.l.b16 %v3536
        %v4056 = vunpack.c.l.b16 %v3537
        %v4057 = vunpack.c.l.b16 %v3538
        %v4058 = vunpack.c.l.b16 %v3539
        %v4059 = vunpack.c.l.b16 %v3540
        %v4060 = vunpack.c.l.b16 %v3541
        %v4061 = vunpack.c.l.b16 %v3542
        %v4062 = vunpack.c.l.b16 %v3543
        %v4063 = vunpack.c.l.b16 %v3544
        %v4064 = vunpack.c.l.b16 %v3545
        %v4065 = vunpack.c.l.b16 %v3546
        %v4066 = vunpack.c.l.b16 %v3547
        %v4067 = vunpack.c.l.b16 %v3548
        %v4068 = vunpack.c.l.b16 %v3549
        %v4069 = vunpack.c.l.b16 %v3550
        %v4070 = vunpack.c.l.b16 %v3551
        %v4071 = vunpack.c.l.b16 %v3552
        %v4072 = vunpack.c.l.b16 %v3553
        %v4073 = vunpack.c.l.b16 %v3554
        %v4074 = vunpack.c.l.b16 %v3555
        %v4075 = vunpack.c.l.b16 %v3556
        %v4076 = vunpack.c.l.b16 %v3557
        %v4077 = vunpack.c.l.b16 %v3558
        %v4078 = vunpack.c.l.b16 %v3559
        %v4079 = vunpack.c.l.b16 %v3560
        %v4080 = vunpack.c.l.b16 %v3561
        %v4081 = vunpack.c.l.b16 %v3562
        %v4082 = vunpack.c.l.b16 %v3563
        %v4083 = vunpack.c.l.b16 %v3564
        %v4084 = vunpack.c.l.b16 %v3565
        %v4085 = vunpack.c.l.b16 %v3566
        %v4086 = vunpack.c.l.b16 %v3567
        %v4087 = vunpack.c.l.b16 %v3568
        %v4088 = vunpack.c.l.b16 %v3569
        %v4089 = vunpack.c.l.b16 %v3570
        %v4090 = vunpack.c.l.b16 %v3571
        %v4091 = vunpack.c.l.b16 %v3572
        %v4092 = vunpack.c.l.b16 %v3573
        %v4093 = vunpack.c.l.b16 %v3574
        %v4094 = vunpack.c.l.b16 %v3575
        %v4095 = vunpack.c.l.b16 %v3576
        %v4096 = vunpack.c.l.b16 %v3577
        %v4097 = vunpack.c.l.b16 %v3578
        %v4098 = vunpack.c.l.b16 %v3579
        %v4099 = vunpack.c.l.b16 %v3580
        %v4100 = vunpack.c.l.b16 %v3581
        %v4101 = vunpack.c.l.b16 %v3582
        %v4102 = vunpack.c.l.b16 %v3583
        %v4103 = vunpack.c.l.b16 %v3584
        %v4104 = vunpack.c.l.b16 %v3585
        %v4105 = vunpack.c.l.b16 %v3586
        %v4106 = vunpack.c.l.b16 %v3587
        %v4107 = vunpack.c.l.b16 %v3588
        %v4108 = vunpack.c.l.b16 %v3589
        %v4109 = vunpack.c.l.b16 %v3590
        %v4110 = vunpack.c.l.b16 %v3591
        %v4111 = vunpack.c.l.b16 %v3592
        %v4112 = vunpack.c.l.b16 %v3593
        %v4113 = vunpack.c.l.b16 %v3594
        %v4114 = vunpack.c.l.b16 %v3595
        %v4115 = vunpack.c.l.b16 %v3596
        %v4116 = vunpack.c.l.b16 %v3597
        %v4117 = vunpack.c.l.b16 %v3598
        %v4118 = vunpack.c.l.b16 %v3599
        %v4119 = vunpack.c.l.b16 %v3600
        %v4120 = vunpack.c.l.b16 %v3601
        %v4121 = vunpack.c.l.b16 %v3602
        %v4122 = vunpack.c.l.b16 %v3603
        %v4123 = vunpack.c.l.b16 %v3604
        %v4124 = vunpack.c.l.b16 %v3605
        %v4125 = vunpack.c.l.b16 %v3606
        %v4126 = vunpack.c.l.b16 %v3607
        %v4127 = vunpack.c.l.b16 %v3608
        %v4128 = vunpack.c.l.b16 %v3609
        %v4129 = vunpack.c.l.b16 %v3610
        %v4130 = vunpack.c.l.b16 %v3611
        %v4131 = vunpack.c.l.b16 %v3612
        %v4132 = vunpack.c.l.b16 %v3613
        %v4133 = vunpack.c.l.b16 %v3614
        %v4134 = vunpack.c.l.b16 %v3615
        %v4135 = vunpack.c.l.b16 %v3616
        %v4136 = vunpack.c.l.b16 %v3617
        %v4137 = vunpack.c.l.b16 %v3618
        %v4138 = vunpack.c.l.b16 %v3619
        %v4139 = vunpack.c.l.b16 %v3620
        %v4140 = vunpack.c.l.b16 %v3621
        %v4141 = vunpack.c.l.b16 %v3622
        %v4142 = vunpack.c.l.b16 %v3623
        %v4143 = vunpack.c.l.b16 %v3624
        %v4144 = vunpack.c.l.b16 %v3625
        %v4145 = vunpack.c.l.b16 %v3626
        %v4146 = vunpack.c.l.b16 %v3627
        %v4147 = vunpack.c.l.b16 %v3628
        %v4148 = vunpack.c.l.b16 %v3629
        %v4149 = vunpack.c.l.b16 %v3630
        %v4150 = vunpack.c.l.b16 %v3631
        %v4151 = vunpack.c.l.b16 %v3632
        %v4152 = vunpack.c.l.b16 %v3633
        %v4153 = vunpack.c.l.b16 %v3634
        %v4154 = vunpack.c.l.b16 %v3635
        %v4155 = vunpack.c.l.b16 %v3636
        %v4156 = vunpack.c.l.b16 %v3637
        %v4157 = vunpack.c.l.b16 %v3638
        %v4158 = vunpack.c.l.b16 %v3639
        %v4159 = vunpack.c.l.b16 %v3640
        %v4160 = vunpack.c.l.b16 %v3641
        %v4161 = vunpack.c.l.b16 %v3642
        %v4162 = vunpack.c.l.b16 %v3643
        %v4163 = vunpack.c.l.b16 %v3644
        %v4164 = vunpack.c.l.b16 %v3645
        %v4165 = vunpack.c.l.b16 %v3646
        %v4166 = vunpack.c.l.b16 %v3647
        %v4167 = vunpack.c.l.b16 %v3648
        %v4168 = vunpack.c.l.b16 %v3649
        %v4169 = vunpack.c.l.b16 %v3650
        %v4170 = vunpack.c.l.b16 %v3651
        %v4171 = vunpack.c.l.b16 %v3652
        %v4172 = vunpack.c.l.b16 %v3653
        %v4173 = vunpack.c.l.b16 %v3654
        %v4174 = vunpack.c.l.b16 %v3655
        %v4175 = vunpack.c.l.b16 %v3656
        %v4176 = vunpack.c.l.b16 %v3657
        %v4177 = vunpack.c.l.b16 %v3658
        %v4178 = vunpack.c.l.b16 %v3659
        %v4179 = vunpack.c.l.b16 %v3660
        %v4180 = vunpack.c.l.b16 %v3661
        %v4181 = vunpack.c.l.b16 %v3662
        %v4182 = vunpack.c.l.b16 %v3663
        %v4183 = vunpack.c.l.b16 %v3664
        %v4184 = vunpack.c.l.b16 %v3665
        %v4185 = vunpack.c.l.b16 %v3666
        %v4186 = vunpack.c.l.b16 %v3667
        %v4187 = vunpack.c.l.b16 %v3668
        %v4188 = vunpack.c.l.b16 %v3669
        %v4189 = vunpack.c.l.b16 %v3670
        %v4190 = vunpack.c.l.b16 %v3671
        %v4191 = vunpack.c.l.b16 %v3672
        %v4192 = vunpack.c.l.b16 %v3673
        %v4193 = vunpack.c.l.b16 %v3674
        %v4194 = vunpack.c.l.b16 %v3675
        %v4195 = vunpack.c.l.b16 %v3676
        %v4196 = vunpack.c.l.b16 %v3677
        %v4197 = vunpack.c.l.b16 %v3678
        %v4198 = vunpack.c.l.b16 %v3679
        %v4199 = vunpack.c.l.b16 %v3680
        %v4200 = vunpack.c.l.b16 %v3681
        %v4201 = vunpack.c.l.b16 %v3682
        %v4202 = vunpack.c.l.b16 %v3683
        %v4203 = vunpack.c.l.b16 %v3684
        %v4204 = vunpack.c.l.b16 %v3685
        %v4205 = vunpack.c.l.b16 %v3686
        %v4206 = vunpack.c.l.b16 %v3687
        %v4207 = vunpack.c.l.b16 %v3688
        %v4208 = vunpack.c.l.b16 %v3689
        %v4209 = vunpack.c.l.b16 %v3690
        %v4210 = vunpack.c.l.b16 %v3691
        %v4211 = vunpack.c.l.b16 %v3692
        %v4212 = vunpack.c.l.b16 %v3693
        %v4213 = vunpack.c.l.b16 %v3694
        %v4214 = vunpack.c.l.b16 %v3695
        %v4215 = vunpack.c.l.b16 %v3696
        %v4216 = vunpack.c.l.b16 %v3697
        %v4217 = vunpack.c.l.b16 %v3698
        %v4218 = vunpack.c.l.b16 %v3699
        %v4219 = vunpack.c.l.b16 %v3700
        %v4220 = vunpack.c.l.b16 %v3701
        %v4221 = vunpack.c.l.b16 %v3702
        %v4222 = vunpack.c.l.b16 %v3703
        %v4223 = vunpack.c.l.b16 %v3704
        %v4224 = vunpack.c.l.b16 %v3705
        %v4225 = vunpack.c.l.b16 %v3706
        %v4226 = vunpack.c.l.b16 %v3707
        %v4227 = vunpack.c.l.b16 %v3708
        %v4228 = vunpack.c.l.b16 %v3709
        %v4229 = vunpack.c.l.b16 %v3710
        %v4230 = vunpack.c.l.b16 %v3711
        %v4231 = vunpack.c.l.b16 %v3712
        %v4232 = vunpack.c.l.b16 %v3713
        %v4233 = vunpack.c.l.b16 %v3714
        %v4234 = vunpack.c.l.b16 %v3715
        %v4235 = vunpack.c.l.b16 %v3716
        %v4236 = vunpack.c.l.b16 %v3717
        %v4237 = vunpack.c.l.b16 %v3718
        %v4238 = vpack.c.b16 %v3983, %v3982
        %v4239 = vpack.c.b16 %v3985, %v3984
        %v4240 = vpack.c.b16 %v3987, %v3986
        %v4241 = vpack.c.b16 %v3989, %v3988
        %v4242 = vpack.c.b16 %v3991, %v3990
        %v4243 = vpack.c.b16 %v3993, %v3992
        %v4244 = vpack.c.b16 %v3995, %v3994
        %v4245 = vpack.c.b16 %v3997, %v3996
        %v4246 = vpack.c.b16 %v3999, %v3998
        %v4247 = vpack.c.b16 %v4001, %v4000
        %v4248 = vpack.c.b16 %v4003, %v4002
        %v4249 = vpack.c.b16 %v4005, %v4004
        %v4250 = vpack.c.b16 %v4007, %v4006
        %v4251 = vpack.c.b16 %v4009, %v4008
        %v4252 = vpack.c.b16 %v4011, %v4010
        %v4253 = vpack.c.b16 %v4013, %v4012
        %v4254 = vpack.c.b16 %v4015, %v4014
        %v4255 = vpack.c.b16 %v4017, %v4016
        %v4256 = vpack.c.b16 %v4019, %v4018
        %v4257 = vpack.c.b16 %v4021, %v4020
        %v4258 = vpack.c.b16 %v4023, %v4022
        %v4259 = vpack.c.b16 %v4025, %v4024
        %v4260 = vpack.c.b16 %v4027, %v4026
        %v4261 = vpack.c.b16 %v4029, %v4028
        %v4262 = vpack.c.b16 %v4031, %v4030
        %v4263 = vpack.c.b16 %v4033, %v4032
        %v4264 = vpack.c.b16 %v4035, %v4034
        %v4265 = vpack.c.b16 %v4037, %v4036
        %v4266 = vpack.c.b16 %v4039, %v4038
        %v4267 = vpack.c.b16 %v4041, %v4040
        %v4268 = vpack.c.b16 %v4043, %v4042
        %v4269 = vpack.c.b16 %v4045, %v4044
        %v4270 = vpack.c.b16 %v4047, %v4046
        %v4271 = vpack.c.b16 %v4049, %v4048
        %v4272 = vpack.c.b16 %v4051, %v4050
        %v4273 = vpack.c.b16 %v4053, %v4052
        %v4274 = vpack.c.b16 %v4055, %v4054
        %v4275 = vpack.c.b16 %v4057, %v4056
        %v4276 = vpack.c.b16 %v4059, %v4058
        %v4277 = vpack.c.b16 %v4061, %v4060
        %v4278 = vpack.c.b16 %v4063, %v4062
        %v4279 = vpack.c.b16 %v4065, %v4064
        %v4280 = vpack.c.b16 %v4067, %v4066
        %v4281 = vpack.c.b16 %v4069, %v4068
        %v4282 = vpack.c.b16 %v4071, %v4070
        %v4283 = vpack.c.b16 %v4073, %v4072
        %v4284 = vpack.c.b16 %v4075, %v4074
        %v4285 = vpack.c.b16 %v4077, %v4076
        %v4286 = vpack.c.b16 %v4079, %v4078
        %v4287 = vpack.c.b16 %v4081, %v4080
        %v4288 = vpack.c.b16 %v4083, %v4082
        %v4289 = vpack.c.b16 %v4085, %v4084
        %v4290 = vpack.c.b16 %v4087, %v4086
        %v4291 = vpack.c.b16 %v4089, %v4088
        %v4292 = vpack.c.b16 %v4091, %v4090
        %v4293 = vpack.c.b16 %v4093, %v4092
        %v4294 = vpack.c.b16 %v4095, %v4094
        %v4295 = vpack.c.b16 %v4097, %v4096
        %v4296 = vpack.c.b16 %v4099, %v4098
        %v4297 = vpack.c.b16 %v4101, %v4100
        %v4298 = vpack.c.b16 %v4103, %v4102
        %v4299 = vpack.c.b16 %v4105, %v4104
        %v4300 = vpack.c.b16 %v4107, %v4106
        %v4301 = vpack.c.b16 %v4109, %v4108
        %v4302 = vpack.c.b16 %v4111, %v4110
        %v4303 = vpack.c.b16 %v4113, %v4112
        %v4304 = vpack.c.b16 %v4115, %v4114
        %v4305 = vpack.c.b16 %v4117, %v4116
        %v4306 = vpack.c.b16 %v4119, %v4118
        %v4307 = vpack.c.b16 %v4121, %v4120
        %v4308 = vpack.c.b16 %v4123, %v4122
        %v4309 = vpack.c.b16 %v4125, %v4124
        %v4310 = vpack.c.b16 %v4127, %v4126
        %v4311 = vpack.c.b16 %v4129, %v4128
        %v4312 = vpack.c.b16 %v4131, %v4130
        %v4313 = vpack.c.b16 %v4133, %v4132
        %v4314 = vpack.c.b16 %v4135, %v4134
        %v4315 = vpack.c.b16 %v4137, %v4136
        %v4316 = vpack.c.b16 %v4139, %v4138
        %v4317 = vpack.c.b16 %v4141, %v4140
        %v4318 = vpack.c.b16 %v4143, %v4142
        %v4319 = vpack.c.b16 %v4145, %v4144
        %v4320 = vpack.c.b16 %v4147, %v4146
        %v4321 = vpack.c.b16 %v4149, %v4148
        %v4322 = vpack.c.b16 %v4151, %v4150
        %v4323 = vpack.c.b16 %v4153, %v4152
        %v4324 = vpack.c.b16 %v4155, %v4154
        %v4325 = vpack.c.b16 %v4157, %v4156
        %v4326 = vpack.c.b16 %v4159, %v4158
        %v4327 = vpack.c.b16 %v4161, %v4160
        %v4328 = vpack.c.b16 %v4163, %v4162
        %v4329 = vpack.c.b16 %v4165, %v4164
        %v4330 = vpack.c.b16 %v4167, %v4166
        %v4331 = vpack.c.b16 %v4169, %v4168
        %v4332 = vpack.c.b16 %v4171, %v4170
        %v4333 = vpack.c.b16 %v4173, %v4172
        %v4334 = vpack.c.b16 %v4175, %v4174
        %v4335 = vpack.c.b16 %v4177, %v4176
        %v4336 = vpack.c.b16 %v4179, %v4178
        %v4337 = vpack.c.b16 %v4181, %v4180
        %v4338 = vpack.c.b16 %v4183, %v4182
        %v4339 = vpack.c.b16 %v4185, %v4184
        %v4340 = vpack.c.b16 %v4187, %v4186
        %v4341 = vpack.c.b16 %v4189, %v4188
        %v4342 = vpack.c.b16 %v4191, %v4190
        %v4343 = vpack.c.b16 %v4193, %v4192
        %v4344 = vpack.c.b16 %v4195, %v4194
        %v4345 = vpack.c.b16 %v4197, %v4196
        %v4346 = vpack.c.b16 %v4199, %v4198
        %v4347 = vpack.c.b16 %v4201, %v4200
        %v4348 = vpack.c.b16 %v4203, %v4202
        %v4349 = vpack.c.b16 %v4205, %v4204
        %v4350 = vpack.c.b16 %v4207, %v4206
        %v4351 = vpack.c.b16 %v4209, %v4208
        %v4352 = vpack.c.b16 %v4211, %v4210
        %v4353 = vpack.c.b16 %v4213, %v4212
        %v4354 = vpack.c.b16 %v4215, %v4214
        %v4355 = vpack.c.b16 %v4217, %v4216
        %v4356 = vpack.c.b16 %v4219, %v4218
        %v4357 = vpack.c.b16 %v4221, %v4220
        %v4358 = vpack.c.b16 %v4223, %v4222
        %v4359 = vpack.c.b16 %v4225, %v4224
        %v4360 = vpack.c.b16 %v4227, %v4226
        %v4361 = vpack.c.b16 %v4229, %v4228
        %v4362 = vpack.c.b16 %v4231, %v4230
        %v4363 = vpack.c.b16 %v4233, %v4232
        %v4364 = vpack.c.b16 %v4235, %v4234
        %v4365 = vpack.c.b16 %v4237, %v4236
        %4494 = vmatprep.subr.bf16.mxu0 0
        %4495 = vmatpush1.bf16.msra.mxu0 %v4238
        %4496 = vmatprep.subr.bf16.mxu0 0
        %4497 = vmatpush1.bf16.msra.mxu0 %v4239
        %4498 = vmatprep.subr.bf16.mxu0 0
        %4499 = vmatpush1.bf16.msra.mxu0 %v4240
        %4500 = vmatprep.subr.bf16.mxu0 0
        %4501 = vmatpush1.bf16.msra.mxu0 %v4241
        %4502 = vmatprep.subr.bf16.mxu0 0
        %4503 = vmatpush1.bf16.msra.mxu0 %v4242
        %4504 = vmatprep.subr.bf16.mxu0 0
        %4505 = vmatpush1.bf16.msra.mxu0 %v4243
        %4506 = vmatprep.subr.bf16.mxu0 0
        %4507 = vmatpush1.bf16.msra.mxu0 %v4244
        %4508 = vmatprep.subr.bf16.mxu0 0
        %4509 = vmatpush1.bf16.msra.mxu0 %v4245
        %4510 = vmatprep.subr.bf16.mxu0 0
        %4511 = vmatpush1.bf16.msra.mxu0 %v4246
        %4512 = vmatprep.subr.bf16.mxu0 0
        %4513 = vmatpush1.bf16.msra.mxu0 %v4247
        %4514 = vmatprep.subr.bf16.mxu0 0
        %4515 = vmatpush1.bf16.msra.mxu0 %v4248
        %4516 = vmatprep.subr.bf16.mxu0 0
        %4517 = vmatpush1.bf16.msra.mxu0 %v4249
        %4518 = vmatprep.subr.bf16.mxu0 0
        %4519 = vmatpush1.bf16.msra.mxu0 %v4250
        %4520 = vmatprep.subr.bf16.mxu0 0
        %4521 = vmatpush1.bf16.msra.mxu0 %v4251
        %4522 = vmatprep.subr.bf16.mxu0 0
        %4523 = vmatpush1.bf16.msra.mxu0 %v4252
        %4524 = vmatprep.subr.bf16.mxu0 0
        %4525 = vmatpush1.bf16.msra.mxu0 %v4253
        %4526 = vmatprep.mubr.bf16.mxu0 %v3448
        %4527 = vmatmul.mubr.bf16.gmra.mrb[0].mxu0 %v3447
        %v4528 = vpop.f32.mrb[0].mxu0
        %v4529 = vadd.f32 %v3724, %v4528
        %v4530 = vpop.f32.mrb[0].mxu0
        %v4531 = vpop.f32.mrb[0].mxu0
        %v4532 = vadd.f32 %v3724, %v4531
        %v4533 = vpop.f32.mrb[0].mxu0
        %4534 = vdwg.mxu0
        %4535 = vmatprep.subr.bf16.mxu0 0
        %4536 = vmatpush1.bf16.msra.mxu0 %v4254
        %4537 = vmatprep.subr.bf16.mxu0 0
        %4538 = vmatpush1.bf16.msra.mxu0 %v4255
        %4539 = vmatprep.subr.bf16.mxu0 0
        %4540 = vmatpush1.bf16.msra.mxu0 %v4256
        %4541 = vmatprep.subr.bf16.mxu0 0
        %4542 = vmatpush1.bf16.msra.mxu0 %v4257
        %4543 = vmatprep.subr.bf16.mxu0 0
        %4544 = vmatpush1.bf16.msra.mxu0 %v4258
        %4545 = vmatprep.subr.bf16.mxu0 0
        %4546 = vmatpush1.bf16.msra.mxu0 %v4259
        %4547 = vmatprep.subr.bf16.mxu0 0
        %4548 = vmatpush1.bf16.msra.mxu0 %v4260
        %4549 = vmatprep.subr.bf16.mxu0 0
        %4550 = vmatpush1.bf16.msra.mxu0 %v4261
        %4551 = vmatprep.subr.bf16.mxu0 0
        %4552 = vmatpush1.bf16.msra.mxu0 %v4262
        %4553 = vmatprep.subr.bf16.mxu0 0
        %4554 = vmatpush1.bf16.msra.mxu0 %v4263
        %4555 = vmatprep.subr.bf16.mxu0 0
        %4556 = vmatpush1.bf16.msra.mxu0 %v4264
        %4557 = vmatprep.subr.bf16.mxu0 0
        %4558 = vmatpush1.bf16.msra.mxu0 %v4265
        %4559 = vmatprep.subr.bf16.mxu0 0
        %4560 = vmatpush1.bf16.msra.mxu0 %v4266
        %4561 = vmatprep.subr.bf16.mxu0 0
        %4562 = vmatpush1.bf16.msra.mxu0 %v4267
        %4563 = vmatprep.subr.bf16.mxu0 0
        %4564 = vmatpush1.bf16.msra.mxu0 %v4268
        %4565 = vmatprep.subr.bf16.mxu0 0
        %4566 = vmatpush1.bf16.msra.mxu0 %v4269
        %4567 = vmatprep.mubr.bf16.mxu0 %v3450
        %4568 = vmatmul.mubr.bf16.gmra.mrb[0].mxu0 %v3449
        %v4569 = vpop.f32.mrb[0].mxu0
        %v4570 = vadd.f32 %v4529, %v4569
        %v4571 = vpop.f32.mrb[0].mxu0
        %v4572 = vpop.f32.mrb[0].mxu0
        %v4573 = vadd.f32 %v4532, %v4572
        %v4574 = vpop.f32.mrb[0].mxu0
        %4575 = vdwg.mxu0
        %4576 = vmatprep.subr.bf16.mxu0 0
        %4577 = vmatpush1.bf16.msra.mxu0 %v4270
        %4578 = vmatprep.subr.bf16.mxu0 0
        %4579 = vmatpush1.bf16.msra.mxu0 %v4271
        %4580 = vmatprep.subr.bf16.mxu0 0
        %4581 = vmatpush1.bf16.msra.mxu0 %v4272
        %4582 = vmatprep.subr.bf16.mxu0 0
        %4583 = vmatpush1.bf16.msra.mxu0 %v4273
        %4584 = vmatprep.subr.bf16.mxu0 0
        %4585 = vmatpush1.bf16.msra.mxu0 %v4274
        %4586 = vmatprep.subr.bf16.mxu0 0
        %4587 = vmatpush1.bf16.msra.mxu0 %v4275
        %4588 = vmatprep.subr.bf16.mxu0 0
        %4589 = vmatpush1.bf16.msra.mxu0 %v4276
        %4590 = vmatprep.subr.bf16.mxu0 0
        %4591 = vmatpush1.bf16.msra.mxu0 %v4277
        %4592 = vmatprep.subr.bf16.mxu0 0
        %4593 = vmatpush1.bf16.msra.mxu0 %v4278
        %4594 = vmatprep.subr.bf16.mxu0 0
        %4595 = vmatpush1.bf16.msra.mxu0 %v4279
        %4596 = vmatprep.subr.bf16.mxu0 0
        %4597 = vmatpush1.bf16.msra.mxu0 %v4280
        %4598 = vmatprep.subr.bf16.mxu0 0
        %4599 = vmatpush1.bf16.msra.mxu0 %v4281
        %4600 = vmatprep.subr.bf16.mxu0 0
        %4601 = vmatpush1.bf16.msra.mxu0 %v4282
        %4602 = vmatprep.subr.bf16.mxu0 0
        %4603 = vmatpush1.bf16.msra.mxu0 %v4283
        %4604 = vmatprep.subr.bf16.mxu0 0
        %4605 = vmatpush1.bf16.msra.mxu0 %v4284
        %4606 = vmatprep.subr.bf16.mxu0 0
        %4607 = vmatpush1.bf16.msra.mxu0 %v4285
        %4608 = vmatprep.mubr.bf16.mxu0 %v3452
        %4609 = vmatmul.mubr.bf16.gmra.mrb[0].mxu0 %v3451
        %v4610 = vpop.f32.mrb[0].mxu0
        %v4611 = vadd.f32 %v4570, %v4610
        %v4612 = vpop.f32.mrb[0].mxu0
        %v4613 = vpop.f32.mrb[0].mxu0
        %v4614 = vadd.f32 %v4573, %v4613
        %v4615 = vpop.f32.mrb[0].mxu0
        %4616 = vdwg.mxu0
        %4617 = vmatprep.subr.bf16.mxu0 0
        %4618 = vmatpush1.bf16.msra.mxu0 %v4286
        %4619 = vmatprep.subr.bf16.mxu0 0
        %4620 = vmatpush1.bf16.msra.mxu0 %v4287
        %4621 = vmatprep.subr.bf16.mxu0 0
        %4622 = vmatpush1.bf16.msra.mxu0 %v4288
        %4623 = vmatprep.subr.bf16.mxu0 0
        %4624 = vmatpush1.bf16.msra.mxu0 %v4289
        %4625 = vmatprep.subr.bf16.mxu0 0
        %4626 = vmatpush1.bf16.msra.mxu0 %v4290
        %4627 = vmatprep.subr.bf16.mxu0 0
        %4628 = vmatpush1.bf16.msra.mxu0 %v4291
        %4629 = vmatprep.subr.bf16.mxu0 0
        %4630 = vmatpush1.bf16.msra.mxu0 %v4292
        %4631 = vmatprep.subr.bf16.mxu0 0
        %4632 = vmatpush1.bf16.msra.mxu0 %v4293
        %4633 = vmatprep.subr.bf16.mxu0 0
        %4634 = vmatpush1.bf16.msra.mxu0 %v4294
        %4635 = vmatprep.subr.bf16.mxu0 0
        %4636 = vmatpush1.bf16.msra.mxu0 %v4295
        %4637 = vmatprep.subr.bf16.mxu0 0
        %4638 = vmatpush1.bf16.msra.mxu0 %v4296
        %4639 = vmatprep.subr.bf16.mxu0 0
        %4640 = vmatpush1.bf16.msra.mxu0 %v4297
        %4641 = vmatprep.subr.bf16.mxu0 0
        %4642 = vmatpush1.bf16.msra.mxu0 %v4298
        %4643 = vmatprep.subr.bf16.mxu0 0
        %4644 = vmatpush1.bf16.msra.mxu0 %v4299
        %4645 = vmatprep.subr.bf16.mxu0 0
        %4646 = vmatpush1.bf16.msra.mxu0 %v4300
        %4647 = vmatprep.subr.bf16.mxu0 0
        %4648 = vmatpush1.bf16.msra.mxu0 %v4301
        %4649 = vmatprep.mubr.bf16.mxu0 %v3454
        %4650 = vmatmul.mubr.bf16.gmra.mrb[0].mxu0 %v3453
        %v4651 = vpop.f32.mrb[0].mxu0
        %v4652 = vadd.f32 %v4611, %v4651
        %v4653 = vpop.f32.mrb[0].mxu0
        %v4654 = vpop.f32.mrb[0].mxu0
        %v4655 = vadd.f32 %v4614, %v4654
        %v4656 = vpop.f32.mrb[0].mxu0
        %4657 = vdwg.mxu0
        %4658 = vmatprep.subr.bf16.mxu0 0
        %4659 = vmatpush1.bf16.msra.mxu0 %v4302
        %4660 = vmatprep.subr.bf16.mxu0 0
        %4661 = vmatpush1.bf16.msra.mxu0 %v4303
        %4662 = vmatprep.subr.bf16.mxu0 0
        %4663 = vmatpush1.bf16.msra.mxu0 %v4304
        %4664 = vmatprep.subr.bf16.mxu0 0
        %4665 = vmatpush1.bf16.msra.mxu0 %v4305
        %4666 = vmatprep.subr.bf16.mxu0 0
        %4667 = vmatpush1.bf16.msra.mxu0 %v4306
        %4668 = vmatprep.subr.bf16.mxu0 0
        %4669 = vmatpush1.bf16.msra.mxu0 %v4307
        %4670 = vmatprep.subr.bf16.mxu0 0
        %4671 = vmatpush1.bf16.msra.mxu0 %v4308
        %4672 = vmatprep.subr.bf16.mxu0 0
        %4673 = vmatpush1.bf16.msra.mxu0 %v4309
        %4674 = vmatprep.subr.bf16.mxu0 0
        %4675 = vmatpush1.bf16.msra.mxu0 %v4310
        %4676 = vmatprep.subr.bf16.mxu0 0
        %4677 = vmatpush1.bf16.msra.mxu0 %v4311
        %4678 = vmatprep.subr.bf16.mxu0 0
        %4679 = vmatpush1.bf16.msra.mxu0 %v4312
        %4680 = vmatprep.subr.bf16.mxu0 0
        %4681 = vmatpush1.bf16.msra.mxu0 %v4313
        %4682 = vmatprep.subr.bf16.mxu0 0
        %4683 = vmatpush1.bf16.msra.mxu0 %v4314
        %4684 = vmatprep.subr.bf16.mxu0 0
        %4685 = vmatpush1.bf16.msra.mxu0 %v4315
        %4686 = vmatprep.subr.bf16.mxu0 0
        %4687 = vmatpush1.bf16.msra.mxu0 %v4316
        %4688 = vmatprep.subr.bf16.mxu0 0
        %4689 = vmatpush1.bf16.msra.mxu0 %v4317
        %4690 = vmatprep.mubr.bf16.mxu0 %v3456
        %4691 = vmatmul.mubr.bf16.gmra.mrb[0].mxu0 %v3455
        %v4692 = vpop.f32.mrb[0].mxu0
        %v4693 = vadd.f32 %v4652, %v4692
        %v4694 = vpop.f32.mrb[0].mxu0
        %v4695 = vpop.f32.mrb[0].mxu0
        %v4696 = vadd.f32 %v4655, %v4695
        %v4697 = vpop.f32.mrb[0].mxu0
        %4698 = vdwg.mxu0
        %4699 = vmatprep.subr.bf16.mxu0 0
        %4700 = vmatpush1.bf16.msra.mxu0 %v4318
        %4701 = vmatprep.subr.bf16.mxu0 0
        %4702 = vmatpush1.bf16.msra.mxu0 %v4319
        %4703 = vmatprep.subr.bf16.mxu0 0
        %4704 = vmatpush1.bf16.msra.mxu0 %v4320
        %4705 = vmatprep.subr.bf16.mxu0 0
        %4706 = vmatpush1.bf16.msra.mxu0 %v4321
        %4707 = vmatprep.subr.bf16.mxu0 0
        %4708 = vmatpush1.bf16.msra.mxu0 %v4322
        %4709 = vmatprep.subr.bf16.mxu0 0
        %4710 = vmatpush1.bf16.msra.mxu0 %v4323
        %4711 = vmatprep.subr.bf16.mxu0 0
        %4712 = vmatpush1.bf16.msra.mxu0 %v4324
        %4713 = vmatprep.subr.bf16.mxu0 0
        %4714 = vmatpush1.bf16.msra.mxu0 %v4325
        %4715 = vmatprep.subr.bf16.mxu0 0
        %4716 = vmatpush1.bf16.msra.mxu0 %v4326
        %4717 = vmatprep.subr.bf16.mxu0 0
        %4718 = vmatpush1.bf16.msra.mxu0 %v4327
        %4719 = vmatprep.subr.bf16.mxu0 0
        %4720 = vmatpush1.bf16.msra.mxu0 %v4328
        %4721 = vmatprep.subr.bf16.mxu0 0
        %4722 = vmatpush1.bf16.msra.mxu0 %v4329
        %4723 = vmatprep.subr.bf16.mxu0 0
        %4724 = vmatpush1.bf16.msra.mxu0 %v4330
        %4725 = vmatprep.subr.bf16.mxu0 0
        %4726 = vmatpush1.bf16.msra.mxu0 %v4331
        %4727 = vmatprep.subr.bf16.mxu0 0
        %4728 = vmatpush1.bf16.msra.mxu0 %v4332
        %4729 = vmatprep.subr.bf16.mxu0 0
        %4730 = vmatpush1.bf16.msra.mxu0 %v4333
        %4731 = vmatprep.mubr.bf16.mxu0 %v3458
        %4732 = vmatmul.mubr.bf16.gmra.mrb[0].mxu0 %v3457
        %v4733 = vpop.f32.mrb[0].mxu0
        %v4734 = vadd.f32 %v4693, %v4733
        %v4735 = vpop.f32.mrb[0].mxu0
        %v4736 = vpop.f32.mrb[0].mxu0
        %v4737 = vadd.f32 %v4696, %v4736
        %v4738 = vpop.f32.mrb[0].mxu0
        %4739 = vdwg.mxu0
        %4740 = vmatprep.subr.bf16.mxu0 0
        %4741 = vmatpush1.bf16.msra.mxu0 %v4334
        %4742 = vmatprep.subr.bf16.mxu0 0
        %4743 = vmatpush1.bf16.msra.mxu0 %v4335
        %4744 = vmatprep.subr.bf16.mxu0 0
        %4745 = vmatpush1.bf16.msra.mxu0 %v4336
        %4746 = vmatprep.subr.bf16.mxu0 0
        %4747 = vmatpush1.bf16.msra.mxu0 %v4337
        %4748 = vmatprep.subr.bf16.mxu0 0
        %4749 = vmatpush1.bf16.msra.mxu0 %v4338
        %4750 = vmatprep.subr.bf16.mxu0 0
        %4751 = vmatpush1.bf16.msra.mxu0 %v4339
        %4752 = vmatprep.subr.bf16.mxu0 0
        %4753 = vmatpush1.bf16.msra.mxu0 %v4340
        %4754 = vmatprep.subr.bf16.mxu0 0
        %4755 = vmatpush1.bf16.msra.mxu0 %v4341
        %4756 = vmatprep.subr.bf16.mxu0 0
        %4757 = vmatpush1.bf16.msra.mxu0 %v4342
        %4758 = vmatprep.subr.bf16.mxu0 0
        %4759 = vmatpush1.bf16.msra.mxu0 %v4343
        %4760 = vmatprep.subr.bf16.mxu0 0
        %4761 = vmatpush1.bf16.msra.mxu0 %v4344
        %4762 = vmatprep.subr.bf16.mxu0 0
        %4763 = vmatpush1.bf16.msra.mxu0 %v4345
        %4764 = vmatprep.subr.bf16.mxu0 0
        %4765 = vmatpush1.bf16.msra.mxu0 %v4346
        %4766 = vmatprep.subr.bf16.mxu0 0
        %4767 = vmatpush1.bf16.msra.mxu0 %v4347
        %4768 = vmatprep.subr.bf16.mxu0 0
        %4769 = vmatpush1.bf16.msra.mxu0 %v4348
        %4770 = vmatprep.subr.bf16.mxu0 0
        %4771 = vmatpush1.bf16.msra.mxu0 %v4349
        %4772 = vmatprep.mubr.bf16.mxu0 %v3460
        %4773 = vmatmul.mubr.bf16.gmra.mrb[0].mxu0 %v3459
        %v4774 = vpop.f32.mrb[0].mxu0
        %v4775 = vadd.f32 %v4734, %v4774
        %v4776 = vpop.f32.mrb[0].mxu0
        %v4777 = vpop.f32.mrb[0].mxu0
        %v4778 = vadd.f32 %v4737, %v4777
        %v4779 = vpop.f32.mrb[0].mxu0
        %4780 = vdwg.mxu0
        %4781 = vmatprep.subr.bf16.mxu0 0
        %4782 = vmatpush1.bf16.msra.mxu0 %v4350
        %4783 = vmatprep.subr.bf16.mxu0 0
        %4784 = vmatpush1.bf16.msra.mxu0 %v4351
        %4785 = vmatprep.subr.bf16.mxu0 0
        %4786 = vmatpush1.bf16.msra.mxu0 %v4352
        %4787 = vmatprep.subr.bf16.mxu0 0
        %4788 = vmatpush1.bf16.msra.mxu0 %v4353
        %4789 = vmatprep.subr.bf16.mxu0 0
        %4790 = vmatpush1.bf16.msra.mxu0 %v4354
        %4791 = vmatprep.subr.bf16.mxu0 0
        %4792 = vmatpush1.bf16.msra.mxu0 %v4355
        %4793 = vmatprep.subr.bf16.mxu0 0
        %4794 = vmatpush1.bf16.msra.mxu0 %v4356
        %4795 = vmatprep.subr.bf16.mxu0 0
        %4796 = vmatpush1.bf16.msra.mxu0 %v4357
        %4797 = vmatprep.subr.bf16.mxu0 0
        %4798 = vmatpush1.bf16.msra.mxu0 %v4358
        %4799 = vmatprep.subr.bf16.mxu0 0
        %4800 = vmatpush1.bf16.msra.mxu0 %v4359
        %4801 = vmatprep.subr.bf16.mxu0 0
        %4802 = vmatpush1.bf16.msra.mxu0 %v4360
        %4803 = vmatprep.subr.bf16.mxu0 0
        %4804 = vmatpush1.bf16.msra.mxu0 %v4361
        %4805 = vmatprep.subr.bf16.mxu0 0
        %4806 = vmatpush1.bf16.msra.mxu0 %v4362
        %4807 = vmatprep.subr.bf16.mxu0 0
        %4808 = vmatpush1.bf16.msra.mxu0 %v4363
        %4809 = vmatprep.subr.bf16.mxu0 0
        %4810 = vmatpush1.bf16.msra.mxu0 %v4364
        %4811 = vmatprep.subr.bf16.mxu0 0
        %4812 = vmatpush1.bf16.msra.mxu0 %v4365
        %4813 = vmatprep.mubr.bf16.mxu0 %v3462
        %4814 = vmatmul.mubr.bf16.gmra.mrb[0].mxu0 %v3461
        %v4815 = vpop.f32.mrb[0].mxu0
        %v4816 = vadd.f32 %v4775, %v4815
        %v4817 = vpop.f32.mrb[0].mxu0
        %v4818 = vpop.f32.mrb[0].mxu0
        %v4819 = vadd.f32 %v4778, %v4818
        %v4820 = vpop.f32.mrb[0].mxu0
        %4821 = vdwg.mxu0
        %v4822 = vtanh.pop %v4816
        %v4823 = vtanh.pop %v4819
        %4824 = vst [vmem:[%s1326] sm:$0xff] %v4822
        %4825 = vst [vmem:[%s1326 + $0x8] sm:$0xff] %v4823
        %s4826 = sand.u32 %s161, 1
        %s4827 = scalar_lea.sflag [#allocation5], %s4826
        %s4828 = sand.u32 %s161, 1
        %s4829 = smul.addr %s4828, 16
        %s4830 = scalar_lea.vmem [#allocation4], %s4829
        // Predicated region
        $region86: #{generator_head_forward.1} parent=76 // pred_check
          %p4831 = pneg %p171
        $region87: #{generator_head_forward.1} parent=76 // pred_check_branch
          %4833 = sbr.rel (%p4831) target = $region89
        $region88: #{generator_head_forward.1} parent=76 // pred_region
          %s4834 = smul.u32 2, %s23
          %s4836 = ssub.s32 256, 256
          %4837 = vsyncadd %s4827, %s4836
          %s4838 = smul.addr %s4834, 5
          %s4839 = sadd.s32 %s24, %s4838
          %s4840 = smul.addr %s4839, 128
          %s4841 = scalar_lea.hbm %s5, %s4840
          %s4842 = sshll.u32 %s4830, 4
          %s4843 = int_to_ptr.vmem [resolvable:$true] %s4842
          %4848 = dma.vmem_to_hbm [thread:$0]  %s4843, 256, %s4841, %s4827, 128, 640, 8
        $region89: #{generator_head_forward.1} parent=76 // pred_fallthru
          _
      $region77: #{generator_head_forward.1} parent=5 // pred_fallthru
        _
      %p4849 = scmp.le.s32.totalorder 2, %s14
      // Predicated region
      $region90: #{generator_head_forward.1} parent=5 // pred_check
        %p4850 = pneg %p4849
      $region91: #{generator_head_forward.1} parent=5 // pred_check_branch
        %4852 = sbr.rel (%p4850) target = $region93
      $region92: #{generator_head_forward.1} parent=5 // pred_region
        %s4853 = ssub.s32 %s14, 2
        // Predicated region
        $region94: #{generator_head_forward.1} parent=92 // pred_check
          %p4854 = pneg %p177
        $region95: #{generator_head_forward.1} parent=92 // pred_check_branch
          %4856 = sbr.rel (%p4854) target = $region97
        $region96: #{generator_head_forward.1} parent=92 // pred_region
          %s4857 = sand.u32 %s162, 1
          %s4858 = scalar_lea.sflag [#allocation5], %s4857
          %s4859 = sand.u32 %s162, 1
          %s4860 = smul.addr %s4859, 16
          %s4861 = scalar_lea.vmem [#allocation4], %s4860
          %4862 = dma.done %s4858, 256
        $region97: #{generator_head_forward.1} parent=92 // pred_fallthru
          _
      $region93: #{generator_head_forward.1} parent=5 // pred_fallthru
        _
    $region6: #{generator_head_forward.1} parent=1 // loop_footer
      %s18 = sadd.s32 1, %s14
    $region7: #{generator_head_forward.1} parent=1 // loop_footer_branch
      %13 = sbr.rel target = $region3
    $region8: #{generator_head_forward.1} parent=1 // loop_exit
      _
    %4863 = vsyncpa [#allocation5], 1
    %s4864 = scalar_lea.sflag [#allocation5], 1
    %4865 = vsyncpa %s4864, 1

</llo_original>
